<compile_context>
chip_gen: v5e
topology: v5e:2x2
jax: 0.10.0
libtpu: 0.0.40
codegen_flags: <defaults>
</compile_context>

<pallas_src>
import functools
import math

import jax
import jax.numpy as jnp
from jax.experimental import pallas as pl
from jax.experimental.pallas import tpu as pltpu  # noqa: F401  (not needed at this size)


# ---------------------------------------------------------------------------
# Fused Pallas kernel: whole forward pass in one invocation
# ---------------------------------------------------------------------------

def _full_spec(shape):
    # full-array block, no grid (everything fits comfortably in VMEM)
    return pl.BlockSpec(shape, lambda: (0,) * len(shape))


def _fused_forward_kernel(x_ref, pe_ref, emb_w_ref, emb_b_ref,
                          wqkv_ref, bqkv_ref, wo_ref, bo_ref,
                          w1_ref, b1_ref, w2_ref, b2_ref,
                          ln1g_ref, ln1b_ref, ln2g_ref, ln2b_ref,
                          fc_w_ref, fc_b_ref, out_ref,
                          *, S, B, H, num_layers, eps):
    D = emb_w_ref.shape[1]
    Dh = D // H
    scale = 1.0 / math.sqrt(Dh)

    def layer_norm(y, g, b):
        mu = jnp.mean(y, axis=-1, keepdims=True)
        c = y - mu
        var = jnp.mean(c * c, axis=-1, keepdims=True)
        return c * jax.lax.rsqrt(var + eps) * g + b

    # ---- embedding + positional encoding (PE broadcast stays in VMEM) ----
    h = jnp.dot(x_ref[...], emb_w_ref[...],
                preferred_element_type=jnp.float32) + emb_b_ref[...]      # (B*S, D)
    pe = pe_ref[...]                                                      # (S, D)
    h = h + jnp.concatenate([pe] * B, axis=0)                             # batch-major rows

    # ---- encoder layers, fully VMEM-resident ----
    for l in range(num_layers):
        # single fused QKV projection: (B*S, D) @ (D, 3D)
        qkv = jnp.dot(h, wqkv_ref[l],
                      preferred_element_type=jnp.float32) + bqkv_ref[l]   # (B*S, 3D)
        wo = wo_ref[l]

        o_rows = []
        for bi in range(B):
            r0 = bi * S                       # rows of batch bi are contiguous
            acc = jnp.zeros((S, D), dtype=jnp.float32)
            for hi in range(H):
                c0 = hi * Dh
                q = qkv[r0:r0 + S, c0:c0 + Dh]
                k = qkv[r0:r0 + S, D + c0:D + c0 + Dh]
                v = qkv[r0:r0 + S, 2 * D + c0:2 * D + c0 + Dh]
                # q @ k^T without materializing a transpose
                s = jax.lax.dot_general(
                    q, k, (((1,), (1,)), ((), ())),
                    preferred_element_type=jnp.float32) * scale
                s = s - jnp.max(s, axis=-1, keepdims=True)
                p = jnp.exp(s)
                p = p / jnp.sum(p, axis=-1, keepdims=True)
                o_bh = jnp.dot(p, v, preferred_element_type=jnp.float32)  # (S, Dh)
                # head-merge fused with out-projection:
                #   concat_h(o_h) @ Wo == sum_h o_h @ Wo[h*Dh:(h+1)*Dh]
                acc = acc + jnp.dot(o_bh, wo[c0:c0 + Dh, :],
                                    preferred_element_type=jnp.float32)
            o_rows.append(acc)                                            # (S, D)
        o = jnp.concatenate(o_rows, axis=0) + bo_ref[l]                   # (B*S, D)
        # post-norm residual: x = norm1(x + attn(x))
        h = layer_norm(h + o, ln1g_ref[l], ln1b_ref[l])

        # feed-forward, ReLU
        f = jnp.dot(h, w1_ref[l], preferred_element_type=jnp.float32) + b1_ref[l]
        f = jnp.maximum(f, 0.0)
        f = jnp.dot(f, w2_ref[l], preferred_element_type=jnp.float32) + b2_ref[l]
        # x = norm2(x + ff(x))
        h = layer_norm(h + f, ln2g_ref[l], ln2b_ref[l])

    # ---- mean over dim=1 (the batch axis) + classifier, still in VMEM ----
    m = h[0:S, :]
    for bi in range(1, B):
        m = m + h[bi * S:(bi + 1) * S, :]
    m = m * (1.0 / B)
    out_ref[...] = jnp.dot(m, fc_w_ref[...],
                           preferred_element_type=jnp.float32) + fc_b_ref[...]


# ---------------------------------------------------------------------------
# Model glue (plain JAX, runs once under jit)
# ---------------------------------------------------------------------------

def positional_encoding(S, D):
    position = jnp.arange(S, dtype=jnp.float32)[:, None]
    div_term = jnp.exp(jnp.arange(0, D, 2, dtype=jnp.float32) *
                       (-math.log(10000.0) / D))
    pe = jnp.zeros((S, D), dtype=jnp.float32)
    pe = pe.at[:, 0::2].set(jnp.sin(position * div_term))
    pe = pe.at[:, 1::2].set(jnp.cos(position * div_term))
    return pe                                                             # (S, D)


def init_params(key, input_dim, num_classes, d_model, nhead, num_layers, dim_ff):
    def lin(k, fan_in, fan_out):
        kw, kb = jax.random.split(k)
        bound = 1.0 / math.sqrt(fan_in)
        w = jax.random.uniform(kw, (fan_in, fan_out), minval=-bound, maxval=bound,
                               dtype=jnp.float32)
        b = jax.random.uniform(kb, (fan_out,), minval=-bound, maxval=bound,
                               dtype=jnp.float32)
        return w, b

    keys = jax.random.split(key, 2 + num_layers)
    emb_w, emb_b = lin(keys[0], input_dim, d_model)
    fc_w, fc_b = lin(keys[1], d_model, num_classes)
    layers = []
    for i in range(num_layers):
        lk = jax.random.split(keys[2 + i], 6)
        wq, bq = lin(lk[0], d_model, d_model)
        wk, bk = lin(lk[1], d_model, d_model)
        wv, bv = lin(lk[2], d_model, d_model)
        wo, bo = lin(lk[3], d_model, d_model)
        w1, b1 = lin(lk[4], d_model, dim_ff)
        w2, b2 = lin(lk[5], dim_ff, d_model)
        layers.append(dict(
            wq=wq, bq=bq, wk=wk, bk=bk, wv=wv, bv=bv, wo=wo, bo=bo,
            w1=w1, b1=b1, w2=w2, b2=b2,
            ln1_g=jnp.ones((d_model,), jnp.float32),
            ln1_b=jnp.zeros((d_model,), jnp.float32),
            ln2_g=jnp.ones((d_model,), jnp.float32),
            ln2_b=jnp.zeros((d_model,), jnp.float32)))
    return dict(emb_w=emb_w, emb_b=emb_b, fc_w=fc_w, fc_b=fc_b, layers=layers)


@functools.partial(jax.jit, static_argnums=(2,))
def transformer_classifier_forward(x, params, nhead):
    # x: (S, B, input_dim), seq-major like PyTorch batch_first=False
    S, B, Din = x.shape
    D = params["emb_w"].shape[1]
    C = params["fc_w"].shape[1]
    layers = params["layers"]
    L = len(layers)

    def stack(fn):
        return jnp.stack([fn(lyr) for lyr in layers], axis=0)

    # pack per-layer params: fused QKV weight/bias + stacked everything else
    wqkv = stack(lambda l: jnp.concatenate([l["wq"], l["wk"], l["wv"]], axis=1))  # (L, D, 3D)
    bqkv = stack(lambda l: jnp.concatenate([l["bq"], l["bk"], l["bv"]]).reshape(1, 3 * D))
    wo = stack(lambda l: l["wo"])                                                 # (L, D, D)
    bo = stack(lambda l: l["bo"].reshape(1, D))
    w1 = stack(lambda l: l["w1"])                                                 # (L, D, F)
    b1 = stack(lambda l: l["b1"].reshape(1, -1))
    w2 = stack(lambda l: l["w2"])                                                 # (L, F, D)
    b2 = stack(lambda l: l["b2"].reshape(1, D))
    ln1g = stack(lambda l: l["ln1_g"].reshape(1, D))
    ln1b = stack(lambda l: l["ln1_b"].reshape(1, D))
    ln2g = stack(lambda l: l["ln2_g"].reshape(1, D))
    ln2b = stack(lambda l: l["ln2_b"].reshape(1, D))

    pe = positional_encoding(S, D)                               # (S, D), no (S,B,D) blow-up
    xb = jnp.transpose(x, (1, 0, 2)).reshape(B * S, Din)         # batch-major rows, once

    inputs = [xb, pe, params["emb_w"], params["emb_b"].reshape(1, D),
              wqkv, bqkv, wo, bo, w1, b1, w2, b2,
              ln1g, ln1b, ln2g, ln2b,
              params["fc_w"], params["fc_b"].reshape(1, C)]

    kernel = functools.partial(_fused_forward_kernel, S=S, B=B, H=nhead,
                               num_layers=L, eps=1e-5)
    return pl.pallas_call(
        kernel,
        out_shape=jax.ShapeDtypeStruct((S, C), jnp.float32),
        in_specs=[_full_spec(a.shape) for a in inputs],
        out_specs=_full_spec((S, C)),
    )(*inputs)


if __name__ == "__main__":
    S, B = 8, 2
    input_dim, num_classes = 16, 5
    d_model, nhead, num_layers, dim_ff = 32, 4, 2, 64

    key = jax.random.PRNGKey(0)
    kx, kp = jax.random.split(key)
    x = jax.random.normal(kx, (S, B, input_dim), dtype=jnp.float32)
    params = init_params(kp, input_dim, num_classes, d_model, nhead,
                         num_layers, dim_ff)

    out = transformer_classifier_forward(x, params, nhead)
    out = jax.block_until_ready(out)
    assert out.shape == (S, num_classes)
    assert bool(jnp.all(jnp.isfinite(out)))
    print("KERNEL_OK")
</pallas_src>

<mosaic_0001>
module attributes {stable_mosaic.version = 11 : i64} {
  func.func @_fused_forward_kernel(%arg0: memref<16x16xf32, #tpu.memory_space<vmem>>, %arg1: memref<8x32xf32, #tpu.memory_space<vmem>>, %arg2: memref<16x32xf32, #tpu.memory_space<vmem>>, %arg3: memref<1x32xf32, #tpu.memory_space<vmem>>, %arg4: memref<2x32x96xf32, #tpu.memory_space<vmem>>, %arg5: memref<2x1x96xf32, #tpu.memory_space<vmem>>, %arg6: memref<2x32x32xf32, #tpu.memory_space<vmem>>, %arg7: memref<2x1x32xf32, #tpu.memory_space<vmem>>, %arg8: memref<2x32x64xf32, #tpu.memory_space<vmem>>, %arg9: memref<2x1x64xf32, #tpu.memory_space<vmem>>, %arg10: memref<2x64x32xf32, #tpu.memory_space<vmem>>, %arg11: memref<2x1x32xf32, #tpu.memory_space<vmem>>, %arg12: memref<2x1x32xf32, #tpu.memory_space<vmem>>, %arg13: memref<2x1x32xf32, #tpu.memory_space<vmem>>, %arg14: memref<2x1x32xf32, #tpu.memory_space<vmem>>, %arg15: memref<2x1x32xf32, #tpu.memory_space<vmem>>, %arg16: memref<32x5xf32, #tpu.memory_space<vmem>>, %arg17: memref<1x5xf32, #tpu.memory_space<vmem>>, %arg18: memref<8x5xf32, #tpu.memory_space<vmem>>) attributes {dimension_semantics = [], scalar_prefetch = 0 : i64, scratch_operands = 0 : i64, tpu.core_type = #tpu.core_type<tc>} {
    %c0 = arith.constant 0 : index
    %c0_0 = arith.constant 0 : index
    %0 = vector.load %arg0[%c0, %c0_0] : memref<16x16xf32, #tpu.memory_space<vmem>>, vector<16x16xf32>
    %c0_1 = arith.constant 0 : index
    %c0_2 = arith.constant 0 : index
    %1 = vector.load %arg2[%c0_1, %c0_2] : memref<16x32xf32, #tpu.memory_space<vmem>>, vector<16x32xf32>
    %cst = arith.constant dense<0.000000e+00> : vector<16x32xf32>
    %2 = tpu.matmul %0, %1, %cst {dimension_numbers = #tpu.dot_dimension_numbers<[1], [0], [0], [1], [0, 0, 1, 1], [], []>} : vector<16x16xf32>, vector<16x32xf32>, vector<16x32xf32> -> vector<16x32xf32>
    %c0_3 = arith.constant 0 : index
    %c0_4 = arith.constant 0 : index
    %3 = vector.load %arg3[%c0_3, %c0_4] : memref<1x32xf32, #tpu.memory_space<vmem>>, vector<1x32xf32>
    %4 = vector.broadcast %3 : vector<1x32xf32> to vector<16x32xf32>
    %5 = arith.addf %2, %4 : vector<16x32xf32>
    %c0_5 = arith.constant 0 : index
    %c0_6 = arith.constant 0 : index
    %6 = vector.load %arg1[%c0_5, %c0_6] : memref<8x32xf32, #tpu.memory_space<vmem>>, vector<8x32xf32>
    %7 = tpu.concatenate %6, %6 in 0 : vector<8x32xf32>, vector<8x32xf32> -> vector<16x32xf32>
    %8 = arith.addf %5, %7 : vector<16x32xf32>
    %c0_7 = arith.constant 0 : index
    %c0_8 = arith.constant 0 : index
    %c0_9 = arith.constant 0 : index
    %9 = vector.load %arg4[%c0_7, %c0_8, %c0_9] : memref<2x32x96xf32, #tpu.memory_space<vmem>>, vector<1x32x96xf32>
    %10 = vector.shape_cast %9 : vector<1x32x96xf32> to vector<32x96xf32>
    %cst_10 = arith.constant dense<0.000000e+00> : vector<16x96xf32>
    %11 = tpu.matmul %8, %10, %cst_10 {dimension_numbers = #tpu.dot_dimension_numbers<[1], [0], [0], [1], [0, 0, 1, 1], [], []>} : vector<16x32xf32>, vector<32x96xf32>, vector<16x96xf32> -> vector<16x96xf32>
    %c0_11 = arith.constant 0 : index
    %c0_12 = arith.constant 0 : index
    %c0_13 = arith.constant 0 : index
    %12 = vector.load %arg5[%c0_11, %c0_12, %c0_13] : memref<2x1x96xf32, #tpu.memory_space<vmem>>, vector<1x1x96xf32>
    %13 = vector.shape_cast %12 : vector<1x1x96xf32> to vector<1x96xf32>
    %14 = vector.broadcast %13 : vector<1x96xf32> to vector<16x96xf32>
    %15 = arith.addf %11, %14 : vector<16x96xf32>
    %c0_14 = arith.constant 0 : index
    %c0_15 = arith.constant 0 : index
    %c0_16 = arith.constant 0 : index
    %16 = vector.load %arg6[%c0_14, %c0_15, %c0_16] : memref<2x32x32xf32, #tpu.memory_space<vmem>>, vector<1x32x32xf32>
    %17 = vector.shape_cast %16 : vector<1x32x32xf32> to vector<32x32xf32>
    %cst_17 = arith.constant 0.000000e+00 : f32
    %18 = vector.broadcast %cst_17 : f32 to vector<8x32xf32>
    %19 = vector.extract_strided_slice %15 {offsets = [0, 0], sizes = [8, 8], strides = [1, 1]} : vector<16x96xf32> to vector<8x8xf32>
    %20 = vector.extract_strided_slice %15 {offsets = [0, 32], sizes = [8, 8], strides = [1, 1]} : vector<16x96xf32> to vector<8x8xf32>
    %21 = vector.extract_strided_slice %15 {offsets = [0, 64], sizes = [8, 8], strides = [1, 1]} : vector<16x96xf32> to vector<8x8xf32>
    %cst_18 = arith.constant dense<0.000000e+00> : vector<8x8xf32>
    %22 = tpu.matmul %19, %20, %cst_18 {dimension_numbers = #tpu.dot_dimension_numbers<[1], [1], [0], [0], [0, 0, 1, 0], [], []>} : vector<8x8xf32>, vector<8x8xf32>, vector<8x8xf32> -> vector<8x8xf32>
    %cst_19 = arith.constant 0.353553385 : f32
    %23 = vector.broadcast %cst_19 : f32 to vector<8x8xf32>
    %24 = arith.mulf %22, %23 : vector<8x8xf32>
    %cst_20 = arith.constant dense<0xFF800000> : vector<8xf32>
    %25 = vector.multi_reduction <maximumf>, %24, %cst_20 [1] : vector<8x8xf32> to vector<8xf32>
    %26 = vector.shape_cast %25 : vector<8xf32> to vector<8x1xf32>
    %27 = vector.broadcast %26 : vector<8x1xf32> to vector<8x8xf32>
    %28 = arith.subf %24, %27 : vector<8x8xf32>
    %29 = math.exp %28 : vector<8x8xf32>
    %cst_21 = arith.constant dense<0.000000e+00> : vector<8xf32>
    %30 = vector.multi_reduction <add>, %29, %cst_21 [1] : vector<8x8xf32> to vector<8xf32>
    %31 = vector.shape_cast %30 : vector<8xf32> to vector<8x1xf32>
    %32 = vector.broadcast %31 : vector<8x1xf32> to vector<8x8xf32>
    %33 = arith.divf %29, %32 : vector<8x8xf32>
    %cst_22 = arith.constant dense<0.000000e+00> : vector<8x8xf32>
    %34 = tpu.matmul %33, %21, %cst_22 {dimension_numbers = #tpu.dot_dimension_numbers<[1], [0], [0], [1], [0, 0, 1, 1], [], []>} : vector<8x8xf32>, vector<8x8xf32>, vector<8x8xf32> -> vector<8x8xf32>
    %35 = vector.extract_strided_slice %17 {offsets = [0, 0], sizes = [8, 32], strides = [1, 1]} : vector<32x32xf32> to vector<8x32xf32>
    %cst_23 = arith.constant dense<0.000000e+00> : vector<8x32xf32>
    %36 = tpu.matmul %34, %35, %cst_23 {dimension_numbers = #tpu.dot_dimension_numbers<[1], [0], [0], [1], [0, 0, 1, 1], [], []>} : vector<8x8xf32>, vector<8x32xf32>, vector<8x32xf32> -> vector<8x32xf32>
    %37 = arith.addf %18, %36 : vector<8x32xf32>
    %38 = vector.extract_strided_slice %15 {offsets = [0, 8], sizes = [8, 8], strides = [1, 1]} : vector<16x96xf32> to vector<8x8xf32>
    %39 = vector.extract_strided_slice %15 {offsets = [0, 40], sizes = [8, 8], strides = [1, 1]} : vector<16x96xf32> to vector<8x8xf32>
    %40 = vector.extract_strided_slice %15 {offsets = [0, 72], sizes = [8, 8], strides = [1, 1]} : vector<16x96xf32> to vector<8x8xf32>
    %cst_24 = arith.constant dense<0.000000e+00> : vector<8x8xf32>
    %41 = tpu.matmul %38, %39, %cst_24 {dimension_numbers = #tpu.dot_dimension_numbers<[1], [1], [0], [0], [0, 0, 1, 0], [], []>} : vector<8x8xf32>, vector<8x8xf32>, vector<8x8xf32> -> vector<8x8xf32>
    %cst_25 = arith.constant 0.353553385 : f32
    %42 = vector.broadcast %cst_25 : f32 to vector<8x8xf32>
    %43 = arith.mulf %41, %42 : vector<8x8xf32>
    %cst_26 = arith.constant dense<0xFF800000> : vector<8xf32>
    %44 = vector.multi_reduction <maximumf>, %43, %cst_26 [1] : vector<8x8xf32> to vector<8xf32>
    %45 = vector.shape_cast %44 : vector<8xf32> to vector<8x1xf32>
    %46 = vector.broadcast %45 : vector<8x1xf32> to vector<8x8xf32>
    %47 = arith.subf %43, %46 : vector<8x8xf32>
    %48 = math.exp %47 : vector<8x8xf32>
    %cst_27 = arith.constant dense<0.000000e+00> : vector<8xf32>
    %49 = vector.multi_reduction <add>, %48, %cst_27 [1] : vector<8x8xf32> to vector<8xf32>
    %50 = vector.shape_cast %49 : vector<8xf32> to vector<8x1xf32>
    %51 = vector.broadcast %50 : vector<8x1xf32> to vector<8x8xf32>
    %52 = arith.divf %48, %51 : vector<8x8xf32>
    %cst_28 = arith.constant dense<0.000000e+00> : vector<8x8xf32>
    %53 = tpu.matmul %52, %40, %cst_28 {dimension_numbers = #tpu.dot_dimension_numbers<[1], [0], [0], [1], [0, 0, 1, 1], [], []>} : vector<8x8xf32>, vector<8x8xf32>, vector<8x8xf32> -> vector<8x8xf32>
    %54 = vector.extract_strided_slice %17 {offsets = [8, 0], sizes = [8, 32], strides = [1, 1]} : vector<32x32xf32> to vector<8x32xf32>
    %cst_29 = arith.constant dense<0.000000e+00> : vector<8x32xf32>
    %55 = tpu.matmul %53, %54, %cst_29 {dimension_numbers = #tpu.dot_dimension_numbers<[1], [0], [0], [1], [0, 0, 1, 1], [], []>} : vector<8x8xf32>, vector<8x32xf32>, vector<8x32xf32> -> vector<8x32xf32>
    %56 = arith.addf %37, %55 : vector<8x32xf32>
    %57 = vector.extract_strided_slice %15 {offsets = [0, 16], sizes = [8, 8], strides = [1, 1]} : vector<16x96xf32> to vector<8x8xf32>
    %58 = vector.extract_strided_slice %15 {offsets = [0, 48], sizes = [8, 8], strides = [1, 1]} : vector<16x96xf32> to vector<8x8xf32>
    %59 = vector.extract_strided_slice %15 {offsets = [0, 80], sizes = [8, 8], strides = [1, 1]} : vector<16x96xf32> to vector<8x8xf32>
    %cst_30 = arith.constant dense<0.000000e+00> : vector<8x8xf32>
    %60 = tpu.matmul %57, %58, %cst_30 {dimension_numbers = #tpu.dot_dimension_numbers<[1], [1], [0], [0], [0, 0, 1, 0], [], []>} : vector<8x8xf32>, vector<8x8xf32>, vector<8x8xf32> -> vector<8x8xf32>
    %cst_31 = arith.constant 0.353553385 : f32
    %61 = vector.broadcast %cst_31 : f32 to vector<8x8xf32>
    %62 = arith.mulf %60, %61 : vector<8x8xf32>
    %cst_32 = arith.constant dense<0xFF800000> : vector<8xf32>
    %63 = vector.multi_reduction <maximumf>, %62, %cst_32 [1] : vector<8x8xf32> to vector<8xf32>
    %64 = vector.shape_cast %63 : vector<8xf32> to vector<8x1xf32>
    %65 = vector.broadcast %64 : vector<8x1xf32> to vector<8x8xf32>
    %66 = arith.subf %62, %65 : vector<8x8xf32>
    %67 = math.exp %66 : vector<8x8xf32>
    %cst_33 = arith.constant dense<0.000000e+00> : vector<8xf32>
    %68 = vector.multi_reduction <add>, %67, %cst_33 [1] : vector<8x8xf32> to vector<8xf32>
    %69 = vector.shape_cast %68 : vector<8xf32> to vector<8x1xf32>
    %70 = vector.broadcast %69 : vector<8x1xf32> to vector<8x8xf32>
    %71 = arith.divf %67, %70 : vector<8x8xf32>
    %cst_34 = arith.constant dense<0.000000e+00> : vector<8x8xf32>
    %72 = tpu.matmul %71, %59, %cst_34 {dimension_numbers = #tpu.dot_dimension_numbers<[1], [0], [0], [1], [0, 0, 1, 1], [], []>} : vector<8x8xf32>, vector<8x8xf32>, vector<8x8xf32> -> vector<8x8xf32>
    %73 = vector.extract_strided_slice %17 {offsets = [16, 0], sizes = [8, 32], strides = [1, 1]} : vector<32x32xf32> to vector<8x32xf32>
    %cst_35 = arith.constant dense<0.000000e+00> : vector<8x32xf32>
    %74 = tpu.matmul %72, %73, %cst_35 {dimension_numbers = #tpu.dot_dimension_numbers<[1], [0], [0], [1], [0, 0, 1, 1], [], []>} : vector<8x8xf32>, vector<8x32xf32>, vector<8x32xf32> -> vector<8x32xf32>
    %75 = arith.addf %56, %74 : vector<8x32xf32>
    %76 = vector.extract_strided_slice %15 {offsets = [0, 24], sizes = [8, 8], strides = [1, 1]} : vector<16x96xf32> to vector<8x8xf32>
    %77 = vector.extract_strided_slice %15 {offsets = [0, 56], sizes = [8, 8], strides = [1, 1]} : vector<16x96xf32> to vector<8x8xf32>
    %78 = vector.extract_strided_slice %15 {offsets = [0, 88], sizes = [8, 8], strides = [1, 1]} : vector<16x96xf32> to vector<8x8xf32>
    %cst_36 = arith.constant dense<0.000000e+00> : vector<8x8xf32>
    %79 = tpu.matmul %76, %77, %cst_36 {dimension_numbers = #tpu.dot_dimension_numbers<[1], [1], [0], [0], [0, 0, 1, 0], [], []>} : vector<8x8xf32>, vector<8x8xf32>, vector<8x8xf32> -> vector<8x8xf32>
    %cst_37 = arith.constant 0.353553385 : f32
    %80 = vector.broadcast %cst_37 : f32 to vector<8x8xf32>
    %81 = arith.mulf %79, %80 : vector<8x8xf32>
    %cst_38 = arith.constant dense<0xFF800000> : vector<8xf32>
    %82 = vector.multi_reduction <maximumf>, %81, %cst_38 [1] : vector<8x8xf32> to vector<8xf32>
    %83 = vector.shape_cast %82 : vector<8xf32> to vector<8x1xf32>
    %84 = vector.broadcast %83 : vector<8x1xf32> to vector<8x8xf32>
    %85 = arith.subf %81, %84 : vector<8x8xf32>
    %86 = math.exp %85 : vector<8x8xf32>
    %cst_39 = arith.constant dense<0.000000e+00> : vector<8xf32>
    %87 = vector.multi_reduction <add>, %86, %cst_39 [1] : vector<8x8xf32> to vector<8xf32>
    %88 = vector.shape_cast %87 : vector<8xf32> to vector<8x1xf32>
    %89 = vector.broadcast %88 : vector<8x1xf32> to vector<8x8xf32>
    %90 = arith.divf %86, %89 : vector<8x8xf32>
    %cst_40 = arith.constant dense<0.000000e+00> : vector<8x8xf32>
    %91 = tpu.matmul %90, %78, %cst_40 {dimension_numbers = #tpu.dot_dimension_numbers<[1], [0], [0], [1], [0, 0, 1, 1], [], []>} : vector<8x8xf32>, vector<8x8xf32>, vector<8x8xf32> -> vector<8x8xf32>
    %92 = vector.extract_strided_slice %17 {offsets = [24, 0], sizes = [8, 32], strides = [1, 1]} : vector<32x32xf32> to vector<8x32xf32>
    %cst_41 = arith.constant dense<0.000000e+00> : vector<8x32xf32>
    %93 = tpu.matmul %91, %92, %cst_41 {dimension_numbers = #tpu.dot_dimension_numbers<[1], [0], [0], [1], [0, 0, 1, 1], [], []>} : vector<8x8xf32>, vector<8x32xf32>, vector<8x32xf32> -> vector<8x32xf32>
    %94 = arith.addf %75, %93 : vector<8x32xf32>
    %cst_42 = arith.constant 0.000000e+00 : f32
    %95 = vector.broadcast %cst_42 : f32 to vector<8x32xf32>
    %96 = vector.extract_strided_slice %15 {offsets = [8, 0], sizes = [8, 8], strides = [1, 1]} : vector<16x96xf32> to vector<8x8xf32>
    %97 = vector.extract_strided_slice %15 {offsets = [8, 32], sizes = [8, 8], strides = [1, 1]} : vector<16x96xf32> to vector<8x8xf32>
    %98 = vector.extract_strided_slice %15 {offsets = [8, 64], sizes = [8, 8], strides = [1, 1]} : vector<16x96xf32> to vector<8x8xf32>
    %cst_43 = arith.constant dense<0.000000e+00> : vector<8x8xf32>
    %99 = tpu.matmul %96, %97, %cst_43 {dimension_numbers = #tpu.dot_dimension_numbers<[1], [1], [0], [0], [0, 0, 1, 0], [], []>} : vector<8x8xf32>, vector<8x8xf32>, vector<8x8xf32> -> vector<8x8xf32>
    %cst_44 = arith.constant 0.353553385 : f32
    %100 = vector.broadcast %cst_44 : f32 to vector<8x8xf32>
    %101 = arith.mulf %99, %100 : vector<8x8xf32>
    %cst_45 = arith.constant dense<0xFF800000> : vector<8xf32>
    %102 = vector.multi_reduction <maximumf>, %101, %cst_45 [1] : vector<8x8xf32> to vector<8xf32>
    %103 = vector.shape_cast %102 : vector<8xf32> to vector<8x1xf32>
    %104 = vector.broadcast %103 : vector<8x1xf32> to vector<8x8xf32>
    %105 = arith.subf %101, %104 : vector<8x8xf32>
    %106 = math.exp %105 : vector<8x8xf32>
    %cst_46 = arith.constant dense<0.000000e+00> : vector<8xf32>
    %107 = vector.multi_reduction <add>, %106, %cst_46 [1] : vector<8x8xf32> to vector<8xf32>
    %108 = vector.shape_cast %107 : vector<8xf32> to vector<8x1xf32>
    %109 = vector.broadcast %108 : vector<8x1xf32> to vector<8x8xf32>
    %110 = arith.divf %106, %109 : vector<8x8xf32>
    %cst_47 = arith.constant dense<0.000000e+00> : vector<8x8xf32>
    %111 = tpu.matmul %110, %98, %cst_47 {dimension_numbers = #tpu.dot_dimension_numbers<[1], [0], [0], [1], [0, 0, 1, 1], [], []>} : vector<8x8xf32>, vector<8x8xf32>, vector<8x8xf32> -> vector<8x8xf32>
    %112 = vector.extract_strided_slice %17 {offsets = [0, 0], sizes = [8, 32], strides = [1, 1]} : vector<32x32xf32> to vector<8x32xf32>
    %cst_48 = arith.constant dense<0.000000e+00> : vector<8x32xf32>
    %113 = tpu.matmul %111, %112, %cst_48 {dimension_numbers = #tpu.dot_dimension_numbers<[1], [0], [0], [1], [0, 0, 1, 1], [], []>} : vector<8x8xf32>, vector<8x32xf32>, vector<8x32xf32> -> vector<8x32xf32>
    %114 = arith.addf %95, %113 : vector<8x32xf32>
    %115 = vector.extract_strided_slice %15 {offsets = [8, 8], sizes = [8, 8], strides = [1, 1]} : vector<16x96xf32> to vector<8x8xf32>
    %116 = vector.extract_strided_slice %15 {offsets = [8, 40], sizes = [8, 8], strides = [1, 1]} : vector<16x96xf32> to vector<8x8xf32>
    %117 = vector.extract_strided_slice %15 {offsets = [8, 72], sizes = [8, 8], strides = [1, 1]} : vector<16x96xf32> to vector<8x8xf32>
    %cst_49 = arith.constant dense<0.000000e+00> : vector<8x8xf32>
    %118 = tpu.matmul %115, %116, %cst_49 {dimension_numbers = #tpu.dot_dimension_numbers<[1], [1], [0], [0], [0, 0, 1, 0], [], []>} : vector<8x8xf32>, vector<8x8xf32>, vector<8x8xf32> -> vector<8x8xf32>
    %cst_50 = arith.constant 0.353553385 : f32
    %119 = vector.broadcast %cst_50 : f32 to vector<8x8xf32>
    %120 = arith.mulf %118, %119 : vector<8x8xf32>
    %cst_51 = arith.constant dense<0xFF800000> : vector<8xf32>
    %121 = vector.multi_reduction <maximumf>, %120, %cst_51 [1] : vector<8x8xf32> to vector<8xf32>
    %122 = vector.shape_cast %121 : vector<8xf32> to vector<8x1xf32>
    %123 = vector.broadcast %122 : vector<8x1xf32> to vector<8x8xf32>
    %124 = arith.subf %120, %123 : vector<8x8xf32>
    %125 = math.exp %124 : vector<8x8xf32>
    %cst_52 = arith.constant dense<0.000000e+00> : vector<8xf32>
    %126 = vector.multi_reduction <add>, %125, %cst_52 [1] : vector<8x8xf32> to vector<8xf32>
    %127 = vector.shape_cast %126 : vector<8xf32> to vector<8x1xf32>
    %128 = vector.broadcast %127 : vector<8x1xf32> to vector<8x8xf32>
    %129 = arith.divf %125, %128 : vector<8x8xf32>
    %cst_53 = arith.constant dense<0.000000e+00> : vector<8x8xf32>
    %130 = tpu.matmul %129, %117, %cst_53 {dimension_numbers = #tpu.dot_dimension_numbers<[1], [0], [0], [1], [0, 0, 1, 1], [], []>} : vector<8x8xf32>, vector<8x8xf32>, vector<8x8xf32> -> vector<8x8xf32>
    %131 = vector.extract_strided_slice %17 {offsets = [8, 0], sizes = [8, 32], strides = [1, 1]} : vector<32x32xf32> to vector<8x32xf32>
    %cst_54 = arith.constant dense<0.000000e+00> : vector<8x32xf32>
    %132 = tpu.matmul %130, %131, %cst_54 {dimension_numbers = #tpu.dot_dimension_numbers<[1], [0], [0], [1], [0, 0, 1, 1], [], []>} : vector<8x8xf32>, vector<8x32xf32>, vector<8x32xf32> -> vector<8x32xf32>
    %133 = arith.addf %114, %132 : vector<8x32xf32>
    %134 = vector.extract_strided_slice %15 {offsets = [8, 16], sizes = [8, 8], strides = [1, 1]} : vector<16x96xf32> to vector<8x8xf32>
    %135 = vector.extract_strided_slice %15 {offsets = [8, 48], sizes = [8, 8], strides = [1, 1]} : vector<16x96xf32> to vector<8x8xf32>
    %136 = vector.extract_strided_slice %15 {offsets = [8, 80], sizes = [8, 8], strides = [1, 1]} : vector<16x96xf32> to vector<8x8xf32>
    %cst_55 = arith.constant dense<0.000000e+00> : vector<8x8xf32>
    %137 = tpu.matmul %134, %135, %cst_55 {dimension_numbers = #tpu.dot_dimension_numbers<[1], [1], [0], [0], [0, 0, 1, 0], [], []>} : vector<8x8xf32>, vector<8x8xf32>, vector<8x8xf32> -> vector<8x8xf32>
    %cst_56 = arith.constant 0.353553385 : f32
    %138 = vector.broadcast %cst_56 : f32 to vector<8x8xf32>
    %139 = arith.mulf %137, %138 : vector<8x8xf32>
    %cst_57 = arith.constant dense<0xFF800000> : vector<8xf32>
    %140 = vector.multi_reduction <maximumf>, %139, %cst_57 [1] : vector<8x8xf32> to vector<8xf32>
    %141 = vector.shape_cast %140 : vector<8xf32> to vector<8x1xf32>
    %142 = vector.broadcast %141 : vector<8x1xf32> to vector<8x8xf32>
    %143 = arith.subf %139, %142 : vector<8x8xf32>
    %144 = math.exp %143 : vector<8x8xf32>
    %cst_58 = arith.constant dense<0.000000e+00> : vector<8xf32>
    %145 = vector.multi_reduction <add>, %144, %cst_58 [1] : vector<8x8xf32> to vector<8xf32>
    %146 = vector.shape_cast %145 : vector<8xf32> to vector<8x1xf32>
    %147 = vector.broadcast %146 : vector<8x1xf32> to vector<8x8xf32>
    %148 = arith.divf %144, %147 : vector<8x8xf32>
    %cst_59 = arith.constant dense<0.000000e+00> : vector<8x8xf32>
    %149 = tpu.matmul %148, %136, %cst_59 {dimension_numbers = #tpu.dot_dimension_numbers<[1], [0], [0], [1], [0, 0, 1, 1], [], []>} : vector<8x8xf32>, vector<8x8xf32>, vector<8x8xf32> -> vector<8x8xf32>
    %150 = vector.extract_strided_slice %17 {offsets = [16, 0], sizes = [8, 32], strides = [1, 1]} : vector<32x32xf32> to vector<8x32xf32>
    %cst_60 = arith.constant dense<0.000000e+00> : vector<8x32xf32>
    %151 = tpu.matmul %149, %150, %cst_60 {dimension_numbers = #tpu.dot_dimension_numbers<[1], [0], [0], [1], [0, 0, 1, 1], [], []>} : vector<8x8xf32>, vector<8x32xf32>, vector<8x32xf32> -> vector<8x32xf32>
    %152 = arith.addf %133, %151 : vector<8x32xf32>
    %153 = vector.extract_strided_slice %15 {offsets = [8, 24], sizes = [8, 8], strides = [1, 1]} : vector<16x96xf32> to vector<8x8xf32>
    %154 = vector.extract_strided_slice %15 {offsets = [8, 56], sizes = [8, 8], strides = [1, 1]} : vector<16x96xf32> to vector<8x8xf32>
    %155 = vector.extract_strided_slice %15 {offsets = [8, 88], sizes = [8, 8], strides = [1, 1]} : vector<16x96xf32> to vector<8x8xf32>
    %cst_61 = arith.constant dense<0.000000e+00> : vector<8x8xf32>
    %156 = tpu.matmul %153, %154, %cst_61 {dimension_numbers = #tpu.dot_dimension_numbers<[1], [1], [0], [0], [0, 0, 1, 0], [], []>} : vector<8x8xf32>, vector<8x8xf32>, vector<8x8xf32> -> vector<8x8xf32>
    %cst_62 = arith.constant 0.353553385 : f32
    %157 = vector.broadcast %cst_62 : f32 to vector<8x8xf32>
    %158 = arith.mulf %156, %157 : vector<8x8xf32>
    %cst_63 = arith.constant dense<0xFF800000> : vector<8xf32>
    %159 = vector.multi_reduction <maximumf>, %158, %cst_63 [1] : vector<8x8xf32> to vector<8xf32>
    %160 = vector.shape_cast %159 : vector<8xf32> to vector<8x1xf32>
    %161 = vector.broadcast %160 : vector<8x1xf32> to vector<8x8xf32>
    %162 = arith.subf %158, %161 : vector<8x8xf32>
    %163 = math.exp %162 : vector<8x8xf32>
    %cst_64 = arith.constant dense<0.000000e+00> : vector<8xf32>
    %164 = vector.multi_reduction <add>, %163, %cst_64 [1] : vector<8x8xf32> to vector<8xf32>
    %165 = vector.shape_cast %164 : vector<8xf32> to vector<8x1xf32>
    %166 = vector.broadcast %165 : vector<8x1xf32> to vector<8x8xf32>
    %167 = arith.divf %163, %166 : vector<8x8xf32>
    %cst_65 = arith.constant dense<0.000000e+00> : vector<8x8xf32>
    %168 = tpu.matmul %167, %155, %cst_65 {dimension_numbers = #tpu.dot_dimension_numbers<[1], [0], [0], [1], [0, 0, 1, 1], [], []>} : vector<8x8xf32>, vector<8x8xf32>, vector<8x8xf32> -> vector<8x8xf32>
    %169 = vector.extract_strided_slice %17 {offsets = [24, 0], sizes = [8, 32], strides = [1, 1]} : vector<32x32xf32> to vector<8x32xf32>
    %cst_66 = arith.constant dense<0.000000e+00> : vector<8x32xf32>
    %170 = tpu.matmul %168, %169, %cst_66 {dimension_numbers = #tpu.dot_dimension_numbers<[1], [0], [0], [1], [0, 0, 1, 1], [], []>} : vector<8x8xf32>, vector<8x32xf32>, vector<8x32xf32> -> vector<8x32xf32>
    %171 = arith.addf %152, %170 : vector<8x32xf32>
    %172 = tpu.concatenate %94, %171 in 0 : vector<8x32xf32>, vector<8x32xf32> -> vector<16x32xf32>
    %c0_67 = arith.constant 0 : index
    %c0_68 = arith.constant 0 : index
    %c0_69 = arith.constant 0 : index
    %173 = vector.load %arg7[%c0_67, %c0_68, %c0_69] : memref<2x1x32xf32, #tpu.memory_space<vmem>>, vector<1x1x32xf32>
    %174 = vector.shape_cast %173 : vector<1x1x32xf32> to vector<1x32xf32>
    %175 = vector.broadcast %174 : vector<1x32xf32> to vector<16x32xf32>
    %176 = arith.addf %172, %175 : vector<16x32xf32>
    %177 = arith.addf %8, %176 : vector<16x32xf32>
    %c0_70 = arith.constant 0 : index
    %c0_71 = arith.constant 0 : index
    %c0_72 = arith.constant 0 : index
    %178 = vector.load %arg12[%c0_70, %c0_71, %c0_72] : memref<2x1x32xf32, #tpu.memory_space<vmem>>, vector<1x1x32xf32>
    %179 = vector.shape_cast %178 : vector<1x1x32xf32> to vector<1x32xf32>
    %c0_73 = arith.constant 0 : index
    %c0_74 = arith.constant 0 : index
    %c0_75 = arith.constant 0 : index
    %180 = vector.load %arg13[%c0_73, %c0_74, %c0_75] : memref<2x1x32xf32, #tpu.memory_space<vmem>>, vector<1x1x32xf32>
    %181 = vector.shape_cast %180 : vector<1x1x32xf32> to vector<1x32xf32>
    %cst_76 = arith.constant dense<0.000000e+00> : vector<16xf32>
    %182 = vector.multi_reduction <add>, %177, %cst_76 [1] : vector<16x32xf32> to vector<16xf32>
    %183 = vector.shape_cast %182 : vector<16xf32> to vector<16x1xf32>
    %cst_77 = arith.constant 3.200000e+01 : f32
    %184 = vector.broadcast %cst_77 : f32 to vector<16x1xf32>
    %185 = arith.divf %183, %184 : vector<16x1xf32>
    %186 = vector.broadcast %185 : vector<16x1xf32> to vector<16x32xf32>
    %187 = arith.subf %177, %186 : vector<16x32xf32>
    %188 = arith.mulf %187, %187 : vector<16x32xf32>
    %cst_78 = arith.constant dense<0.000000e+00> : vector<16xf32>
    %189 = vector.multi_reduction <add>, %188, %cst_78 [1] : vector<16x32xf32> to vector<16xf32>
    %190 = vector.shape_cast %189 : vector<16xf32> to vector<16x1xf32>
    %cst_79 = arith.constant 3.200000e+01 : f32
    %191 = vector.broadcast %cst_79 : f32 to vector<16x1xf32>
    %192 = arith.divf %190, %191 : vector<16x1xf32>
    %cst_80 = arith.constant 9.99999974E-6 : f32
    %193 = vector.broadcast %cst_80 : f32 to vector<16x1xf32>
    %194 = arith.addf %192, %193 : vector<16x1xf32>
    %195 = math.rsqrt %194 : vector<16x1xf32>
    %196 = vector.broadcast %195 : vector<16x1xf32> to vector<16x32xf32>
    %197 = arith.mulf %187, %196 : vector<16x32xf32>
    %198 = vector.broadcast %179 : vector<1x32xf32> to vector<16x32xf32>
    %199 = arith.mulf %197, %198 : vector<16x32xf32>
    %200 = vector.broadcast %181 : vector<1x32xf32> to vector<16x32xf32>
    %201 = arith.addf %199, %200 : vector<16x32xf32>
    %c0_81 = arith.constant 0 : index
    %c0_82 = arith.constant 0 : index
    %c0_83 = arith.constant 0 : index
    %202 = vector.load %arg8[%c0_81, %c0_82, %c0_83] : memref<2x32x64xf32, #tpu.memory_space<vmem>>, vector<1x32x64xf32>
    %203 = vector.shape_cast %202 : vector<1x32x64xf32> to vector<32x64xf32>
    %cst_84 = arith.constant dense<0.000000e+00> : vector<16x64xf32>
    %204 = tpu.matmul %201, %203, %cst_84 {dimension_numbers = #tpu.dot_dimension_numbers<[1], [0], [0], [1], [0, 0, 1, 1], [], []>} : vector<16x32xf32>, vector<32x64xf32>, vector<16x64xf32> -> vector<16x64xf32>
    %c0_85 = arith.constant 0 : index
    %c0_86 = arith.constant 0 : index
    %c0_87 = arith.constant 0 : index
    %205 = vector.load %arg9[%c0_85, %c0_86, %c0_87] : memref<2x1x64xf32, #tpu.memory_space<vmem>>, vector<1x1x64xf32>
    %206 = vector.shape_cast %205 : vector<1x1x64xf32> to vector<1x64xf32>
    %207 = vector.broadcast %206 : vector<1x64xf32> to vector<16x64xf32>
    %208 = arith.addf %204, %207 : vector<16x64xf32>
    %cst_88 = arith.constant 0.000000e+00 : f32
    %209 = vector.broadcast %cst_88 : f32 to vector<16x64xf32>
    %210 = arith.maximumf %208, %209 : vector<16x64xf32>
    %c0_89 = arith.constant 0 : index
    %c0_90 = arith.constant 0 : index
    %c0_91 = arith.constant 0 : index
    %211 = vector.load %arg10[%c0_89, %c0_90, %c0_91] : memref<2x64x32xf32, #tpu.memory_space<vmem>>, vector<1x64x32xf32>
    %212 = vector.shape_cast %211 : vector<1x64x32xf32> to vector<64x32xf32>
    %cst_92 = arith.constant dense<0.000000e+00> : vector<16x32xf32>
    %213 = tpu.matmul %210, %212, %cst_92 {dimension_numbers = #tpu.dot_dimension_numbers<[1], [0], [0], [1], [0, 0, 1, 1], [], []>} : vector<16x64xf32>, vector<64x32xf32>, vector<16x32xf32> -> vector<16x32xf32>
    %c0_93 = arith.constant 0 : index
    %c0_94 = arith.constant 0 : index
    %c0_95 = arith.constant 0 : index
    %214 = vector.load %arg11[%c0_93, %c0_94, %c0_95] : memref<2x1x32xf32, #tpu.memory_space<vmem>>, vector<1x1x32xf32>
    %215 = vector.shape_cast %214 : vector<1x1x32xf32> to vector<1x32xf32>
    %216 = vector.broadcast %215 : vector<1x32xf32> to vector<16x32xf32>
    %217 = arith.addf %213, %216 : vector<16x32xf32>
    %218 = arith.addf %201, %217 : vector<16x32xf32>
    %c0_96 = arith.constant 0 : index
    %c0_97 = arith.constant 0 : index
    %c0_98 = arith.constant 0 : index
    %219 = vector.load %arg14[%c0_96, %c0_97, %c0_98] : memref<2x1x32xf32, #tpu.memory_space<vmem>>, vector<1x1x32xf32>
    %220 = vector.shape_cast %219 : vector<1x1x32xf32> to vector<1x32xf32>
    %c0_99 = arith.constant 0 : index
    %c0_100 = arith.constant 0 : index
    %c0_101 = arith.constant 0 : index
    %221 = vector.load %arg15[%c0_99, %c0_100, %c0_101] : memref<2x1x32xf32, #tpu.memory_space<vmem>>, vector<1x1x32xf32>
    %222 = vector.shape_cast %221 : vector<1x1x32xf32> to vector<1x32xf32>
    %cst_102 = arith.constant dense<0.000000e+00> : vector<16xf32>
    %223 = vector.multi_reduction <add>, %218, %cst_102 [1] : vector<16x32xf32> to vector<16xf32>
    %224 = vector.shape_cast %223 : vector<16xf32> to vector<16x1xf32>
    %cst_103 = arith.constant 3.200000e+01 : f32
    %225 = vector.broadcast %cst_103 : f32 to vector<16x1xf32>
    %226 = arith.divf %224, %225 : vector<16x1xf32>
    %227 = vector.broadcast %226 : vector<16x1xf32> to vector<16x32xf32>
    %228 = arith.subf %218, %227 : vector<16x32xf32>
    %229 = arith.mulf %228, %228 : vector<16x32xf32>
    %cst_104 = arith.constant dense<0.000000e+00> : vector<16xf32>
    %230 = vector.multi_reduction <add>, %229, %cst_104 [1] : vector<16x32xf32> to vector<16xf32>
    %231 = vector.shape_cast %230 : vector<16xf32> to vector<16x1xf32>
    %cst_105 = arith.constant 3.200000e+01 : f32
    %232 = vector.broadcast %cst_105 : f32 to vector<16x1xf32>
    %233 = arith.divf %231, %232 : vector<16x1xf32>
    %cst_106 = arith.constant 9.99999974E-6 : f32
    %234 = vector.broadcast %cst_106 : f32 to vector<16x1xf32>
    %235 = arith.addf %233, %234 : vector<16x1xf32>
    %236 = math.rsqrt %235 : vector<16x1xf32>
    %237 = vector.broadcast %236 : vector<16x1xf32> to vector<16x32xf32>
    %238 = arith.mulf %228, %237 : vector<16x32xf32>
    %239 = vector.broadcast %220 : vector<1x32xf32> to vector<16x32xf32>
    %240 = arith.mulf %238, %239 : vector<16x32xf32>
    %241 = vector.broadcast %222 : vector<1x32xf32> to vector<16x32xf32>
    %242 = arith.addf %240, %241 : vector<16x32xf32>
    %c1 = arith.constant 1 : index
    %c0_107 = arith.constant 0 : index
    %c0_108 = arith.constant 0 : index
    %243 = vector.load %arg4[%c1, %c0_107, %c0_108] : memref<2x32x96xf32, #tpu.memory_space<vmem>>, vector<1x32x96xf32>
    %244 = vector.shape_cast %243 : vector<1x32x96xf32> to vector<32x96xf32>
    %cst_109 = arith.constant dense<0.000000e+00> : vector<16x96xf32>
    %245 = tpu.matmul %242, %244, %cst_109 {dimension_numbers = #tpu.dot_dimension_numbers<[1], [0], [0], [1], [0, 0, 1, 1], [], []>} : vector<16x32xf32>, vector<32x96xf32>, vector<16x96xf32> -> vector<16x96xf32>
    %c1_110 = arith.constant 1 : index
    %c0_111 = arith.constant 0 : index
    %c0_112 = arith.constant 0 : index
    %246 = vector.load %arg5[%c1_110, %c0_111, %c0_112] : memref<2x1x96xf32, #tpu.memory_space<vmem>>, vector<1x1x96xf32>
    %247 = vector.shape_cast %246 : vector<1x1x96xf32> to vector<1x96xf32>
    %248 = vector.broadcast %247 : vector<1x96xf32> to vector<16x96xf32>
    %249 = arith.addf %245, %248 : vector<16x96xf32>
    %c1_113 = arith.constant 1 : index
    %c0_114 = arith.constant 0 : index
    %c0_115 = arith.constant 0 : index
    %250 = vector.load %arg6[%c1_113, %c0_114, %c0_115] : memref<2x32x32xf32, #tpu.memory_space<vmem>>, vector<1x32x32xf32>
    %251 = vector.shape_cast %250 : vector<1x32x32xf32> to vector<32x32xf32>
    %cst_116 = arith.constant 0.000000e+00 : f32
    %252 = vector.broadcast %cst_116 : f32 to vector<8x32xf32>
    %253 = vector.extract_strided_slice %249 {offsets = [0, 0], sizes = [8, 8], strides = [1, 1]} : vector<16x96xf32> to vector<8x8xf32>
    %254 = vector.extract_strided_slice %249 {offsets = [0, 32], sizes = [8, 8], strides = [1, 1]} : vector<16x96xf32> to vector<8x8xf32>
    %255 = vector.extract_strided_slice %249 {offsets = [0, 64], sizes = [8, 8], strides = [1, 1]} : vector<16x96xf32> to vector<8x8xf32>
    %cst_117 = arith.constant dense<0.000000e+00> : vector<8x8xf32>
    %256 = tpu.matmul %253, %254, %cst_117 {dimension_numbers = #tpu.dot_dimension_numbers<[1], [1], [0], [0], [0, 0, 1, 0], [], []>} : vector<8x8xf32>, vector<8x8xf32>, vector<8x8xf32> -> vector<8x8xf32>
    %cst_118 = arith.constant 0.353553385 : f32
    %257 = vector.broadcast %cst_118 : f32 to vector<8x8xf32>
    %258 = arith.mulf %256, %257 : vector<8x8xf32>
    %cst_119 = arith.constant dense<0xFF800000> : vector<8xf32>
    %259 = vector.multi_reduction <maximumf>, %258, %cst_119 [1] : vector<8x8xf32> to vector<8xf32>
    %260 = vector.shape_cast %259 : vector<8xf32> to vector<8x1xf32>
    %261 = vector.broadcast %260 : vector<8x1xf32> to vector<8x8xf32>
    %262 = arith.subf %258, %261 : vector<8x8xf32>
    %263 = math.exp %262 : vector<8x8xf32>
    %cst_120 = arith.constant dense<0.000000e+00> : vector<8xf32>
    %264 = vector.multi_reduction <add>, %263, %cst_120 [1] : vector<8x8xf32> to vector<8xf32>
    %265 = vector.shape_cast %264 : vector<8xf32> to vector<8x1xf32>
    %266 = vector.broadcast %265 : vector<8x1xf32> to vector<8x8xf32>
    %267 = arith.divf %263, %266 : vector<8x8xf32>
    %cst_121 = arith.constant dense<0.000000e+00> : vector<8x8xf32>
    %268 = tpu.matmul %267, %255, %cst_121 {dimension_numbers = #tpu.dot_dimension_numbers<[1], [0], [0], [1], [0, 0, 1, 1], [], []>} : vector<8x8xf32>, vector<8x8xf32>, vector<8x8xf32> -> vector<8x8xf32>
    %269 = vector.extract_strided_slice %251 {offsets = [0, 0], sizes = [8, 32], strides = [1, 1]} : vector<32x32xf32> to vector<8x32xf32>
    %cst_122 = arith.constant dense<0.000000e+00> : vector<8x32xf32>
    %270 = tpu.matmul %268, %269, %cst_122 {dimension_numbers = #tpu.dot_dimension_numbers<[1], [0], [0], [1], [0, 0, 1, 1], [], []>} : vector<8x8xf32>, vector<8x32xf32>, vector<8x32xf32> -> vector<8x32xf32>
    %271 = arith.addf %252, %270 : vector<8x32xf32>
    %272 = vector.extract_strided_slice %249 {offsets = [0, 8], sizes = [8, 8], strides = [1, 1]} : vector<16x96xf32> to vector<8x8xf32>
    %273 = vector.extract_strided_slice %249 {offsets = [0, 40], sizes = [8, 8], strides = [1, 1]} : vector<16x96xf32> to vector<8x8xf32>
    %274 = vector.extract_strided_slice %249 {offsets = [0, 72], sizes = [8, 8], strides = [1, 1]} : vector<16x96xf32> to vector<8x8xf32>
    %cst_123 = arith.constant dense<0.000000e+00> : vector<8x8xf32>
    %275 = tpu.matmul %272, %273, %cst_123 {dimension_numbers = #tpu.dot_dimension_numbers<[1], [1], [0], [0], [0, 0, 1, 0], [], []>} : vector<8x8xf32>, vector<8x8xf32>, vector<8x8xf32> -> vector<8x8xf32>
    %cst_124 = arith.constant 0.353553385 : f32
    %276 = vector.broadcast %cst_124 : f32 to vector<8x8xf32>
    %277 = arith.mulf %275, %276 : vector<8x8xf32>
    %cst_125 = arith.constant dense<0xFF800000> : vector<8xf32>
    %278 = vector.multi_reduction <maximumf>, %277, %cst_125 [1] : vector<8x8xf32> to vector<8xf32>
    %279 = vector.shape_cast %278 : vector<8xf32> to vector<8x1xf32>
    %280 = vector.broadcast %279 : vector<8x1xf32> to vector<8x8xf32>
    %281 = arith.subf %277, %280 : vector<8x8xf32>
    %282 = math.exp %281 : vector<8x8xf32>
    %cst_126 = arith.constant dense<0.000000e+00> : vector<8xf32>
    %283 = vector.multi_reduction <add>, %282, %cst_126 [1] : vector<8x8xf32> to vector<8xf32>
    %284 = vector.shape_cast %283 : vector<8xf32> to vector<8x1xf32>
    %285 = vector.broadcast %284 : vector<8x1xf32> to vector<8x8xf32>
    %286 = arith.divf %282, %285 : vector<8x8xf32>
    %cst_127 = arith.constant dense<0.000000e+00> : vector<8x8xf32>
    %287 = tpu.matmul %286, %274, %cst_127 {dimension_numbers = #tpu.dot_dimension_numbers<[1], [0], [0], [1], [0, 0, 1, 1], [], []>} : vector<8x8xf32>, vector<8x8xf32>, vector<8x8xf32> -> vector<8x8xf32>
    %288 = vector.extract_strided_slice %251 {offsets = [8, 0], sizes = [8, 32], strides = [1, 1]} : vector<32x32xf32> to vector<8x32xf32>
    %cst_128 = arith.constant dense<0.000000e+00> : vector<8x32xf32>
    %289 = tpu.matmul %287, %288, %cst_128 {dimension_numbers = #tpu.dot_dimension_numbers<[1], [0], [0], [1], [0, 0, 1, 1], [], []>} : vector<8x8xf32>, vector<8x32xf32>, vector<8x32xf32> -> vector<8x32xf32>
    %290 = arith.addf %271, %289 : vector<8x32xf32>
    %291 = vector.extract_strided_slice %249 {offsets = [0, 16], sizes = [8, 8], strides = [1, 1]} : vector<16x96xf32> to vector<8x8xf32>
    %292 = vector.extract_strided_slice %249 {offsets = [0, 48], sizes = [8, 8], strides = [1, 1]} : vector<16x96xf32> to vector<8x8xf32>
    %293 = vector.extract_strided_slice %249 {offsets = [0, 80], sizes = [8, 8], strides = [1, 1]} : vector<16x96xf32> to vector<8x8xf32>
    %cst_129 = arith.constant dense<0.000000e+00> : vector<8x8xf32>
    %294 = tpu.matmul %291, %292, %cst_129 {dimension_numbers = #tpu.dot_dimension_numbers<[1], [1], [0], [0], [0, 0, 1, 0], [], []>} : vector<8x8xf32>, vector<8x8xf32>, vector<8x8xf32> -> vector<8x8xf32>
    %cst_130 = arith.constant 0.353553385 : f32
    %295 = vector.broadcast %cst_130 : f32 to vector<8x8xf32>
    %296 = arith.mulf %294, %295 : vector<8x8xf32>
    %cst_131 = arith.constant dense<0xFF800000> : vector<8xf32>
    %297 = vector.multi_reduction <maximumf>, %296, %cst_131 [1] : vector<8x8xf32> to vector<8xf32>
    %298 = vector.shape_cast %297 : vector<8xf32> to vector<8x1xf32>
    %299 = vector.broadcast %298 : vector<8x1xf32> to vector<8x8xf32>
    %300 = arith.subf %296, %299 : vector<8x8xf32>
    %301 = math.exp %300 : vector<8x8xf32>
    %cst_132 = arith.constant dense<0.000000e+00> : vector<8xf32>
    %302 = vector.multi_reduction <add>, %301, %cst_132 [1] : vector<8x8xf32> to vector<8xf32>
    %303 = vector.shape_cast %302 : vector<8xf32> to vector<8x1xf32>
    %304 = vector.broadcast %303 : vector<8x1xf32> to vector<8x8xf32>
    %305 = arith.divf %301, %304 : vector<8x8xf32>
    %cst_133 = arith.constant dense<0.000000e+00> : vector<8x8xf32>
    %306 = tpu.matmul %305, %293, %cst_133 {dimension_numbers = #tpu.dot_dimension_numbers<[1], [0], [0], [1], [0, 0, 1, 1], [], []>} : vector<8x8xf32>, vector<8x8xf32>, vector<8x8xf32> -> vector<8x8xf32>
    %307 = vector.extract_strided_slice %251 {offsets = [16, 0], sizes = [8, 32], strides = [1, 1]} : vector<32x32xf32> to vector<8x32xf32>
    %cst_134 = arith.constant dense<0.000000e+00> : vector<8x32xf32>
    %308 = tpu.matmul %306, %307, %cst_134 {dimension_numbers = #tpu.dot_dimension_numbers<[1], [0], [0], [1], [0, 0, 1, 1], [], []>} : vector<8x8xf32>, vector<8x32xf32>, vector<8x32xf32> -> vector<8x32xf32>
    %309 = arith.addf %290, %308 : vector<8x32xf32>
    %310 = vector.extract_strided_slice %249 {offsets = [0, 24], sizes = [8, 8], strides = [1, 1]} : vector<16x96xf32> to vector<8x8xf32>
    %311 = vector.extract_strided_slice %249 {offsets = [0, 56], sizes = [8, 8], strides = [1, 1]} : vector<16x96xf32> to vector<8x8xf32>
    %312 = vector.extract_strided_slice %249 {offsets = [0, 88], sizes = [8, 8], strides = [1, 1]} : vector<16x96xf32> to vector<8x8xf32>
    %cst_135 = arith.constant dense<0.000000e+00> : vector<8x8xf32>
    %313 = tpu.matmul %310, %311, %cst_135 {dimension_numbers = #tpu.dot_dimension_numbers<[1], [1], [0], [0], [0, 0, 1, 0], [], []>} : vector<8x8xf32>, vector<8x8xf32>, vector<8x8xf32> -> vector<8x8xf32>
    %cst_136 = arith.constant 0.353553385 : f32
    %314 = vector.broadcast %cst_136 : f32 to vector<8x8xf32>
    %315 = arith.mulf %313, %314 : vector<8x8xf32>
    %cst_137 = arith.constant dense<0xFF800000> : vector<8xf32>
    %316 = vector.multi_reduction <maximumf>, %315, %cst_137 [1] : vector<8x8xf32> to vector<8xf32>
    %317 = vector.shape_cast %316 : vector<8xf32> to vector<8x1xf32>
    %318 = vector.broadcast %317 : vector<8x1xf32> to vector<8x8xf32>
    %319 = arith.subf %315, %318 : vector<8x8xf32>
    %320 = math.exp %319 : vector<8x8xf32>
    %cst_138 = arith.constant dense<0.000000e+00> : vector<8xf32>
    %321 = vector.multi_reduction <add>, %320, %cst_138 [1] : vector<8x8xf32> to vector<8xf32>
    %322 = vector.shape_cast %321 : vector<8xf32> to vector<8x1xf32>
    %323 = vector.broadcast %322 : vector<8x1xf32> to vector<8x8xf32>
    %324 = arith.divf %320, %323 : vector<8x8xf32>
    %cst_139 = arith.constant dense<0.000000e+00> : vector<8x8xf32>
    %325 = tpu.matmul %324, %312, %cst_139 {dimension_numbers = #tpu.dot_dimension_numbers<[1], [0], [0], [1], [0, 0, 1, 1], [], []>} : vector<8x8xf32>, vector<8x8xf32>, vector<8x8xf32> -> vector<8x8xf32>
    %326 = vector.extract_strided_slice %251 {offsets = [24, 0], sizes = [8, 32], strides = [1, 1]} : vector<32x32xf32> to vector<8x32xf32>
    %cst_140 = arith.constant dense<0.000000e+00> : vector<8x32xf32>
    %327 = tpu.matmul %325, %326, %cst_140 {dimension_numbers = #tpu.dot_dimension_numbers<[1], [0], [0], [1], [0, 0, 1, 1], [], []>} : vector<8x8xf32>, vector<8x32xf32>, vector<8x32xf32> -> vector<8x32xf32>
    %328 = arith.addf %309, %327 : vector<8x32xf32>
    %cst_141 = arith.constant 0.000000e+00 : f32
    %329 = vector.broadcast %cst_141 : f32 to vector<8x32xf32>
    %330 = vector.extract_strided_slice %249 {offsets = [8, 0], sizes = [8, 8], strides = [1, 1]} : vector<16x96xf32> to vector<8x8xf32>
    %331 = vector.extract_strided_slice %249 {offsets = [8, 32], sizes = [8, 8], strides = [1, 1]} : vector<16x96xf32> to vector<8x8xf32>
    %332 = vector.extract_strided_slice %249 {offsets = [8, 64], sizes = [8, 8], strides = [1, 1]} : vector<16x96xf32> to vector<8x8xf32>
    %cst_142 = arith.constant dense<0.000000e+00> : vector<8x8xf32>
    %333 = tpu.matmul %330, %331, %cst_142 {dimension_numbers = #tpu.dot_dimension_numbers<[1], [1], [0], [0], [0, 0, 1, 0], [], []>} : vector<8x8xf32>, vector<8x8xf32>, vector<8x8xf32> -> vector<8x8xf32>
    %cst_143 = arith.constant 0.353553385 : f32
    %334 = vector.broadcast %cst_143 : f32 to vector<8x8xf32>
    %335 = arith.mulf %333, %334 : vector<8x8xf32>
    %cst_144 = arith.constant dense<0xFF800000> : vector<8xf32>
    %336 = vector.multi_reduction <maximumf>, %335, %cst_144 [1] : vector<8x8xf32> to vector<8xf32>
    %337 = vector.shape_cast %336 : vector<8xf32> to vector<8x1xf32>
    %338 = vector.broadcast %337 : vector<8x1xf32> to vector<8x8xf32>
    %339 = arith.subf %335, %338 : vector<8x8xf32>
    %340 = math.exp %339 : vector<8x8xf32>
    %cst_145 = arith.constant dense<0.000000e+00> : vector<8xf32>
    %341 = vector.multi_reduction <add>, %340, %cst_145 [1] : vector<8x8xf32> to vector<8xf32>
    %342 = vector.shape_cast %341 : vector<8xf32> to vector<8x1xf32>
    %343 = vector.broadcast %342 : vector<8x1xf32> to vector<8x8xf32>
    %344 = arith.divf %340, %343 : vector<8x8xf32>
    %cst_146 = arith.constant dense<0.000000e+00> : vector<8x8xf32>
    %345 = tpu.matmul %344, %332, %cst_146 {dimension_numbers = #tpu.dot_dimension_numbers<[1], [0], [0], [1], [0, 0, 1, 1], [], []>} : vector<8x8xf32>, vector<8x8xf32>, vector<8x8xf32> -> vector<8x8xf32>
    %346 = vector.extract_strided_slice %251 {offsets = [0, 0], sizes = [8, 32], strides = [1, 1]} : vector<32x32xf32> to vector<8x32xf32>
    %cst_147 = arith.constant dense<0.000000e+00> : vector<8x32xf32>
    %347 = tpu.matmul %345, %346, %cst_147 {dimension_numbers = #tpu.dot_dimension_numbers<[1], [0], [0], [1], [0, 0, 1, 1], [], []>} : vector<8x8xf32>, vector<8x32xf32>, vector<8x32xf32> -> vector<8x32xf32>
    %348 = arith.addf %329, %347 : vector<8x32xf32>
    %349 = vector.extract_strided_slice %249 {offsets = [8, 8], sizes = [8, 8], strides = [1, 1]} : vector<16x96xf32> to vector<8x8xf32>
    %350 = vector.extract_strided_slice %249 {offsets = [8, 40], sizes = [8, 8], strides = [1, 1]} : vector<16x96xf32> to vector<8x8xf32>
    %351 = vector.extract_strided_slice %249 {offsets = [8, 72], sizes = [8, 8], strides = [1, 1]} : vector<16x96xf32> to vector<8x8xf32>
    %cst_148 = arith.constant dense<0.000000e+00> : vector<8x8xf32>
    %352 = tpu.matmul %349, %350, %cst_148 {dimension_numbers = #tpu.dot_dimension_numbers<[1], [1], [0], [0], [0, 0, 1, 0], [], []>} : vector<8x8xf32>, vector<8x8xf32>, vector<8x8xf32> -> vector<8x8xf32>
    %cst_149 = arith.constant 0.353553385 : f32
    %353 = vector.broadcast %cst_149 : f32 to vector<8x8xf32>
    %354 = arith.mulf %352, %353 : vector<8x8xf32>
    %cst_150 = arith.constant dense<0xFF800000> : vector<8xf32>
    %355 = vector.multi_reduction <maximumf>, %354, %cst_150 [1] : vector<8x8xf32> to vector<8xf32>
    %356 = vector.shape_cast %355 : vector<8xf32> to vector<8x1xf32>
    %357 = vector.broadcast %356 : vector<8x1xf32> to vector<8x8xf32>
    %358 = arith.subf %354, %357 : vector<8x8xf32>
    %359 = math.exp %358 : vector<8x8xf32>
    %cst_151 = arith.constant dense<0.000000e+00> : vector<8xf32>
    %360 = vector.multi_reduction <add>, %359, %cst_151 [1] : vector<8x8xf32> to vector<8xf32>
    %361 = vector.shape_cast %360 : vector<8xf32> to vector<8x1xf32>
    %362 = vector.broadcast %361 : vector<8x1xf32> to vector<8x8xf32>
    %363 = arith.divf %359, %362 : vector<8x8xf32>
    %cst_152 = arith.constant dense<0.000000e+00> : vector<8x8xf32>
    %364 = tpu.matmul %363, %351, %cst_152 {dimension_numbers = #tpu.dot_dimension_numbers<[1], [0], [0], [1], [0, 0, 1, 1], [], []>} : vector<8x8xf32>, vector<8x8xf32>, vector<8x8xf32> -> vector<8x8xf32>
    %365 = vector.extract_strided_slice %251 {offsets = [8, 0], sizes = [8, 32], strides = [1, 1]} : vector<32x32xf32> to vector<8x32xf32>
    %cst_153 = arith.constant dense<0.000000e+00> : vector<8x32xf32>
    %366 = tpu.matmul %364, %365, %cst_153 {dimension_numbers = #tpu.dot_dimension_numbers<[1], [0], [0], [1], [0, 0, 1, 1], [], []>} : vector<8x8xf32>, vector<8x32xf32>, vector<8x32xf32> -> vector<8x32xf32>
    %367 = arith.addf %348, %366 : vector<8x32xf32>
    %368 = vector.extract_strided_slice %249 {offsets = [8, 16], sizes = [8, 8], strides = [1, 1]} : vector<16x96xf32> to vector<8x8xf32>
    %369 = vector.extract_strided_slice %249 {offsets = [8, 48], sizes = [8, 8], strides = [1, 1]} : vector<16x96xf32> to vector<8x8xf32>
    %370 = vector.extract_strided_slice %249 {offsets = [8, 80], sizes = [8, 8], strides = [1, 1]} : vector<16x96xf32> to vector<8x8xf32>
    %cst_154 = arith.constant dense<0.000000e+00> : vector<8x8xf32>
    %371 = tpu.matmul %368, %369, %cst_154 {dimension_numbers = #tpu.dot_dimension_numbers<[1], [1], [0], [0], [0, 0, 1, 0], [], []>} : vector<8x8xf32>, vector<8x8xf32>, vector<8x8xf32> -> vector<8x8xf32>
    %cst_155 = arith.constant 0.353553385 : f32
    %372 = vector.broadcast %cst_155 : f32 to vector<8x8xf32>
    %373 = arith.mulf %371, %372 : vector<8x8xf32>
    %cst_156 = arith.constant dense<0xFF800000> : vector<8xf32>
    %374 = vector.multi_reduction <maximumf>, %373, %cst_156 [1] : vector<8x8xf32> to vector<8xf32>
    %375 = vector.shape_cast %374 : vector<8xf32> to vector<8x1xf32>
    %376 = vector.broadcast %375 : vector<8x1xf32> to vector<8x8xf32>
    %377 = arith.subf %373, %376 : vector<8x8xf32>
    %378 = math.exp %377 : vector<8x8xf32>
    %cst_157 = arith.constant dense<0.000000e+00> : vector<8xf32>
    %379 = vector.multi_reduction <add>, %378, %cst_157 [1] : vector<8x8xf32> to vector<8xf32>
    %380 = vector.shape_cast %379 : vector<8xf32> to vector<8x1xf32>
    %381 = vector.broadcast %380 : vector<8x1xf32> to vector<8x8xf32>
    %382 = arith.divf %378, %381 : vector<8x8xf32>
    %cst_158 = arith.constant dense<0.000000e+00> : vector<8x8xf32>
    %383 = tpu.matmul %382, %370, %cst_158 {dimension_numbers = #tpu.dot_dimension_numbers<[1], [0], [0], [1], [0, 0, 1, 1], [], []>} : vector<8x8xf32>, vector<8x8xf32>, vector<8x8xf32> -> vector<8x8xf32>
    %384 = vector.extract_strided_slice %251 {offsets = [16, 0], sizes = [8, 32], strides = [1, 1]} : vector<32x32xf32> to vector<8x32xf32>
    %cst_159 = arith.constant dense<0.000000e+00> : vector<8x32xf32>
    %385 = tpu.matmul %383, %384, %cst_159 {dimension_numbers = #tpu.dot_dimension_numbers<[1], [0], [0], [1], [0, 0, 1, 1], [], []>} : vector<8x8xf32>, vector<8x32xf32>, vector<8x32xf32> -> vector<8x32xf32>
    %386 = arith.addf %367, %385 : vector<8x32xf32>
    %387 = vector.extract_strided_slice %249 {offsets = [8, 24], sizes = [8, 8], strides = [1, 1]} : vector<16x96xf32> to vector<8x8xf32>
    %388 = vector.extract_strided_slice %249 {offsets = [8, 56], sizes = [8, 8], strides = [1, 1]} : vector<16x96xf32> to vector<8x8xf32>
    %389 = vector.extract_strided_slice %249 {offsets = [8, 88], sizes = [8, 8], strides = [1, 1]} : vector<16x96xf32> to vector<8x8xf32>
    %cst_160 = arith.constant dense<0.000000e+00> : vector<8x8xf32>
    %390 = tpu.matmul %387, %388, %cst_160 {dimension_numbers = #tpu.dot_dimension_numbers<[1], [1], [0], [0], [0, 0, 1, 0], [], []>} : vector<8x8xf32>, vector<8x8xf32>, vector<8x8xf32> -> vector<8x8xf32>
    %cst_161 = arith.constant 0.353553385 : f32
    %391 = vector.broadcast %cst_161 : f32 to vector<8x8xf32>
    %392 = arith.mulf %390, %391 : vector<8x8xf32>
    %cst_162 = arith.constant dense<0xFF800000> : vector<8xf32>
    %393 = vector.multi_reduction <maximumf>, %392, %cst_162 [1] : vector<8x8xf32> to vector<8xf32>
    %394 = vector.shape_cast %393 : vector<8xf32> to vector<8x1xf32>
    %395 = vector.broadcast %394 : vector<8x1xf32> to vector<8x8xf32>
    %396 = arith.subf %392, %395 : vector<8x8xf32>
    %397 = math.exp %396 : vector<8x8xf32>
    %cst_163 = arith.constant dense<0.000000e+00> : vector<8xf32>
    %398 = vector.multi_reduction <add>, %397, %cst_163 [1] : vector<8x8xf32> to vector<8xf32>
    %399 = vector.shape_cast %398 : vector<8xf32> to vector<8x1xf32>
    %400 = vector.broadcast %399 : vector<8x1xf32> to vector<8x8xf32>
    %401 = arith.divf %397, %400 : vector<8x8xf32>
    %cst_164 = arith.constant dense<0.000000e+00> : vector<8x8xf32>
    %402 = tpu.matmul %401, %389, %cst_164 {dimension_numbers = #tpu.dot_dimension_numbers<[1], [0], [0], [1], [0, 0, 1, 1], [], []>} : vector<8x8xf32>, vector<8x8xf32>, vector<8x8xf32> -> vector<8x8xf32>
    %403 = vector.extract_strided_slice %251 {offsets = [24, 0], sizes = [8, 32], strides = [1, 1]} : vector<32x32xf32> to vector<8x32xf32>
    %cst_165 = arith.constant dense<0.000000e+00> : vector<8x32xf32>
    %404 = tpu.matmul %402, %403, %cst_165 {dimension_numbers = #tpu.dot_dimension_numbers<[1], [0], [0], [1], [0, 0, 1, 1], [], []>} : vector<8x8xf32>, vector<8x32xf32>, vector<8x32xf32> -> vector<8x32xf32>
    %405 = arith.addf %386, %404 : vector<8x32xf32>
    %406 = tpu.concatenate %328, %405 in 0 : vector<8x32xf32>, vector<8x32xf32> -> vector<16x32xf32>
    %c1_166 = arith.constant 1 : index
    %c0_167 = arith.constant 0 : index
    %c0_168 = arith.constant 0 : index
    %407 = vector.load %arg7[%c1_166, %c0_167, %c0_168] : memref<2x1x32xf32, #tpu.memory_space<vmem>>, vector<1x1x32xf32>
    %408 = vector.shape_cast %407 : vector<1x1x32xf32> to vector<1x32xf32>
    %409 = vector.broadcast %408 : vector<1x32xf32> to vector<16x32xf32>
    %410 = arith.addf %406, %409 : vector<16x32xf32>
    %411 = arith.addf %242, %410 : vector<16x32xf32>
    %c1_169 = arith.constant 1 : index
    %c0_170 = arith.constant 0 : index
    %c0_171 = arith.constant 0 : index
    %412 = vector.load %arg12[%c1_169, %c0_170, %c0_171] : memref<2x1x32xf32, #tpu.memory_space<vmem>>, vector<1x1x32xf32>
    %413 = vector.shape_cast %412 : vector<1x1x32xf32> to vector<1x32xf32>
    %c1_172 = arith.constant 1 : index
    %c0_173 = arith.constant 0 : index
    %c0_174 = arith.constant 0 : index
    %414 = vector.load %arg13[%c1_172, %c0_173, %c0_174] : memref<2x1x32xf32, #tpu.memory_space<vmem>>, vector<1x1x32xf32>
    %415 = vector.shape_cast %414 : vector<1x1x32xf32> to vector<1x32xf32>
    %cst_175 = arith.constant dense<0.000000e+00> : vector<16xf32>
    %416 = vector.multi_reduction <add>, %411, %cst_175 [1] : vector<16x32xf32> to vector<16xf32>
    %417 = vector.shape_cast %416 : vector<16xf32> to vector<16x1xf32>
    %cst_176 = arith.constant 3.200000e+01 : f32
    %418 = vector.broadcast %cst_176 : f32 to vector<16x1xf32>
    %419 = arith.divf %417, %418 : vector<16x1xf32>
    %420 = vector.broadcast %419 : vector<16x1xf32> to vector<16x32xf32>
    %421 = arith.subf %411, %420 : vector<16x32xf32>
    %422 = arith.mulf %421, %421 : vector<16x32xf32>
    %cst_177 = arith.constant dense<0.000000e+00> : vector<16xf32>
    %423 = vector.multi_reduction <add>, %422, %cst_177 [1] : vector<16x32xf32> to vector<16xf32>
    %424 = vector.shape_cast %423 : vector<16xf32> to vector<16x1xf32>
    %cst_178 = arith.constant 3.200000e+01 : f32
    %425 = vector.broadcast %cst_178 : f32 to vector<16x1xf32>
    %426 = arith.divf %424, %425 : vector<16x1xf32>
    %cst_179 = arith.constant 9.99999974E-6 : f32
    %427 = vector.broadcast %cst_179 : f32 to vector<16x1xf32>
    %428 = arith.addf %426, %427 : vector<16x1xf32>
    %429 = math.rsqrt %428 : vector<16x1xf32>
    %430 = vector.broadcast %429 : vector<16x1xf32> to vector<16x32xf32>
    %431 = arith.mulf %421, %430 : vector<16x32xf32>
    %432 = vector.broadcast %413 : vector<1x32xf32> to vector<16x32xf32>
    %433 = arith.mulf %431, %432 : vector<16x32xf32>
    %434 = vector.broadcast %415 : vector<1x32xf32> to vector<16x32xf32>
    %435 = arith.addf %433, %434 : vector<16x32xf32>
    %c1_180 = arith.constant 1 : index
    %c0_181 = arith.constant 0 : index
    %c0_182 = arith.constant 0 : index
    %436 = vector.load %arg8[%c1_180, %c0_181, %c0_182] : memref<2x32x64xf32, #tpu.memory_space<vmem>>, vector<1x32x64xf32>
    %437 = vector.shape_cast %436 : vector<1x32x64xf32> to vector<32x64xf32>
    %cst_183 = arith.constant dense<0.000000e+00> : vector<16x64xf32>
    %438 = tpu.matmul %435, %437, %cst_183 {dimension_numbers = #tpu.dot_dimension_numbers<[1], [0], [0], [1], [0, 0, 1, 1], [], []>} : vector<16x32xf32>, vector<32x64xf32>, vector<16x64xf32> -> vector<16x64xf32>
    %c1_184 = arith.constant 1 : index
    %c0_185 = arith.constant 0 : index
    %c0_186 = arith.constant 0 : index
    %439 = vector.load %arg9[%c1_184, %c0_185, %c0_186] : memref<2x1x64xf32, #tpu.memory_space<vmem>>, vector<1x1x64xf32>
    %440 = vector.shape_cast %439 : vector<1x1x64xf32> to vector<1x64xf32>
    %441 = vector.broadcast %440 : vector<1x64xf32> to vector<16x64xf32>
    %442 = arith.addf %438, %441 : vector<16x64xf32>
    %cst_187 = arith.constant 0.000000e+00 : f32
    %443 = vector.broadcast %cst_187 : f32 to vector<16x64xf32>
    %444 = arith.maximumf %442, %443 : vector<16x64xf32>
    %c1_188 = arith.constant 1 : index
    %c0_189 = arith.constant 0 : index
    %c0_190 = arith.constant 0 : index
    %445 = vector.load %arg10[%c1_188, %c0_189, %c0_190] : memref<2x64x32xf32, #tpu.memory_space<vmem>>, vector<1x64x32xf32>
    %446 = vector.shape_cast %445 : vector<1x64x32xf32> to vector<64x32xf32>
    %cst_191 = arith.constant dense<0.000000e+00> : vector<16x32xf32>
    %447 = tpu.matmul %444, %446, %cst_191 {dimension_numbers = #tpu.dot_dimension_numbers<[1], [0], [0], [1], [0, 0, 1, 1], [], []>} : vector<16x64xf32>, vector<64x32xf32>, vector<16x32xf32> -> vector<16x32xf32>
    %c1_192 = arith.constant 1 : index
    %c0_193 = arith.constant 0 : index
    %c0_194 = arith.constant 0 : index
    %448 = vector.load %arg11[%c1_192, %c0_193, %c0_194] : memref<2x1x32xf32, #tpu.memory_space<vmem>>, vector<1x1x32xf32>
    %449 = vector.shape_cast %448 : vector<1x1x32xf32> to vector<1x32xf32>
    %450 = vector.broadcast %449 : vector<1x32xf32> to vector<16x32xf32>
    %451 = arith.addf %447, %450 : vector<16x32xf32>
    %452 = arith.addf %435, %451 : vector<16x32xf32>
    %c1_195 = arith.constant 1 : index
    %c0_196 = arith.constant 0 : index
    %c0_197 = arith.constant 0 : index
    %453 = vector.load %arg14[%c1_195, %c0_196, %c0_197] : memref<2x1x32xf32, #tpu.memory_space<vmem>>, vector<1x1x32xf32>
    %454 = vector.shape_cast %453 : vector<1x1x32xf32> to vector<1x32xf32>
    %c1_198 = arith.constant 1 : index
    %c0_199 = arith.constant 0 : index
    %c0_200 = arith.constant 0 : index
    %455 = vector.load %arg15[%c1_198, %c0_199, %c0_200] : memref<2x1x32xf32, #tpu.memory_space<vmem>>, vector<1x1x32xf32>
    %456 = vector.shape_cast %455 : vector<1x1x32xf32> to vector<1x32xf32>
    %cst_201 = arith.constant dense<0.000000e+00> : vector<16xf32>
    %457 = vector.multi_reduction <add>, %452, %cst_201 [1] : vector<16x32xf32> to vector<16xf32>
    %458 = vector.shape_cast %457 : vector<16xf32> to vector<16x1xf32>
    %cst_202 = arith.constant 3.200000e+01 : f32
    %459 = vector.broadcast %cst_202 : f32 to vector<16x1xf32>
    %460 = arith.divf %458, %459 : vector<16x1xf32>
    %461 = vector.broadcast %460 : vector<16x1xf32> to vector<16x32xf32>
    %462 = arith.subf %452, %461 : vector<16x32xf32>
    %463 = arith.mulf %462, %462 : vector<16x32xf32>
    %cst_203 = arith.constant dense<0.000000e+00> : vector<16xf32>
    %464 = vector.multi_reduction <add>, %463, %cst_203 [1] : vector<16x32xf32> to vector<16xf32>
    %465 = vector.shape_cast %464 : vector<16xf32> to vector<16x1xf32>
    %cst_204 = arith.constant 3.200000e+01 : f32
    %466 = vector.broadcast %cst_204 : f32 to vector<16x1xf32>
    %467 = arith.divf %465, %466 : vector<16x1xf32>
    %cst_205 = arith.constant 9.99999974E-6 : f32
    %468 = vector.broadcast %cst_205 : f32 to vector<16x1xf32>
    %469 = arith.addf %467, %468 : vector<16x1xf32>
    %470 = math.rsqrt %469 : vector<16x1xf32>
    %471 = vector.broadcast %470 : vector<16x1xf32> to vector<16x32xf32>
    %472 = arith.mulf %462, %471 : vector<16x32xf32>
    %473 = vector.broadcast %454 : vector<1x32xf32> to vector<16x32xf32>
    %474 = arith.mulf %472, %473 : vector<16x32xf32>
    %475 = vector.broadcast %456 : vector<1x32xf32> to vector<16x32xf32>
    %476 = arith.addf %474, %475 : vector<16x32xf32>
    %477 = vector.extract_strided_slice %476 {offsets = [0, 0], sizes = [8, 32], strides = [1, 1]} : vector<16x32xf32> to vector<8x32xf32>
    %478 = vector.extract_strided_slice %476 {offsets = [8, 0], sizes = [8, 32], strides = [1, 1]} : vector<16x32xf32> to vector<8x32xf32>
    %479 = arith.addf %477, %478 : vector<8x32xf32>
    %cst_206 = arith.constant 5.000000e-01 : f32
    %480 = vector.broadcast %cst_206 : f32 to vector<8x32xf32>
    %481 = arith.mulf %479, %480 : vector<8x32xf32>
    %c0_207 = arith.constant 0 : index
    %c0_208 = arith.constant 0 : index
    %482 = vector.load %arg16[%c0_207, %c0_208] : memref<32x5xf32, #tpu.memory_space<vmem>>, vector<32x5xf32>
    %cst_209 = arith.constant dense<0.000000e+00> : vector<8x5xf32>
    %483 = tpu.matmul %481, %482, %cst_209 {dimension_numbers = #tpu.dot_dimension_numbers<[1], [0], [0], [1], [0, 0, 1, 1], [], []>} : vector<8x32xf32>, vector<32x5xf32>, vector<8x5xf32> -> vector<8x5xf32>
    %c0_210 = arith.constant 0 : index
    %c0_211 = arith.constant 0 : index
    %484 = vector.load %arg17[%c0_210, %c0_211] : memref<1x5xf32, #tpu.memory_space<vmem>>, vector<1x5xf32>
    %485 = vector.broadcast %484 : vector<1x5xf32> to vector<8x5xf32>
    %486 = arith.addf %483, %485 : vector<8x5xf32>
    %c0_212 = arith.constant 0 : index
    %c0_213 = arith.constant 0 : index
    %487 = vector.load %arg18[%c0_212, %c0_213] : memref<8x5xf32, #tpu.memory_space<vmem>>, vector<8x5xf32>
    tpu.vector_store %arg18[%c0_212, %c0_213], %486 {strides = array<i32>} : memref<8x5xf32, #tpu.memory_space<vmem>>, vector<8x5xf32>,
    return
  }
}

</mosaic_0001>

<llo_original>
// kernel: transformer_classifier_forward.1
$region0: #{transformer_classifier_forward.1}
  #allocation0 [shape = 'u32[]', space=smem, size = 0x4, offset = 0x4, fixed_abs, tag = 'smem constant byte address 0x4 - core index']
  #allocation1 [shape = 'u32[72,128]{1,0:T(1,128)}', space=vmem, size = 0x9000, scoped, tag = 'internal scratch']
  %s0 = inlined_call_operand.vmem [shape: f32[16,16], index: 0, kind: input, shape index: {}]
  %s1 = inlined_call_operand.vmem [shape: f32[8,32], index: 1, kind: input, shape index: {}]
  %s2 = inlined_call_operand.vmem [shape: f32[16,32], index: 2, kind: input, shape index: {}]
  %s3 = inlined_call_operand.vmem [shape: f32[1,32], index: 3, kind: input, shape index: {}]
  %s4 = inlined_call_operand.vmem [shape: f32[2,32,96], index: 4, kind: input, shape index: {}]
  %s5 = inlined_call_operand.vmem [shape: f32[2,1,96], index: 5, kind: input, shape index: {}]
  %s6 = inlined_call_operand.vmem [shape: f32[2,32,32], index: 6, kind: input, shape index: {}]
  %s7 = inlined_call_operand.vmem [shape: f32[2,1,32], index: 7, kind: input, shape index: {}]
  %s8 = inlined_call_operand.vmem [shape: f32[2,32,64], index: 8, kind: input, shape index: {}]
  %s9 = inlined_call_operand.vmem [shape: f32[2,1,64], index: 9, kind: input, shape index: {}]
  %s10 = inlined_call_operand.vmem [shape: f32[2,64,32], index: 10, kind: input, shape index: {}]
  %s11 = inlined_call_operand.vmem [shape: f32[2,1,32], index: 11, kind: input, shape index: {}]
  %s12 = inlined_call_operand.vmem [shape: f32[2,1,32], index: 12, kind: input, shape index: {}]
  %s13 = inlined_call_operand.vmem [shape: f32[2,1,32], index: 13, kind: input, shape index: {}]
  %s14 = inlined_call_operand.vmem [shape: f32[2,1,32], index: 14, kind: input, shape index: {}]
  %s15 = inlined_call_operand.vmem [shape: f32[2,1,32], index: 15, kind: input, shape index: {}]
  %s16 = inlined_call_operand.vmem [shape: f32[32,5], index: 16, kind: input, shape index: {}]
  %s17 = inlined_call_operand.vmem [shape: f32[1,5], index: 17, kind: input, shape index: {}]
  %s18 = inlined_call_operand.hbm [shape: f32[8,5], index: 18, kind: output, shape index: {}]
  %s19 = sld [smem:[#allocation0]]
  $region82: #{transformer_classifier_forward.1} parent=0
    _
  %s21 = ssub.s32 1, %s19
  %s22 = scalar_select 0, %s21, %s19
  $region1: #{transformer_classifier_forward.1} parent=0
    #allocation2 [shape = 'u8[4096]{0}', space=vmem, size = 0x1000, scoped, tag = 'output window, operand 0, single buffered']
    #allocation3 [shape = 's32[1]{0}', space=sflag, size = 0x4, scoped, tag = 'scoped memory for transformer_classifier_forward.1']
    %23 = vsyncpa [#allocation3], 0
    // Predicated region
    $region2: #{transformer_classifier_forward.1} parent=1 // pred_check
      _
    $region3: #{transformer_classifier_forward.1} parent=1 // pred_check_branch
      %25 = sbr.rel (0) target = $region5
    $region4: #{transformer_classifier_forward.1} parent=1 // pred_region
      _
    $region5: #{transformer_classifier_forward.1} parent=1 // pred_fallthru
      _
    // Predicated region
    $region6: #{transformer_classifier_forward.1} parent=1 // pred_check
      _
    $region7: #{transformer_classifier_forward.1} parent=1 // pred_check_branch
      %27 = sbr.rel (0) target = $region9
    $region8: #{transformer_classifier_forward.1} parent=1 // pred_region
      _
    $region9: #{transformer_classifier_forward.1} parent=1 // pred_fallthru
      _
    // Predicated region
    $region10: #{transformer_classifier_forward.1} parent=1 // pred_check
      _
    $region11: #{transformer_classifier_forward.1} parent=1 // pred_check_branch
      %29 = sbr.rel (0) target = $region13
    $region12: #{transformer_classifier_forward.1} parent=1 // pred_region
      _
    $region13: #{transformer_classifier_forward.1} parent=1 // pred_fallthru
      _
    // Predicated region
    $region14: #{transformer_classifier_forward.1} parent=1 // pred_check
      _
    $region15: #{transformer_classifier_forward.1} parent=1 // pred_check_branch
      %31 = sbr.rel (0) target = $region17
    $region16: #{transformer_classifier_forward.1} parent=1 // pred_region
      _
    $region17: #{transformer_classifier_forward.1} parent=1 // pred_fallthru
      _
    // Predicated region
    $region18: #{transformer_classifier_forward.1} parent=1 // pred_check
      _
    $region19: #{transformer_classifier_forward.1} parent=1 // pred_check_branch
      %33 = sbr.rel (0) target = $region21
    $region20: #{transformer_classifier_forward.1} parent=1 // pred_region
      _
    $region21: #{transformer_classifier_forward.1} parent=1 // pred_fallthru
      _
    // Predicated region
    $region22: #{transformer_classifier_forward.1} parent=1 // pred_check
      _
    $region23: #{transformer_classifier_forward.1} parent=1 // pred_check_branch
      %35 = sbr.rel (0) target = $region25
    $region24: #{transformer_classifier_forward.1} parent=1 // pred_region
      _
    $region25: #{transformer_classifier_forward.1} parent=1 // pred_fallthru
      _
    // Predicated region
    $region26: #{transformer_classifier_forward.1} parent=1 // pred_check
      _
    $region27: #{transformer_classifier_forward.1} parent=1 // pred_check_branch
      %37 = sbr.rel (0) target = $region29
    $region28: #{transformer_classifier_forward.1} parent=1 // pred_region
      _
    $region29: #{transformer_classifier_forward.1} parent=1 // pred_fallthru
      _
    // Predicated region
    $region30: #{transformer_classifier_forward.1} parent=1 // pred_check
      _
    $region31: #{transformer_classifier_forward.1} parent=1 // pred_check_branch
      %39 = sbr.rel (0) target = $region33
    $region32: #{transformer_classifier_forward.1} parent=1 // pred_region
      _
    $region33: #{transformer_classifier_forward.1} parent=1 // pred_fallthru
      _
    // Predicated region
    $region34: #{transformer_classifier_forward.1} parent=1 // pred_check
      _
    $region35: #{transformer_classifier_forward.1} parent=1 // pred_check_branch
      %41 = sbr.rel (0) target = $region37
    $region36: #{transformer_classifier_forward.1} parent=1 // pred_region
      _
    $region37: #{transformer_classifier_forward.1} parent=1 // pred_fallthru
      _
    // Predicated region
    $region38: #{transformer_classifier_forward.1} parent=1 // pred_check
      _
    $region39: #{transformer_classifier_forward.1} parent=1 // pred_check_branch
      %43 = sbr.rel (0) target = $region41
    $region40: #{transformer_classifier_forward.1} parent=1 // pred_region
      _
    $region41: #{transformer_classifier_forward.1} parent=1 // pred_fallthru
      _
    // Predicated region
    $region42: #{transformer_classifier_forward.1} parent=1 // pred_check
      _
    $region43: #{transformer_classifier_forward.1} parent=1 // pred_check_branch
      %45 = sbr.rel (0) target = $region45
    $region44: #{transformer_classifier_forward.1} parent=1 // pred_region
      _
    $region45: #{transformer_classifier_forward.1} parent=1 // pred_fallthru
      _
    // Predicated region
    $region46: #{transformer_classifier_forward.1} parent=1 // pred_check
      _
    $region47: #{transformer_classifier_forward.1} parent=1 // pred_check_branch
      %47 = sbr.rel (0) target = $region49
    $region48: #{transformer_classifier_forward.1} parent=1 // pred_region
      _
    $region49: #{transformer_classifier_forward.1} parent=1 // pred_fallthru
      _
    // Predicated region
    $region50: #{transformer_classifier_forward.1} parent=1 // pred_check
      _
    $region51: #{transformer_classifier_forward.1} parent=1 // pred_check_branch
      %49 = sbr.rel (0) target = $region53
    $region52: #{transformer_classifier_forward.1} parent=1 // pred_region
      _
    $region53: #{transformer_classifier_forward.1} parent=1 // pred_fallthru
      _
    // Predicated region
    $region54: #{transformer_classifier_forward.1} parent=1 // pred_check
      _
    $region55: #{transformer_classifier_forward.1} parent=1 // pred_check_branch
      %51 = sbr.rel (0) target = $region57
    $region56: #{transformer_classifier_forward.1} parent=1 // pred_region
      _
    $region57: #{transformer_classifier_forward.1} parent=1 // pred_fallthru
      _
    // Predicated region
    $region58: #{transformer_classifier_forward.1} parent=1 // pred_check
      _
    $region59: #{transformer_classifier_forward.1} parent=1 // pred_check_branch
      %53 = sbr.rel (0) target = $region61
    $region60: #{transformer_classifier_forward.1} parent=1 // pred_region
      _
    $region61: #{transformer_classifier_forward.1} parent=1 // pred_fallthru
      _
    // Predicated region
    $region62: #{transformer_classifier_forward.1} parent=1 // pred_check
      _
    $region63: #{transformer_classifier_forward.1} parent=1 // pred_check_branch
      %55 = sbr.rel (0) target = $region65
    $region64: #{transformer_classifier_forward.1} parent=1 // pred_region
      _
    $region65: #{transformer_classifier_forward.1} parent=1 // pred_fallthru
      _
    // Predicated region
    $region66: #{transformer_classifier_forward.1} parent=1 // pred_check
      _
    $region67: #{transformer_classifier_forward.1} parent=1 // pred_check_branch
      %57 = sbr.rel (0) target = $region69
    $region68: #{transformer_classifier_forward.1} parent=1 // pred_region
      _
    $region69: #{transformer_classifier_forward.1} parent=1 // pred_fallthru
      _
    // Predicated region
    $region70: #{transformer_classifier_forward.1} parent=1 // pred_check
      _
    $region71: #{transformer_classifier_forward.1} parent=1 // pred_check_branch
      %59 = sbr.rel (0) target = $region73
    $region72: #{transformer_classifier_forward.1} parent=1 // pred_region
      _
    $region73: #{transformer_classifier_forward.1} parent=1 // pred_fallthru
      _
    %v60 = vld [vmem:[%s0] sm:$0xff]
    %v61 = vld [vmem:[%s0 + $0x8] sm:$0xff]
    %v62 = vld [vmem:[%s2] sm:$0xff]
    %v63 = vld [vmem:[%s2 + $0x8] sm:$0xff]
    %v64 = vld [vmem:[%s3] sm:$0x1]
    %v66 = vperm.slane %v64, 0
    %vm68 = vcmask 130048
    %v70 = vsel %vm68, %v60, 0
    %v73 = vsel %vm68, %v61, 0
    %75 = vmatpush.msra.mxu0 0.0
    %76 = vmatpush.msra.mxu0 0.0
    %77 = vmatpush.msra.mxu0 0.0
    %78 = vmatpush.msra.mxu0 0.0
    %79 = vmatpush.msra.mxu0 0.0
    %80 = vmatpush.msra.mxu0 0.0
    %81 = vmatpush.msra.mxu0 0.0
    %82 = vmatpush.msra.mxu0 0.0
    %83 = vmatpush.msra.mxu0 0.0
    %84 = vmatpush.msra.mxu0 0.0
    %85 = vmatpush.msra.mxu0 0.0
    %86 = vmatpush.msra.mxu0 0.0
    %87 = vmatpush.msra.mxu0 0.0
    %88 = vmatpush.msra.mxu0 0.0
    %89 = vmatpush.msra.mxu0 %v63
    %90 = vmatpush.msra.mxu0 %v62
    %91 = vmatmul.f32.gmra.mxu0 %v70
    %v92 = vpop.f32.mrf.mxu0
    %v93 = vadd.f32 %v66, %v92
    %94 = vmatmul.f32.gmra.mxu0 %v73
    %v95 = vpop.f32.mrf.mxu0
    %v96 = vadd.f32 %v66, %v95
    %97 = vdwg.mxu0
    %v98 = vld [vmem:[%s1] sm:$0xff]
    %v99 = vadd.f32 %v93, %v98
    %v100 = vadd.f32 %v96, %v98
    %v101 = vld [vmem:[%s4] sm:$0xff]
    %v102 = vld [vmem:[%s4 + $0x8] sm:$0xff]
    %v103 = vld [vmem:[%s4 + $0x10] sm:$0xff]
    %v104 = vld [vmem:[%s4 + $0x18] sm:$0xff]
    %v105 = vld [vmem:[%s5] sm:$0x1]
    %v107 = vperm.slane %v105, 0
    %vm109 = vcmask 261120
    %v111 = vsel %vm109, %v99, 0
    %v114 = vsel %vm109, %v100, 0
    %116 = vmatpush.msra.mxu0 0.0
    %117 = vmatpush.msra.mxu0 0.0
    %118 = vmatpush.msra.mxu0 0.0
    %119 = vmatpush.msra.mxu0 0.0
    %120 = vmatpush.msra.mxu0 0.0
    %121 = vmatpush.msra.mxu0 0.0
    %122 = vmatpush.msra.mxu0 0.0
    %123 = vmatpush.msra.mxu0 0.0
    %124 = vmatpush.msra.mxu0 0.0
    %125 = vmatpush.msra.mxu0 0.0
    %126 = vmatpush.msra.mxu0 0.0
    %127 = vmatpush.msra.mxu0 0.0
    %128 = vmatpush.msra.mxu0 %v104
    %129 = vmatpush.msra.mxu0 %v103
    %130 = vmatpush.msra.mxu0 %v102
    %131 = vmatpush.msra.mxu0 %v101
    %132 = vmatmul.f32.gmra.mxu0 %v111
    %v133 = vpop.f32.mrf.mxu0
    %v134 = vadd.f32 %v107, %v133
    %135 = vmatmul.f32.gmra.mxu0 %v114
    %v136 = vpop.f32.mrf.mxu0
    %v137 = vadd.f32 %v107, %v136
    %138 = vdwg.mxu0
    %v139 = vld [vmem:[%s6] sm:$0xff]
    %v140 = vld [vmem:[%s6 + $0x8] sm:$0xff]
    %v141 = vld [vmem:[%s6 + $0x10] sm:$0xff]
    %v142 = vld [vmem:[%s6 + $0x18] sm:$0xff]
    %144 = vrot.lane.b32.xlu0 %v134, 96
    %v145 = vpop.permute.xlu0 %144
    %vm146 = vcmask 64512
    %v147 = vsel %vm146, %v134, 0
    %v149 = vsel %vm146, %v145, 0
    %151 = vmatpush.xpose.msra.mxu0 0.0
    %152 = vmatpush.xpose.msra.mxu0 0.0
    %153 = vmatpush.xpose.msra.mxu0 0.0
    %154 = vmatpush.xpose.msra.mxu0 0.0
    %155 = vmatpush.xpose.msra.mxu0 0.0
    %156 = vmatpush.xpose.msra.mxu0 0.0
    %157 = vmatpush.xpose.msra.mxu0 0.0
    %158 = vmatpush.xpose.msra.mxu0 0.0
    %159 = vmatpush.xpose.msra.mxu0 0.0
    %160 = vmatpush.xpose.msra.mxu0 0.0
    %161 = vmatpush.xpose.msra.mxu0 0.0
    %162 = vmatpush.xpose.msra.mxu0 0.0
    %163 = vmatpush.xpose.msra.mxu0 0.0
    %164 = vmatpush.xpose.msra.mxu0 0.0
    %165 = vmatpush.xpose.msra.mxu0 0.0
    %166 = vmatpush.xpose.msra.mxu0 %v149
    %167 = vmatmul.f32.gmra.mxu0 %v147
    %v168 = vpop.f32.mrf.mxu0
    %v169 = vadd.f32 0.0, %v168
    %170 = vdwg.mxu0
    %v171 = vmul.f32 %v169, 0.35355338
    %v172 = vsel %vm146, %v171, -inf
    %173 = vmax.xlane.f32.xlu0 %v172
    %v174 = vpop.xlane.xlu0 %173
    %v175 = vsub.f32 %v171, %v174
    %v176 = vmul.f32 %v175, 1.442695
    %v177 = vpow.pop %v176
    %v178 = vsel %vm146, %v177, 0.0
    %179 = vadd.xlane.f32.xlu0 %v178
    %v180 = vpop.xlane.xlu0 %179
    %v181 = vrcp.pop %v180
    %v182 = vmul.f32 %v180, %v181
    %v183 = vsub.f32 1.0, %v182
    %v184 = vmul.f32 %v181, %v183
    %v185 = vadd.f32 %v181, %v184
    %vm186 = vweird.f32 %v180
    %vm187 = vweird.f32 %v181
    %vm188 = vmor %vm186, %vm187
    %v189 = vsel %vm188, %v181, %v185
    %v190 = vand.u32 2147483647, %v180
    %vm191 = vcmp.eq.f32.partialorder %v190, 8.507059e+37
    %v192 = vand.u32 %v180, 2147483648
    %v193 = vor.u32 1.1754944e-38, %v192
    %v194 = vsel %vm191, %v193, %v189
    %v195 = vmul.f32 %v177, %v194
    %196 = vrot.lane.b32.xlu0 %v134, 64
    %v197 = vpop.permute.xlu0 %196
    %v200 = vsel %vm146, %v195, 0
    %202 = vmatpush.msra.mxu0 0.0
    %203 = vmatpush.msra.mxu0 0.0
    %204 = vmatpush.msra.mxu0 0.0
    %205 = vmatpush.msra.mxu0 0.0
    %206 = vmatpush.msra.mxu0 0.0
    %207 = vmatpush.msra.mxu0 0.0
    %208 = vmatpush.msra.mxu0 0.0
    %209 = vmatpush.msra.mxu0 0.0
    %210 = vmatpush.msra.mxu0 0.0
    %211 = vmatpush.msra.mxu0 0.0
    %212 = vmatpush.msra.mxu0 0.0
    %213 = vmatpush.msra.mxu0 0.0
    %214 = vmatpush.msra.mxu0 0.0
    %215 = vmatpush.msra.mxu0 0.0
    %216 = vmatpush.msra.mxu0 0.0
    %217 = vmatpush.msra.mxu0 %v197
    %218 = vmatmul.f32.gmra.mxu0 %v200
    %v219 = vpop.f32.mrf.mxu0
    %v220 = vadd.f32 0.0, %v219
    %221 = vdwg.mxu0
    %222 = vrot.lane.b32.xlu0 %v134, 120
    %v223 = vpop.permute.xlu0 %222
    %224 = vrot.lane.b32.xlu0 %v134, 88
    %v225 = vpop.permute.xlu0 %224
    %v226 = vsel %vm146, %v223, 0
    %v228 = vsel %vm146, %v225, 0
    %230 = vmatpush.xpose.msra.mxu0 0.0
    %231 = vmatpush.xpose.msra.mxu0 0.0
    %232 = vmatpush.xpose.msra.mxu0 0.0
    %233 = vmatpush.xpose.msra.mxu0 0.0
    %234 = vmatpush.xpose.msra.mxu0 0.0
    %235 = vmatpush.xpose.msra.mxu0 0.0
    %236 = vmatpush.xpose.msra.mxu0 0.0
    %237 = vmatpush.xpose.msra.mxu0 0.0
    %238 = vmatpush.xpose.msra.mxu0 0.0
    %239 = vmatpush.xpose.msra.mxu0 0.0
    %240 = vmatpush.xpose.msra.mxu0 0.0
    %241 = vmatpush.xpose.msra.mxu0 0.0
    %242 = vmatpush.xpose.msra.mxu0 0.0
    %243 = vmatpush.xpose.msra.mxu0 0.0
    %244 = vmatpush.xpose.msra.mxu0 0.0
    %245 = vmatpush.xpose.msra.mxu0 %v228
    %246 = vmatmul.f32.gmra.mxu0 %v226
    %v247 = vpop.f32.mrf.mxu0
    %v248 = vadd.f32 0.0, %v247
    %249 = vdwg.mxu0
    %v250 = vmul.f32 %v248, 0.35355338
    %v251 = vsel %vm146, %v250, -inf
    %252 = vmax.xlane.f32.xlu0 %v251
    %v253 = vpop.xlane.xlu0 %252
    %v254 = vsub.f32 %v250, %v253
    %v255 = vmul.f32 %v254, 1.442695
    %v256 = vpow.pop %v255
    %v257 = vsel %vm146, %v256, 0.0
    %258 = vadd.xlane.f32.xlu0 %v257
    %v259 = vpop.xlane.xlu0 %258
    %v260 = vrcp.pop %v259
    %v261 = vmul.f32 %v259, %v260
    %v262 = vsub.f32 1.0, %v261
    %v263 = vmul.f32 %v260, %v262
    %v264 = vadd.f32 %v260, %v263
    %vm265 = vweird.f32 %v259
    %vm266 = vweird.f32 %v260
    %vm267 = vmor %vm265, %vm266
    %v268 = vsel %vm267, %v260, %v264
    %v269 = vand.u32 2147483647, %v259
    %vm270 = vcmp.eq.f32.partialorder %v269, 8.507059e+37
    %v271 = vand.u32 %v259, 2147483648
    %v272 = vor.u32 1.1754944e-38, %v271
    %v273 = vsel %vm270, %v272, %v268
    %v274 = vmul.f32 %v256, %v273
    %275 = vrot.lane.b32.xlu0 %v134, 56
    %v276 = vpop.permute.xlu0 %275
    %v279 = vsel %vm146, %v274, 0
    %281 = vmatpush.msra.mxu0 0.0
    %282 = vmatpush.msra.mxu0 0.0
    %283 = vmatpush.msra.mxu0 0.0
    %284 = vmatpush.msra.mxu0 0.0
    %285 = vmatpush.msra.mxu0 0.0
    %286 = vmatpush.msra.mxu0 0.0
    %287 = vmatpush.msra.mxu0 0.0
    %288 = vmatpush.msra.mxu0 0.0
    %289 = vmatpush.msra.mxu0 0.0
    %290 = vmatpush.msra.mxu0 0.0
    %291 = vmatpush.msra.mxu0 0.0
    %292 = vmatpush.msra.mxu0 0.0
    %293 = vmatpush.msra.mxu0 0.0
    %294 = vmatpush.msra.mxu0 0.0
    %295 = vmatpush.msra.mxu0 0.0
    %296 = vmatpush.msra.mxu0 %v276
    %297 = vmatmul.f32.gmra.mxu0 %v279
    %v298 = vpop.f32.mrf.mxu0
    %v299 = vadd.f32 0.0, %v298
    %300 = vdwg.mxu0
    %v302 = vsel %vm146, %v299, 0
    %304 = vmatpush.msra.mxu0 0.0
    %305 = vmatpush.msra.mxu0 0.0
    %306 = vmatpush.msra.mxu0 0.0
    %307 = vmatpush.msra.mxu0 0.0
    %308 = vmatpush.msra.mxu0 0.0
    %309 = vmatpush.msra.mxu0 0.0
    %310 = vmatpush.msra.mxu0 0.0
    %311 = vmatpush.msra.mxu0 0.0
    %312 = vmatpush.msra.mxu0 0.0
    %313 = vmatpush.msra.mxu0 0.0
    %314 = vmatpush.msra.mxu0 0.0
    %315 = vmatpush.msra.mxu0 0.0
    %316 = vmatpush.msra.mxu0 0.0
    %317 = vmatpush.msra.mxu0 0.0
    %318 = vmatpush.msra.mxu0 0.0
    %319 = vmatpush.msra.mxu0 %v140
    %320 = vmatmul.f32.gmra.mxu0 %v302
    %v321 = vpop.f32.mrf.mxu0
    %v322 = vadd.f32 0.0, %v321
    %323 = vdwg.mxu0
    %v325 = vsel %vm146, %v220, 0
    %327 = vmatpush.msra.mxu0 0.0
    %328 = vmatpush.msra.mxu0 0.0
    %329 = vmatpush.msra.mxu0 0.0
    %330 = vmatpush.msra.mxu0 0.0
    %331 = vmatpush.msra.mxu0 0.0
    %332 = vmatpush.msra.mxu0 0.0
    %333 = vmatpush.msra.mxu0 0.0
    %334 = vmatpush.msra.mxu0 0.0
    %335 = vmatpush.msra.mxu0 0.0
    %336 = vmatpush.msra.mxu0 0.0
    %337 = vmatpush.msra.mxu0 0.0
    %338 = vmatpush.msra.mxu0 0.0
    %339 = vmatpush.msra.mxu0 0.0
    %340 = vmatpush.msra.mxu0 0.0
    %341 = vmatpush.msra.mxu0 0.0
    %342 = vmatpush.msra.mxu0 %v139
    %343 = vmatmul.f32.gmra.mxu0 %v325
    %v344 = vpop.f32.mrf.mxu0
    %v345 = vadd.f32 %v322, %v344
    %346 = vdwg.mxu0
    %347 = vrot.lane.b32.xlu0 %v134, 112
    %v348 = vpop.permute.xlu0 %347
    %349 = vrot.lane.b32.xlu0 %v134, 80
    %v350 = vpop.permute.xlu0 %349
    %v351 = vsel %vm146, %v348, 0
    %v353 = vsel %vm146, %v350, 0
    %355 = vmatpush.xpose.msra.mxu0 0.0
    %356 = vmatpush.xpose.msra.mxu0 0.0
    %357 = vmatpush.xpose.msra.mxu0 0.0
    %358 = vmatpush.xpose.msra.mxu0 0.0
    %359 = vmatpush.xpose.msra.mxu0 0.0
    %360 = vmatpush.xpose.msra.mxu0 0.0
    %361 = vmatpush.xpose.msra.mxu0 0.0
    %362 = vmatpush.xpose.msra.mxu0 0.0
    %363 = vmatpush.xpose.msra.mxu0 0.0
    %364 = vmatpush.xpose.msra.mxu0 0.0
    %365 = vmatpush.xpose.msra.mxu0 0.0
    %366 = vmatpush.xpose.msra.mxu0 0.0
    %367 = vmatpush.xpose.msra.mxu0 0.0
    %368 = vmatpush.xpose.msra.mxu0 0.0
    %369 = vmatpush.xpose.msra.mxu0 0.0
    %370 = vmatpush.xpose.msra.mxu0 %v353
    %371 = vmatmul.f32.gmra.mxu0 %v351
    %v372 = vpop.f32.mrf.mxu0
    %v373 = vadd.f32 0.0, %v372
    %374 = vdwg.mxu0
    %v375 = vmul.f32 %v373, 0.35355338
    %v376 = vsel %vm146, %v375, -inf
    %377 = vmax.xlane.f32.xlu0 %v376
    %v378 = vpop.xlane.xlu0 %377
    %v379 = vsub.f32 %v375, %v378
    %v380 = vmul.f32 %v379, 1.442695
    %v381 = vpow.pop %v380
    %v382 = vsel %vm146, %v381, 0.0
    %383 = vadd.xlane.f32.xlu0 %v382
    %v384 = vpop.xlane.xlu0 %383
    %v385 = vrcp.pop %v384
    %v386 = vmul.f32 %v384, %v385
    %v387 = vsub.f32 1.0, %v386
    %v388 = vmul.f32 %v385, %v387
    %v389 = vadd.f32 %v385, %v388
    %vm390 = vweird.f32 %v384
    %vm391 = vweird.f32 %v385
    %vm392 = vmor %vm390, %vm391
    %v393 = vsel %vm392, %v385, %v389
    %v394 = vand.u32 2147483647, %v384
    %vm395 = vcmp.eq.f32.partialorder %v394, 8.507059e+37
    %v396 = vand.u32 %v384, 2147483648
    %v397 = vor.u32 1.1754944e-38, %v396
    %v398 = vsel %vm395, %v397, %v393
    %v399 = vmul.f32 %v381, %v398
    %400 = vrot.lane.b32.xlu0 %v134, 48
    %v401 = vpop.permute.xlu0 %400
    %v404 = vsel %vm146, %v399, 0
    %406 = vmatpush.msra.mxu0 0.0
    %407 = vmatpush.msra.mxu0 0.0
    %408 = vmatpush.msra.mxu0 0.0
    %409 = vmatpush.msra.mxu0 0.0
    %410 = vmatpush.msra.mxu0 0.0
    %411 = vmatpush.msra.mxu0 0.0
    %412 = vmatpush.msra.mxu0 0.0
    %413 = vmatpush.msra.mxu0 0.0
    %414 = vmatpush.msra.mxu0 0.0
    %415 = vmatpush.msra.mxu0 0.0
    %416 = vmatpush.msra.mxu0 0.0
    %417 = vmatpush.msra.mxu0 0.0
    %418 = vmatpush.msra.mxu0 0.0
    %419 = vmatpush.msra.mxu0 0.0
    %420 = vmatpush.msra.mxu0 0.0
    %421 = vmatpush.msra.mxu0 %v401
    %422 = vmatmul.f32.gmra.mxu0 %v404
    %v423 = vpop.f32.mrf.mxu0
    %v424 = vadd.f32 0.0, %v423
    %425 = vdwg.mxu0
    %v427 = vsel %vm146, %v424, 0
    %429 = vmatpush.msra.mxu0 0.0
    %430 = vmatpush.msra.mxu0 0.0
    %431 = vmatpush.msra.mxu0 0.0
    %432 = vmatpush.msra.mxu0 0.0
    %433 = vmatpush.msra.mxu0 0.0
    %434 = vmatpush.msra.mxu0 0.0
    %435 = vmatpush.msra.mxu0 0.0
    %436 = vmatpush.msra.mxu0 0.0
    %437 = vmatpush.msra.mxu0 0.0
    %438 = vmatpush.msra.mxu0 0.0
    %439 = vmatpush.msra.mxu0 0.0
    %440 = vmatpush.msra.mxu0 0.0
    %441 = vmatpush.msra.mxu0 0.0
    %442 = vmatpush.msra.mxu0 0.0
    %443 = vmatpush.msra.mxu0 0.0
    %444 = vmatpush.msra.mxu0 %v141
    %445 = vmatmul.f32.gmra.mxu0 %v427
    %v446 = vpop.f32.mrf.mxu0
    %v447 = vadd.f32 0.0, %v446
    %448 = vdwg.mxu0
    %v449 = vadd.f32 %v345, %v447
    %450 = vrot.lane.b32.xlu0 %v134, 104
    %v451 = vpop.permute.xlu0 %450
    %452 = vrot.lane.b32.xlu0 %v134, 72
    %v453 = vpop.permute.xlu0 %452
    %v454 = vsel %vm146, %v451, 0
    %v456 = vsel %vm146, %v453, 0
    %458 = vmatpush.xpose.msra.mxu0 0.0
    %459 = vmatpush.xpose.msra.mxu0 0.0
    %460 = vmatpush.xpose.msra.mxu0 0.0
    %461 = vmatpush.xpose.msra.mxu0 0.0
    %462 = vmatpush.xpose.msra.mxu0 0.0
    %463 = vmatpush.xpose.msra.mxu0 0.0
    %464 = vmatpush.xpose.msra.mxu0 0.0
    %465 = vmatpush.xpose.msra.mxu0 0.0
    %466 = vmatpush.xpose.msra.mxu0 0.0
    %467 = vmatpush.xpose.msra.mxu0 0.0
    %468 = vmatpush.xpose.msra.mxu0 0.0
    %469 = vmatpush.xpose.msra.mxu0 0.0
    %470 = vmatpush.xpose.msra.mxu0 0.0
    %471 = vmatpush.xpose.msra.mxu0 0.0
    %472 = vmatpush.xpose.msra.mxu0 0.0
    %473 = vmatpush.xpose.msra.mxu0 %v456
    %474 = vmatmul.f32.gmra.mxu0 %v454
    %v475 = vpop.f32.mrf.mxu0
    %v476 = vadd.f32 0.0, %v475
    %477 = vdwg.mxu0
    %v478 = vmul.f32 %v476, 0.35355338
    %v479 = vsel %vm146, %v478, -inf
    %480 = vmax.xlane.f32.xlu0 %v479
    %v481 = vpop.xlane.xlu0 %480
    %v482 = vsub.f32 %v478, %v481
    %v483 = vmul.f32 %v482, 1.442695
    %v484 = vpow.pop %v483
    %v485 = vsel %vm146, %v484, 0.0
    %486 = vadd.xlane.f32.xlu0 %v485
    %v487 = vpop.xlane.xlu0 %486
    %v488 = vrcp.pop %v487
    %v489 = vmul.f32 %v487, %v488
    %v490 = vsub.f32 1.0, %v489
    %v491 = vmul.f32 %v488, %v490
    %v492 = vadd.f32 %v488, %v491
    %vm493 = vweird.f32 %v487
    %vm494 = vweird.f32 %v488
    %vm495 = vmor %vm493, %vm494
    %v496 = vsel %vm495, %v488, %v492
    %v497 = vand.u32 2147483647, %v487
    %vm498 = vcmp.eq.f32.partialorder %v497, 8.507059e+37
    %v499 = vand.u32 %v487, 2147483648
    %v500 = vor.u32 1.1754944e-38, %v499
    %v501 = vsel %vm498, %v500, %v496
    %v502 = vmul.f32 %v484, %v501
    %503 = vrot.lane.b32.xlu0 %v134, 40
    %v504 = vpop.permute.xlu0 %503
    %v507 = vsel %vm146, %v502, 0
    %509 = vmatpush.msra.mxu0 0.0
    %510 = vmatpush.msra.mxu0 0.0
    %511 = vmatpush.msra.mxu0 0.0
    %512 = vmatpush.msra.mxu0 0.0
    %513 = vmatpush.msra.mxu0 0.0
    %514 = vmatpush.msra.mxu0 0.0
    %515 = vmatpush.msra.mxu0 0.0
    %516 = vmatpush.msra.mxu0 0.0
    %517 = vmatpush.msra.mxu0 0.0
    %518 = vmatpush.msra.mxu0 0.0
    %519 = vmatpush.msra.mxu0 0.0
    %520 = vmatpush.msra.mxu0 0.0
    %521 = vmatpush.msra.mxu0 0.0
    %522 = vmatpush.msra.mxu0 0.0
    %523 = vmatpush.msra.mxu0 0.0
    %524 = vmatpush.msra.mxu0 %v504
    %525 = vmatmul.f32.gmra.mxu0 %v507
    %v526 = vpop.f32.mrf.mxu0
    %v527 = vadd.f32 0.0, %v526
    %528 = vdwg.mxu0
    %v530 = vsel %vm146, %v527, 0
    %532 = vmatpush.msra.mxu0 0.0
    %533 = vmatpush.msra.mxu0 0.0
    %534 = vmatpush.msra.mxu0 0.0
    %535 = vmatpush.msra.mxu0 0.0
    %536 = vmatpush.msra.mxu0 0.0
    %537 = vmatpush.msra.mxu0 0.0
    %538 = vmatpush.msra.mxu0 0.0
    %539 = vmatpush.msra.mxu0 0.0
    %540 = vmatpush.msra.mxu0 0.0
    %541 = vmatpush.msra.mxu0 0.0
    %542 = vmatpush.msra.mxu0 0.0
    %543 = vmatpush.msra.mxu0 0.0
    %544 = vmatpush.msra.mxu0 0.0
    %545 = vmatpush.msra.mxu0 0.0
    %546 = vmatpush.msra.mxu0 0.0
    %547 = vmatpush.msra.mxu0 %v142
    %548 = vmatmul.f32.gmra.mxu0 %v530
    %v549 = vpop.f32.mrf.mxu0
    %v550 = vadd.f32 0.0, %v549
    %551 = vdwg.mxu0
    %v552 = vadd.f32 %v449, %v550
    %554 = vrot.lane.b32.xlu0 %v137, 96
    %v555 = vpop.permute.xlu0 %554
    %v556 = vsel %vm146, %v137, 0
    %v558 = vsel %vm146, %v555, 0
    %560 = vmatpush.xpose.msra.mxu0 0.0
    %561 = vmatpush.xpose.msra.mxu0 0.0
    %562 = vmatpush.xpose.msra.mxu0 0.0
    %563 = vmatpush.xpose.msra.mxu0 0.0
    %564 = vmatpush.xpose.msra.mxu0 0.0
    %565 = vmatpush.xpose.msra.mxu0 0.0
    %566 = vmatpush.xpose.msra.mxu0 0.0
    %567 = vmatpush.xpose.msra.mxu0 0.0
    %568 = vmatpush.xpose.msra.mxu0 0.0
    %569 = vmatpush.xpose.msra.mxu0 0.0
    %570 = vmatpush.xpose.msra.mxu0 0.0
    %571 = vmatpush.xpose.msra.mxu0 0.0
    %572 = vmatpush.xpose.msra.mxu0 0.0
    %573 = vmatpush.xpose.msra.mxu0 0.0
    %574 = vmatpush.xpose.msra.mxu0 0.0
    %575 = vmatpush.xpose.msra.mxu0 %v558
    %576 = vmatmul.f32.gmra.mxu0 %v556
    %v577 = vpop.f32.mrf.mxu0
    %v578 = vadd.f32 0.0, %v577
    %579 = vdwg.mxu0
    %v580 = vmul.f32 %v578, 0.35355338
    %v581 = vsel %vm146, %v580, -inf
    %582 = vmax.xlane.f32.xlu0 %v581
    %v583 = vpop.xlane.xlu0 %582
    %v584 = vsub.f32 %v580, %v583
    %v585 = vmul.f32 %v584, 1.442695
    %v586 = vpow.pop %v585
    %v587 = vsel %vm146, %v586, 0.0
    %588 = vadd.xlane.f32.xlu0 %v587
    %v589 = vpop.xlane.xlu0 %588
    %v590 = vrcp.pop %v589
    %v591 = vmul.f32 %v589, %v590
    %v592 = vsub.f32 1.0, %v591
    %v593 = vmul.f32 %v590, %v592
    %v594 = vadd.f32 %v590, %v593
    %vm595 = vweird.f32 %v589
    %vm596 = vweird.f32 %v590
    %vm597 = vmor %vm595, %vm596
    %v598 = vsel %vm597, %v590, %v594
    %v599 = vand.u32 2147483647, %v589
    %vm600 = vcmp.eq.f32.partialorder %v599, 8.507059e+37
    %v601 = vand.u32 %v589, 2147483648
    %v602 = vor.u32 1.1754944e-38, %v601
    %v603 = vsel %vm600, %v602, %v598
    %v604 = vmul.f32 %v586, %v603
    %605 = vrot.lane.b32.xlu0 %v137, 64
    %v606 = vpop.permute.xlu0 %605
    %v609 = vsel %vm146, %v604, 0
    %611 = vmatpush.msra.mxu0 0.0
    %612 = vmatpush.msra.mxu0 0.0
    %613 = vmatpush.msra.mxu0 0.0
    %614 = vmatpush.msra.mxu0 0.0
    %615 = vmatpush.msra.mxu0 0.0
    %616 = vmatpush.msra.mxu0 0.0
    %617 = vmatpush.msra.mxu0 0.0
    %618 = vmatpush.msra.mxu0 0.0
    %619 = vmatpush.msra.mxu0 0.0
    %620 = vmatpush.msra.mxu0 0.0
    %621 = vmatpush.msra.mxu0 0.0
    %622 = vmatpush.msra.mxu0 0.0
    %623 = vmatpush.msra.mxu0 0.0
    %624 = vmatpush.msra.mxu0 0.0
    %625 = vmatpush.msra.mxu0 0.0
    %626 = vmatpush.msra.mxu0 %v606
    %627 = vmatmul.f32.gmra.mxu0 %v609
    %v628 = vpop.f32.mrf.mxu0
    %v629 = vadd.f32 0.0, %v628
    %630 = vdwg.mxu0
    %631 = vrot.lane.b32.xlu0 %v137, 120
    %v632 = vpop.permute.xlu0 %631
    %633 = vrot.lane.b32.xlu0 %v137, 88
    %v634 = vpop.permute.xlu0 %633
    %v635 = vsel %vm146, %v632, 0
    %v637 = vsel %vm146, %v634, 0
    %639 = vmatpush.xpose.msra.mxu0 0.0
    %640 = vmatpush.xpose.msra.mxu0 0.0
    %641 = vmatpush.xpose.msra.mxu0 0.0
    %642 = vmatpush.xpose.msra.mxu0 0.0
    %643 = vmatpush.xpose.msra.mxu0 0.0
    %644 = vmatpush.xpose.msra.mxu0 0.0
    %645 = vmatpush.xpose.msra.mxu0 0.0
    %646 = vmatpush.xpose.msra.mxu0 0.0
    %647 = vmatpush.xpose.msra.mxu0 0.0
    %648 = vmatpush.xpose.msra.mxu0 0.0
    %649 = vmatpush.xpose.msra.mxu0 0.0
    %650 = vmatpush.xpose.msra.mxu0 0.0
    %651 = vmatpush.xpose.msra.mxu0 0.0
    %652 = vmatpush.xpose.msra.mxu0 0.0
    %653 = vmatpush.xpose.msra.mxu0 0.0
    %654 = vmatpush.xpose.msra.mxu0 %v637
    %655 = vmatmul.f32.gmra.mxu0 %v635
    %v656 = vpop.f32.mrf.mxu0
    %v657 = vadd.f32 0.0, %v656
    %658 = vdwg.mxu0
    %v659 = vmul.f32 %v657, 0.35355338
    %v660 = vsel %vm146, %v659, -inf
    %661 = vmax.xlane.f32.xlu0 %v660
    %v662 = vpop.xlane.xlu0 %661
    %v663 = vsub.f32 %v659, %v662
    %v664 = vmul.f32 %v663, 1.442695
    %v665 = vpow.pop %v664
    %v666 = vsel %vm146, %v665, 0.0
    %667 = vadd.xlane.f32.xlu0 %v666
    %v668 = vpop.xlane.xlu0 %667
    %v669 = vrcp.pop %v668
    %v670 = vmul.f32 %v668, %v669
    %v671 = vsub.f32 1.0, %v670
    %v672 = vmul.f32 %v669, %v671
    %v673 = vadd.f32 %v669, %v672
    %vm674 = vweird.f32 %v668
    %vm675 = vweird.f32 %v669
    %vm676 = vmor %vm674, %vm675
    %v677 = vsel %vm676, %v669, %v673
    %v678 = vand.u32 2147483647, %v668
    %vm679 = vcmp.eq.f32.partialorder %v678, 8.507059e+37
    %v680 = vand.u32 %v668, 2147483648
    %v681 = vor.u32 1.1754944e-38, %v680
    %v682 = vsel %vm679, %v681, %v677
    %v683 = vmul.f32 %v665, %v682
    %684 = vrot.lane.b32.xlu0 %v137, 56
    %v685 = vpop.permute.xlu0 %684
    %v688 = vsel %vm146, %v683, 0
    %690 = vmatpush.msra.mxu0 0.0
    %691 = vmatpush.msra.mxu0 0.0
    %692 = vmatpush.msra.mxu0 0.0
    %693 = vmatpush.msra.mxu0 0.0
    %694 = vmatpush.msra.mxu0 0.0
    %695 = vmatpush.msra.mxu0 0.0
    %696 = vmatpush.msra.mxu0 0.0
    %697 = vmatpush.msra.mxu0 0.0
    %698 = vmatpush.msra.mxu0 0.0
    %699 = vmatpush.msra.mxu0 0.0
    %700 = vmatpush.msra.mxu0 0.0
    %701 = vmatpush.msra.mxu0 0.0
    %702 = vmatpush.msra.mxu0 0.0
    %703 = vmatpush.msra.mxu0 0.0
    %704 = vmatpush.msra.mxu0 0.0
    %705 = vmatpush.msra.mxu0 %v685
    %706 = vmatmul.f32.gmra.mxu0 %v688
    %v707 = vpop.f32.mrf.mxu0
    %v708 = vadd.f32 0.0, %v707
    %709 = vdwg.mxu0
    %v711 = vsel %vm146, %v708, 0
    %713 = vmatpush.msra.mxu0 0.0
    %714 = vmatpush.msra.mxu0 0.0
    %715 = vmatpush.msra.mxu0 0.0
    %716 = vmatpush.msra.mxu0 0.0
    %717 = vmatpush.msra.mxu0 0.0
    %718 = vmatpush.msra.mxu0 0.0
    %719 = vmatpush.msra.mxu0 0.0
    %720 = vmatpush.msra.mxu0 0.0
    %721 = vmatpush.msra.mxu0 0.0
    %722 = vmatpush.msra.mxu0 0.0
    %723 = vmatpush.msra.mxu0 0.0
    %724 = vmatpush.msra.mxu0 0.0
    %725 = vmatpush.msra.mxu0 0.0
    %726 = vmatpush.msra.mxu0 0.0
    %727 = vmatpush.msra.mxu0 0.0
    %728 = vmatpush.msra.mxu0 %v140
    %729 = vmatmul.f32.gmra.mxu0 %v711
    %v730 = vpop.f32.mrf.mxu0
    %v731 = vadd.f32 0.0, %v730
    %732 = vdwg.mxu0
    %v734 = vsel %vm146, %v629, 0
    %736 = vmatpush.msra.mxu0 0.0
    %737 = vmatpush.msra.mxu0 0.0
    %738 = vmatpush.msra.mxu0 0.0
    %739 = vmatpush.msra.mxu0 0.0
    %740 = vmatpush.msra.mxu0 0.0
    %741 = vmatpush.msra.mxu0 0.0
    %742 = vmatpush.msra.mxu0 0.0
    %743 = vmatpush.msra.mxu0 0.0
    %744 = vmatpush.msra.mxu0 0.0
    %745 = vmatpush.msra.mxu0 0.0
    %746 = vmatpush.msra.mxu0 0.0
    %747 = vmatpush.msra.mxu0 0.0
    %748 = vmatpush.msra.mxu0 0.0
    %749 = vmatpush.msra.mxu0 0.0
    %750 = vmatpush.msra.mxu0 0.0
    %751 = vmatpush.msra.mxu0 %v139
    %752 = vmatmul.f32.gmra.mxu0 %v734
    %v753 = vpop.f32.mrf.mxu0
    %v754 = vadd.f32 %v731, %v753
    %755 = vdwg.mxu0
    %756 = vrot.lane.b32.xlu0 %v137, 112
    %v757 = vpop.permute.xlu0 %756
    %758 = vrot.lane.b32.xlu0 %v137, 80
    %v759 = vpop.permute.xlu0 %758
    %v760 = vsel %vm146, %v757, 0
    %v762 = vsel %vm146, %v759, 0
    %764 = vmatpush.xpose.msra.mxu0 0.0
    %765 = vmatpush.xpose.msra.mxu0 0.0
    %766 = vmatpush.xpose.msra.mxu0 0.0
    %767 = vmatpush.xpose.msra.mxu0 0.0
    %768 = vmatpush.xpose.msra.mxu0 0.0
    %769 = vmatpush.xpose.msra.mxu0 0.0
    %770 = vmatpush.xpose.msra.mxu0 0.0
    %771 = vmatpush.xpose.msra.mxu0 0.0
    %772 = vmatpush.xpose.msra.mxu0 0.0
    %773 = vmatpush.xpose.msra.mxu0 0.0
    %774 = vmatpush.xpose.msra.mxu0 0.0
    %775 = vmatpush.xpose.msra.mxu0 0.0
    %776 = vmatpush.xpose.msra.mxu0 0.0
    %777 = vmatpush.xpose.msra.mxu0 0.0
    %778 = vmatpush.xpose.msra.mxu0 0.0
    %779 = vmatpush.xpose.msra.mxu0 %v762
    %780 = vmatmul.f32.gmra.mxu0 %v760
    %v781 = vpop.f32.mrf.mxu0
    %v782 = vadd.f32 0.0, %v781
    %783 = vdwg.mxu0
    %v784 = vmul.f32 %v782, 0.35355338
    %v785 = vsel %vm146, %v784, -inf
    %786 = vmax.xlane.f32.xlu0 %v785
    %v787 = vpop.xlane.xlu0 %786
    %v788 = vsub.f32 %v784, %v787
    %v789 = vmul.f32 %v788, 1.442695
    %v790 = vpow.pop %v789
    %v791 = vsel %vm146, %v790, 0.0
    %792 = vadd.xlane.f32.xlu0 %v791
    %v793 = vpop.xlane.xlu0 %792
    %v794 = vrcp.pop %v793
    %v795 = vmul.f32 %v793, %v794
    %v796 = vsub.f32 1.0, %v795
    %v797 = vmul.f32 %v794, %v796
    %v798 = vadd.f32 %v794, %v797
    %vm799 = vweird.f32 %v793
    %vm800 = vweird.f32 %v794
    %vm801 = vmor %vm799, %vm800
    %v802 = vsel %vm801, %v794, %v798
    %v803 = vand.u32 2147483647, %v793
    %vm804 = vcmp.eq.f32.partialorder %v803, 8.507059e+37
    %v805 = vand.u32 %v793, 2147483648
    %v806 = vor.u32 1.1754944e-38, %v805
    %v807 = vsel %vm804, %v806, %v802
    %v808 = vmul.f32 %v790, %v807
    %809 = vrot.lane.b32.xlu0 %v137, 48
    %v810 = vpop.permute.xlu0 %809
    %v813 = vsel %vm146, %v808, 0
    %815 = vmatpush.msra.mxu0 0.0
    %816 = vmatpush.msra.mxu0 0.0
    %817 = vmatpush.msra.mxu0 0.0
    %818 = vmatpush.msra.mxu0 0.0
    %819 = vmatpush.msra.mxu0 0.0
    %820 = vmatpush.msra.mxu0 0.0
    %821 = vmatpush.msra.mxu0 0.0
    %822 = vmatpush.msra.mxu0 0.0
    %823 = vmatpush.msra.mxu0 0.0
    %824 = vmatpush.msra.mxu0 0.0
    %825 = vmatpush.msra.mxu0 0.0
    %826 = vmatpush.msra.mxu0 0.0
    %827 = vmatpush.msra.mxu0 0.0
    %828 = vmatpush.msra.mxu0 0.0
    %829 = vmatpush.msra.mxu0 0.0
    %830 = vmatpush.msra.mxu0 %v810
    %831 = vmatmul.f32.gmra.mxu0 %v813
    %v832 = vpop.f32.mrf.mxu0
    %v833 = vadd.f32 0.0, %v832
    %834 = vdwg.mxu0
    %v836 = vsel %vm146, %v833, 0
    %838 = vmatpush.msra.mxu0 0.0
    %839 = vmatpush.msra.mxu0 0.0
    %840 = vmatpush.msra.mxu0 0.0
    %841 = vmatpush.msra.mxu0 0.0
    %842 = vmatpush.msra.mxu0 0.0
    %843 = vmatpush.msra.mxu0 0.0
    %844 = vmatpush.msra.mxu0 0.0
    %845 = vmatpush.msra.mxu0 0.0
    %846 = vmatpush.msra.mxu0 0.0
    %847 = vmatpush.msra.mxu0 0.0
    %848 = vmatpush.msra.mxu0 0.0
    %849 = vmatpush.msra.mxu0 0.0
    %850 = vmatpush.msra.mxu0 0.0
    %851 = vmatpush.msra.mxu0 0.0
    %852 = vmatpush.msra.mxu0 0.0
    %853 = vmatpush.msra.mxu0 %v141
    %854 = vmatmul.f32.gmra.mxu0 %v836
    %v855 = vpop.f32.mrf.mxu0
    %v856 = vadd.f32 0.0, %v855
    %857 = vdwg.mxu0
    %v858 = vadd.f32 %v754, %v856
    %859 = vrot.lane.b32.xlu0 %v137, 104
    %v860 = vpop.permute.xlu0 %859
    %861 = vrot.lane.b32.xlu0 %v137, 72
    %v862 = vpop.permute.xlu0 %861
    %v863 = vsel %vm146, %v860, 0
    %v865 = vsel %vm146, %v862, 0
    %867 = vmatpush.xpose.msra.mxu0 0.0
    %868 = vmatpush.xpose.msra.mxu0 0.0
    %869 = vmatpush.xpose.msra.mxu0 0.0
    %870 = vmatpush.xpose.msra.mxu0 0.0
    %871 = vmatpush.xpose.msra.mxu0 0.0
    %872 = vmatpush.xpose.msra.mxu0 0.0
    %873 = vmatpush.xpose.msra.mxu0 0.0
    %874 = vmatpush.xpose.msra.mxu0 0.0
    %875 = vmatpush.xpose.msra.mxu0 0.0
    %876 = vmatpush.xpose.msra.mxu0 0.0
    %877 = vmatpush.xpose.msra.mxu0 0.0
    %878 = vmatpush.xpose.msra.mxu0 0.0
    %879 = vmatpush.xpose.msra.mxu0 0.0
    %880 = vmatpush.xpose.msra.mxu0 0.0
    %881 = vmatpush.xpose.msra.mxu0 0.0
    %882 = vmatpush.xpose.msra.mxu0 %v865
    %883 = vmatmul.f32.gmra.mxu0 %v863
    %v884 = vpop.f32.mrf.mxu0
    %v885 = vadd.f32 0.0, %v884
    %886 = vdwg.mxu0
    %v887 = vmul.f32 %v885, 0.35355338
    %v888 = vsel %vm146, %v887, -inf
    %889 = vmax.xlane.f32.xlu0 %v888
    %v890 = vpop.xlane.xlu0 %889
    %v891 = vsub.f32 %v887, %v890
    %v892 = vmul.f32 %v891, 1.442695
    %v893 = vpow.pop %v892
    %v894 = vsel %vm146, %v893, 0.0
    %895 = vadd.xlane.f32.xlu0 %v894
    %v896 = vpop.xlane.xlu0 %895
    %v897 = vrcp.pop %v896
    %v898 = vmul.f32 %v896, %v897
    %v899 = vsub.f32 1.0, %v898
    %v900 = vmul.f32 %v897, %v899
    %v901 = vadd.f32 %v897, %v900
    %vm902 = vweird.f32 %v896
    %vm903 = vweird.f32 %v897
    %vm904 = vmor %vm902, %vm903
    %v905 = vsel %vm904, %v897, %v901
    %v906 = vand.u32 2147483647, %v896
    %vm907 = vcmp.eq.f32.partialorder %v906, 8.507059e+37
    %v908 = vand.u32 %v896, 2147483648
    %v909 = vor.u32 1.1754944e-38, %v908
    %v910 = vsel %vm907, %v909, %v905
    %v911 = vmul.f32 %v893, %v910
    %912 = vrot.lane.b32.xlu0 %v137, 40
    %v913 = vpop.permute.xlu0 %912
    %v916 = vsel %vm146, %v911, 0
    %918 = vmatpush.msra.mxu0 0.0
    %919 = vmatpush.msra.mxu0 0.0
    %920 = vmatpush.msra.mxu0 0.0
    %921 = vmatpush.msra.mxu0 0.0
    %922 = vmatpush.msra.mxu0 0.0
    %923 = vmatpush.msra.mxu0 0.0
    %924 = vmatpush.msra.mxu0 0.0
    %925 = vmatpush.msra.mxu0 0.0
    %926 = vmatpush.msra.mxu0 0.0
    %927 = vmatpush.msra.mxu0 0.0
    %928 = vmatpush.msra.mxu0 0.0
    %929 = vmatpush.msra.mxu0 0.0
    %930 = vmatpush.msra.mxu0 0.0
    %931 = vmatpush.msra.mxu0 0.0
    %932 = vmatpush.msra.mxu0 0.0
    %933 = vmatpush.msra.mxu0 %v913
    %934 = vmatmul.f32.gmra.mxu0 %v916
    %v935 = vpop.f32.mrf.mxu0
    %v936 = vadd.f32 0.0, %v935
    %937 = vdwg.mxu0
    %v939 = vsel %vm146, %v936, 0
    %941 = vmatpush.msra.mxu0 0.0
    %942 = vmatpush.msra.mxu0 0.0
    %943 = vmatpush.msra.mxu0 0.0
    %944 = vmatpush.msra.mxu0 0.0
    %945 = vmatpush.msra.mxu0 0.0
    %946 = vmatpush.msra.mxu0 0.0
    %947 = vmatpush.msra.mxu0 0.0
    %948 = vmatpush.msra.mxu0 0.0
    %949 = vmatpush.msra.mxu0 0.0
    %950 = vmatpush.msra.mxu0 0.0
    %951 = vmatpush.msra.mxu0 0.0
    %952 = vmatpush.msra.mxu0 0.0
    %953 = vmatpush.msra.mxu0 0.0
    %954 = vmatpush.msra.mxu0 0.0
    %955 = vmatpush.msra.mxu0 0.0
    %956 = vmatpush.msra.mxu0 %v142
    %957 = vmatmul.f32.gmra.mxu0 %v939
    %v958 = vpop.f32.mrf.mxu0
    %v959 = vadd.f32 0.0, %v958
    %960 = vdwg.mxu0
    %v961 = vadd.f32 %v858, %v959
    %v962 = vld [vmem:[%s7] sm:$0x1]
    %v964 = vperm.slane %v962, 0
    %v966 = vadd.f32 %v552, %v964
    %v967 = vadd.f32 %v961, %v964
    %v968 = vadd.f32 %v99, %v966
    %v969 = vadd.f32 %v100, %v967
    %v970 = vld [vmem:[%s12] sm:$0x1]
    %v971 = vld [vmem:[%s13] sm:$0x1]
    %v972 = vsel %vm109, %v968, 0.0
    %973 = vadd.xlane.f32.xlu0 %v972
    %v974 = vpop.xlane.xlu0 %973
    %v975 = vsel %vm109, %v969, 0.0
    %976 = vadd.xlane.f32.xlu0 %v975
    %v977 = vpop.xlane.xlu0 %976
    %v978 = vrcp.pop 32.0
    %v979 = vmul.f32 32.0, %v978
    %v980 = vsub.f32 1.0, %v979
    %v981 = vmul.f32 %v978, %v980
    %v982 = vadd.f32 %v978, %v981
    %vm983 = vweird.f32 %v978
    %v984 = vsel %vm983, %v978, %v982
    %v985 = vmul.f32 %v974, %v984
    %v986 = vmul.f32 %v977, %v984
    %v987 = vsub.f32 %v968, %v985
    %v988 = vsub.f32 %v969, %v986
    %v989 = vmul.f32 %v987, %v987
    %v990 = vmul.f32 %v988, %v988
    %v991 = vsel %vm109, %v989, 0.0
    %992 = vadd.xlane.f32.xlu0 %v991
    %v993 = vpop.xlane.xlu0 %992
    %v994 = vsel %vm109, %v990, 0.0
    %995 = vadd.xlane.f32.xlu0 %v994
    %v996 = vpop.xlane.xlu0 %995
    %v997 = vmul.f32 %v993, %v984
    %v998 = vmul.f32 %v996, %v984
    %v999 = vadd.f32 %v997, 1e-05
    %v1000 = vadd.f32 %v998, 1e-05
    %v1001 = vrsqrt.pop %v999
    %v1002 = vmul.f32 %v1001, %v999
    %v1003 = vmul.f32 %v1002, %v1001
    %v1004 = vmul.f32 0.5, %v1003
    %v1005 = vsub.f32 1.5, %v1004
    %v1006 = vmul.f32 %v1001, %v1005
    %vm1007 = vweird.f32 %v999
    %vm1008 = vweird.f32 %v1001
    %vm1009 = vmor %vm1007, %vm1008
    %v1010 = vsel %vm1009, %v1001, %v1006
    %v1011 = vrsqrt.pop %v1000
    %v1012 = vmul.f32 %v1011, %v1000
    %v1013 = vmul.f32 %v1012, %v1011
    %v1014 = vmul.f32 0.5, %v1013
    %v1015 = vsub.f32 1.5, %v1014
    %v1016 = vmul.f32 %v1011, %v1015
    %vm1017 = vweird.f32 %v1000
    %vm1018 = vweird.f32 %v1011
    %vm1019 = vmor %vm1017, %vm1018
    %v1020 = vsel %vm1019, %v1011, %v1016
    %v1021 = vmul.f32 %v987, %v1010
    %v1022 = vmul.f32 %v988, %v1020
    %v1024 = vperm.slane %v970, 0
    %v1026 = vmul.f32 %v1021, %v1024
    %v1027 = vmul.f32 %v1022, %v1024
    %v1029 = vperm.slane %v971, 0
    %v1031 = vadd.f32 %v1026, %v1029
    %v1032 = vadd.f32 %v1027, %v1029
    %v1033 = vld [vmem:[%s8] sm:$0xff]
    %v1034 = vld [vmem:[%s8 + $0x8] sm:$0xff]
    %v1035 = vld [vmem:[%s8 + $0x10] sm:$0xff]
    %v1036 = vld [vmem:[%s8 + $0x18] sm:$0xff]
    %v1037 = vld [vmem:[%s9] sm:$0x1]
    %v1039 = vperm.slane %v1037, 0
    %v1042 = vsel %vm109, %v1031, 0
    %v1045 = vsel %vm109, %v1032, 0
    %1047 = vmatpush.msra.mxu0 0.0
    %1048 = vmatpush.msra.mxu0 0.0
    %1049 = vmatpush.msra.mxu0 0.0
    %1050 = vmatpush.msra.mxu0 0.0
    %1051 = vmatpush.msra.mxu0 0.0
    %1052 = vmatpush.msra.mxu0 0.0
    %1053 = vmatpush.msra.mxu0 0.0
    %1054 = vmatpush.msra.mxu0 0.0
    %1055 = vmatpush.msra.mxu0 0.0
    %1056 = vmatpush.msra.mxu0 0.0
    %1057 = vmatpush.msra.mxu0 0.0
    %1058 = vmatpush.msra.mxu0 0.0
    %1059 = vmatpush.msra.mxu0 %v1036
    %1060 = vmatpush.msra.mxu0 %v1035
    %1061 = vmatpush.msra.mxu0 %v1034
    %1062 = vmatpush.msra.mxu0 %v1033
    %1063 = vmatmul.f32.gmra.mxu0 %v1042
    %v1064 = vpop.f32.mrf.mxu0
    %v1065 = vadd.f32 %v1039, %v1064
    %1066 = vmatmul.f32.gmra.mxu0 %v1045
    %v1067 = vpop.f32.mrf.mxu0
    %v1068 = vadd.f32 %v1039, %v1067
    %1069 = vdwg.mxu0
    %v1070 = vmax.f32 %v1065, 0.0
    %v1071 = vmax.f32 %v1068, 0.0
    %v1072 = vld [vmem:[%s10] sm:$0xff]
    %v1073 = vld [vmem:[%s10 + $0x8] sm:$0xff]
    %v1074 = vld [vmem:[%s10 + $0x10] sm:$0xff]
    %v1075 = vld [vmem:[%s10 + $0x18] sm:$0xff]
    %v1076 = vld [vmem:[%s10 + $0x20] sm:$0xff]
    %v1077 = vld [vmem:[%s10 + $0x28] sm:$0xff]
    %v1078 = vld [vmem:[%s10 + $0x30] sm:$0xff]
    %v1079 = vld [vmem:[%s10 + $0x38] sm:$0xff]
    %v1080 = vld [vmem:[%s11] sm:$0x1]
    %v1082 = vperm.slane %v1080, 0
    %vm1084 = vcmask 523264
    %v1086 = vsel %vm1084, %v1070, 0
    %v1089 = vsel %vm1084, %v1071, 0
    %1091 = vmatpush.msra.mxu0 0.0
    %1092 = vmatpush.msra.mxu0 0.0
    %1093 = vmatpush.msra.mxu0 0.0
    %1094 = vmatpush.msra.mxu0 0.0
    %1095 = vmatpush.msra.mxu0 0.0
    %1096 = vmatpush.msra.mxu0 0.0
    %1097 = vmatpush.msra.mxu0 0.0
    %1098 = vmatpush.msra.mxu0 0.0
    %1099 = vmatpush.msra.mxu0 %v1079
    %1100 = vmatpush.msra.mxu0 %v1078
    %1101 = vmatpush.msra.mxu0 %v1077
    %1102 = vmatpush.msra.mxu0 %v1076
    %1103 = vmatpush.msra.mxu0 %v1075
    %1104 = vmatpush.msra.mxu0 %v1074
    %1105 = vmatpush.msra.mxu0 %v1073
    %1106 = vmatpush.msra.mxu0 %v1072
    %1107 = vmatmul.f32.gmra.mxu0 %v1086
    %v1108 = vpop.f32.mrf.mxu0
    %v1109 = vadd.f32 %v1082, %v1108
    %1110 = vmatmul.f32.gmra.mxu0 %v1089
    %v1111 = vpop.f32.mrf.mxu0
    %v1112 = vadd.f32 %v1082, %v1111
    %1113 = vdwg.mxu0
    %v1114 = vadd.f32 %v1031, %v1109
    %v1115 = vadd.f32 %v1032, %v1112
    %v1116 = vld [vmem:[%s14] sm:$0x1]
    %v1117 = vld [vmem:[%s15] sm:$0x1]
    %v1118 = vsel %vm109, %v1114, 0.0
    %1119 = vadd.xlane.f32.xlu0 %v1118
    %v1120 = vpop.xlane.xlu0 %1119
    %v1121 = vsel %vm109, %v1115, 0.0
    %1122 = vadd.xlane.f32.xlu0 %v1121
    %v1123 = vpop.xlane.xlu0 %1122
    %v1124 = vmul.f32 %v1120, %v984
    %v1125 = vmul.f32 %v1123, %v984
    %v1126 = vsub.f32 %v1114, %v1124
    %v1127 = vsub.f32 %v1115, %v1125
    %v1128 = vmul.f32 %v1126, %v1126
    %v1129 = vmul.f32 %v1127, %v1127
    %v1130 = vsel %vm109, %v1128, 0.0
    %1131 = vadd.xlane.f32.xlu0 %v1130
    %v1132 = vpop.xlane.xlu0 %1131
    %v1133 = vsel %vm109, %v1129, 0.0
    %1134 = vadd.xlane.f32.xlu0 %v1133
    %v1135 = vpop.xlane.xlu0 %1134
    %v1136 = vmul.f32 %v1132, %v984
    %v1137 = vmul.f32 %v1135, %v984
    %v1138 = vadd.f32 %v1136, 1e-05
    %v1139 = vadd.f32 %v1137, 1e-05
    %v1140 = vrsqrt.pop %v1138
    %v1141 = vmul.f32 %v1140, %v1138
    %v1142 = vmul.f32 %v1141, %v1140
    %v1143 = vmul.f32 0.5, %v1142
    %v1144 = vsub.f32 1.5, %v1143
    %v1145 = vmul.f32 %v1140, %v1144
    %vm1146 = vweird.f32 %v1138
    %vm1147 = vweird.f32 %v1140
    %vm1148 = vmor %vm1146, %vm1147
    %v1149 = vsel %vm1148, %v1140, %v1145
    %v1150 = vrsqrt.pop %v1139
    %v1151 = vmul.f32 %v1150, %v1139
    %v1152 = vmul.f32 %v1151, %v1150
    %v1153 = vmul.f32 0.5, %v1152
    %v1154 = vsub.f32 1.5, %v1153
    %v1155 = vmul.f32 %v1150, %v1154
    %vm1156 = vweird.f32 %v1139
    %vm1157 = vweird.f32 %v1150
    %vm1158 = vmor %vm1156, %vm1157
    %v1159 = vsel %vm1158, %v1150, %v1155
    %v1160 = vmul.f32 %v1126, %v1149
    %v1161 = vmul.f32 %v1127, %v1159
    %v1163 = vperm.slane %v1116, 0
    %v1165 = vmul.f32 %v1160, %v1163
    %v1166 = vmul.f32 %v1161, %v1163
    %v1168 = vperm.slane %v1117, 0
    %v1170 = vadd.f32 %v1165, %v1168
    %v1171 = vadd.f32 %v1166, %v1168
    %s1172 = scalar_lea.vmem %s4, 32
    %v1173 = vld [vmem:[%s1172] sm:$0xff]
    %v1174 = vld [vmem:[%s1172 + $0x8] sm:$0xff]
    %v1175 = vld [vmem:[%s1172 + $0x10] sm:$0xff]
    %v1176 = vld [vmem:[%s1172 + $0x18] sm:$0xff]
    %s1177 = scalar_lea.vmem %s5, 1
    %v1178 = vld [vmem:[%s1177] sm:$0x1]
    %v1180 = vperm.slane %v1178, 0
    %v1183 = vsel %vm109, %v1170, 0
    %v1186 = vsel %vm109, %v1171, 0
    %1188 = vmatpush.msra.mxu0 0.0
    %1189 = vmatpush.msra.mxu0 0.0
    %1190 = vmatpush.msra.mxu0 0.0
    %1191 = vmatpush.msra.mxu0 0.0
    %1192 = vmatpush.msra.mxu0 0.0
    %1193 = vmatpush.msra.mxu0 0.0
    %1194 = vmatpush.msra.mxu0 0.0
    %1195 = vmatpush.msra.mxu0 0.0
    %1196 = vmatpush.msra.mxu0 0.0
    %1197 = vmatpush.msra.mxu0 0.0
    %1198 = vmatpush.msra.mxu0 0.0
    %1199 = vmatpush.msra.mxu0 0.0
    %1200 = vmatpush.msra.mxu0 %v1176
    %1201 = vmatpush.msra.mxu0 %v1175
    %1202 = vmatpush.msra.mxu0 %v1174
    %1203 = vmatpush.msra.mxu0 %v1173
    %1204 = vmatmul.f32.gmra.mxu0 %v1183
    %v1205 = vpop.f32.mrf.mxu0
    %v1206 = vadd.f32 %v1180, %v1205
    %1207 = vmatmul.f32.gmra.mxu0 %v1186
    %v1208 = vpop.f32.mrf.mxu0
    %v1209 = vadd.f32 %v1180, %v1208
    %1210 = vdwg.mxu0
    %s1211 = scalar_lea.vmem %s6, 32
    %v1212 = vld [vmem:[%s1211] sm:$0xff]
    %v1213 = vld [vmem:[%s1211 + $0x8] sm:$0xff]
    %v1214 = vld [vmem:[%s1211 + $0x10] sm:$0xff]
    %v1215 = vld [vmem:[%s1211 + $0x18] sm:$0xff]
    %1217 = vrot.lane.b32.xlu0 %v1206, 96
    %v1218 = vpop.permute.xlu0 %1217
    %v1219 = vsel %vm146, %v1206, 0
    %v1221 = vsel %vm146, %v1218, 0
    %1223 = vmatpush.xpose.msra.mxu0 0.0
    %1224 = vmatpush.xpose.msra.mxu0 0.0
    %1225 = vmatpush.xpose.msra.mxu0 0.0
    %1226 = vmatpush.xpose.msra.mxu0 0.0
    %1227 = vmatpush.xpose.msra.mxu0 0.0
    %1228 = vmatpush.xpose.msra.mxu0 0.0
    %1229 = vmatpush.xpose.msra.mxu0 0.0
    %1230 = vmatpush.xpose.msra.mxu0 0.0
    %1231 = vmatpush.xpose.msra.mxu0 0.0
    %1232 = vmatpush.xpose.msra.mxu0 0.0
    %1233 = vmatpush.xpose.msra.mxu0 0.0
    %1234 = vmatpush.xpose.msra.mxu0 0.0
    %1235 = vmatpush.xpose.msra.mxu0 0.0
    %1236 = vmatpush.xpose.msra.mxu0 0.0
    %1237 = vmatpush.xpose.msra.mxu0 0.0
    %1238 = vmatpush.xpose.msra.mxu0 %v1221
    %1239 = vmatmul.f32.gmra.mxu0 %v1219
    %v1240 = vpop.f32.mrf.mxu0
    %v1241 = vadd.f32 0.0, %v1240
    %1242 = vdwg.mxu0
    %v1243 = vmul.f32 %v1241, 0.35355338
    %v1244 = vsel %vm146, %v1243, -inf
    %1245 = vmax.xlane.f32.xlu0 %v1244
    %v1246 = vpop.xlane.xlu0 %1245
    %v1247 = vsub.f32 %v1243, %v1246
    %v1248 = vmul.f32 %v1247, 1.442695
    %v1249 = vpow.pop %v1248
    %v1250 = vsel %vm146, %v1249, 0.0
    %1251 = vadd.xlane.f32.xlu0 %v1250
    %v1252 = vpop.xlane.xlu0 %1251
    %v1253 = vrcp.pop %v1252
    %v1254 = vmul.f32 %v1252, %v1253
    %v1255 = vsub.f32 1.0, %v1254
    %v1256 = vmul.f32 %v1253, %v1255
    %v1257 = vadd.f32 %v1253, %v1256
    %vm1258 = vweird.f32 %v1252
    %vm1259 = vweird.f32 %v1253
    %vm1260 = vmor %vm1258, %vm1259
    %v1261 = vsel %vm1260, %v1253, %v1257
    %v1262 = vand.u32 2147483647, %v1252
    %vm1263 = vcmp.eq.f32.partialorder %v1262, 8.507059e+37
    %v1264 = vand.u32 %v1252, 2147483648
    %v1265 = vor.u32 1.1754944e-38, %v1264
    %v1266 = vsel %vm1263, %v1265, %v1261
    %v1267 = vmul.f32 %v1249, %v1266
    %1268 = vrot.lane.b32.xlu0 %v1206, 64
    %v1269 = vpop.permute.xlu0 %1268
    %v1272 = vsel %vm146, %v1267, 0
    %1274 = vmatpush.msra.mxu0 0.0
    %1275 = vmatpush.msra.mxu0 0.0
    %1276 = vmatpush.msra.mxu0 0.0
    %1277 = vmatpush.msra.mxu0 0.0
    %1278 = vmatpush.msra.mxu0 0.0
    %1279 = vmatpush.msra.mxu0 0.0
    %1280 = vmatpush.msra.mxu0 0.0
    %1281 = vmatpush.msra.mxu0 0.0
    %1282 = vmatpush.msra.mxu0 0.0
    %1283 = vmatpush.msra.mxu0 0.0
    %1284 = vmatpush.msra.mxu0 0.0
    %1285 = vmatpush.msra.mxu0 0.0
    %1286 = vmatpush.msra.mxu0 0.0
    %1287 = vmatpush.msra.mxu0 0.0
    %1288 = vmatpush.msra.mxu0 0.0
    %1289 = vmatpush.msra.mxu0 %v1269
    %1290 = vmatmul.f32.gmra.mxu0 %v1272
    %v1291 = vpop.f32.mrf.mxu0
    %v1292 = vadd.f32 0.0, %v1291
    %1293 = vdwg.mxu0
    %1294 = vrot.lane.b32.xlu0 %v1206, 120
    %v1295 = vpop.permute.xlu0 %1294
    %1296 = vrot.lane.b32.xlu0 %v1206, 88
    %v1297 = vpop.permute.xlu0 %1296
    %v1298 = vsel %vm146, %v1295, 0
    %v1300 = vsel %vm146, %v1297, 0
    %1302 = vmatpush.xpose.msra.mxu0 0.0
    %1303 = vmatpush.xpose.msra.mxu0 0.0
    %1304 = vmatpush.xpose.msra.mxu0 0.0
    %1305 = vmatpush.xpose.msra.mxu0 0.0
    %1306 = vmatpush.xpose.msra.mxu0 0.0
    %1307 = vmatpush.xpose.msra.mxu0 0.0
    %1308 = vmatpush.xpose.msra.mxu0 0.0
    %1309 = vmatpush.xpose.msra.mxu0 0.0
    %1310 = vmatpush.xpose.msra.mxu0 0.0
    %1311 = vmatpush.xpose.msra.mxu0 0.0
    %1312 = vmatpush.xpose.msra.mxu0 0.0
    %1313 = vmatpush.xpose.msra.mxu0 0.0
    %1314 = vmatpush.xpose.msra.mxu0 0.0
    %1315 = vmatpush.xpose.msra.mxu0 0.0
    %1316 = vmatpush.xpose.msra.mxu0 0.0
    %1317 = vmatpush.xpose.msra.mxu0 %v1300
    %1318 = vmatmul.f32.gmra.mxu0 %v1298
    %v1319 = vpop.f32.mrf.mxu0
    %v1320 = vadd.f32 0.0, %v1319
    %1321 = vdwg.mxu0
    %v1322 = vmul.f32 %v1320, 0.35355338
    %v1323 = vsel %vm146, %v1322, -inf
    %1324 = vmax.xlane.f32.xlu0 %v1323
    %v1325 = vpop.xlane.xlu0 %1324
    %v1326 = vsub.f32 %v1322, %v1325
    %v1327 = vmul.f32 %v1326, 1.442695
    %v1328 = vpow.pop %v1327
    %v1329 = vsel %vm146, %v1328, 0.0
    %1330 = vadd.xlane.f32.xlu0 %v1329
    %v1331 = vpop.xlane.xlu0 %1330
    %v1332 = vrcp.pop %v1331
    %v1333 = vmul.f32 %v1331, %v1332
    %v1334 = vsub.f32 1.0, %v1333
    %v1335 = vmul.f32 %v1332, %v1334
    %v1336 = vadd.f32 %v1332, %v1335
    %vm1337 = vweird.f32 %v1331
    %vm1338 = vweird.f32 %v1332
    %vm1339 = vmor %vm1337, %vm1338
    %v1340 = vsel %vm1339, %v1332, %v1336
    %v1341 = vand.u32 2147483647, %v1331
    %vm1342 = vcmp.eq.f32.partialorder %v1341, 8.507059e+37
    %v1343 = vand.u32 %v1331, 2147483648
    %v1344 = vor.u32 1.1754944e-38, %v1343
    %v1345 = vsel %vm1342, %v1344, %v1340
    %v1346 = vmul.f32 %v1328, %v1345
    %1347 = vrot.lane.b32.xlu0 %v1206, 56
    %v1348 = vpop.permute.xlu0 %1347
    %v1351 = vsel %vm146, %v1346, 0
    %1353 = vmatpush.msra.mxu0 0.0
    %1354 = vmatpush.msra.mxu0 0.0
    %1355 = vmatpush.msra.mxu0 0.0
    %1356 = vmatpush.msra.mxu0 0.0
    %1357 = vmatpush.msra.mxu0 0.0
    %1358 = vmatpush.msra.mxu0 0.0
    %1359 = vmatpush.msra.mxu0 0.0
    %1360 = vmatpush.msra.mxu0 0.0
    %1361 = vmatpush.msra.mxu0 0.0
    %1362 = vmatpush.msra.mxu0 0.0
    %1363 = vmatpush.msra.mxu0 0.0
    %1364 = vmatpush.msra.mxu0 0.0
    %1365 = vmatpush.msra.mxu0 0.0
    %1366 = vmatpush.msra.mxu0 0.0
    %1367 = vmatpush.msra.mxu0 0.0
    %1368 = vmatpush.msra.mxu0 %v1348
    %1369 = vmatmul.f32.gmra.mxu0 %v1351
    %v1370 = vpop.f32.mrf.mxu0
    %v1371 = vadd.f32 0.0, %v1370
    %1372 = vdwg.mxu0
    %v1374 = vsel %vm146, %v1371, 0
    %1376 = vmatpush.msra.mxu0 0.0
    %1377 = vmatpush.msra.mxu0 0.0
    %1378 = vmatpush.msra.mxu0 0.0
    %1379 = vmatpush.msra.mxu0 0.0
    %1380 = vmatpush.msra.mxu0 0.0
    %1381 = vmatpush.msra.mxu0 0.0
    %1382 = vmatpush.msra.mxu0 0.0
    %1383 = vmatpush.msra.mxu0 0.0
    %1384 = vmatpush.msra.mxu0 0.0
    %1385 = vmatpush.msra.mxu0 0.0
    %1386 = vmatpush.msra.mxu0 0.0
    %1387 = vmatpush.msra.mxu0 0.0
    %1388 = vmatpush.msra.mxu0 0.0
    %1389 = vmatpush.msra.mxu0 0.0
    %1390 = vmatpush.msra.mxu0 0.0
    %1391 = vmatpush.msra.mxu0 %v1213
    %1392 = vmatmul.f32.gmra.mxu0 %v1374
    %v1393 = vpop.f32.mrf.mxu0
    %v1394 = vadd.f32 0.0, %v1393
    %1395 = vdwg.mxu0
    %v1397 = vsel %vm146, %v1292, 0
    %1399 = vmatpush.msra.mxu0 0.0
    %1400 = vmatpush.msra.mxu0 0.0
    %1401 = vmatpush.msra.mxu0 0.0
    %1402 = vmatpush.msra.mxu0 0.0
    %1403 = vmatpush.msra.mxu0 0.0
    %1404 = vmatpush.msra.mxu0 0.0
    %1405 = vmatpush.msra.mxu0 0.0
    %1406 = vmatpush.msra.mxu0 0.0
    %1407 = vmatpush.msra.mxu0 0.0
    %1408 = vmatpush.msra.mxu0 0.0
    %1409 = vmatpush.msra.mxu0 0.0
    %1410 = vmatpush.msra.mxu0 0.0
    %1411 = vmatpush.msra.mxu0 0.0
    %1412 = vmatpush.msra.mxu0 0.0
    %1413 = vmatpush.msra.mxu0 0.0
    %1414 = vmatpush.msra.mxu0 %v1212
    %1415 = vmatmul.f32.gmra.mxu0 %v1397
    %v1416 = vpop.f32.mrf.mxu0
    %v1417 = vadd.f32 %v1394, %v1416
    %1418 = vdwg.mxu0
    %1419 = vrot.lane.b32.xlu0 %v1206, 112
    %v1420 = vpop.permute.xlu0 %1419
    %1421 = vrot.lane.b32.xlu0 %v1206, 80
    %v1422 = vpop.permute.xlu0 %1421
    %v1423 = vsel %vm146, %v1420, 0
    %v1425 = vsel %vm146, %v1422, 0
    %1427 = vmatpush.xpose.msra.mxu0 0.0
    %1428 = vmatpush.xpose.msra.mxu0 0.0
    %1429 = vmatpush.xpose.msra.mxu0 0.0
    %1430 = vmatpush.xpose.msra.mxu0 0.0
    %1431 = vmatpush.xpose.msra.mxu0 0.0
    %1432 = vmatpush.xpose.msra.mxu0 0.0
    %1433 = vmatpush.xpose.msra.mxu0 0.0
    %1434 = vmatpush.xpose.msra.mxu0 0.0
    %1435 = vmatpush.xpose.msra.mxu0 0.0
    %1436 = vmatpush.xpose.msra.mxu0 0.0
    %1437 = vmatpush.xpose.msra.mxu0 0.0
    %1438 = vmatpush.xpose.msra.mxu0 0.0
    %1439 = vmatpush.xpose.msra.mxu0 0.0
    %1440 = vmatpush.xpose.msra.mxu0 0.0
    %1441 = vmatpush.xpose.msra.mxu0 0.0
    %1442 = vmatpush.xpose.msra.mxu0 %v1425
    %1443 = vmatmul.f32.gmra.mxu0 %v1423
    %v1444 = vpop.f32.mrf.mxu0
    %v1445 = vadd.f32 0.0, %v1444
    %1446 = vdwg.mxu0
    %v1447 = vmul.f32 %v1445, 0.35355338
    %v1448 = vsel %vm146, %v1447, -inf
    %1449 = vmax.xlane.f32.xlu0 %v1448
    %v1450 = vpop.xlane.xlu0 %1449
    %v1451 = vsub.f32 %v1447, %v1450
    %v1452 = vmul.f32 %v1451, 1.442695
    %v1453 = vpow.pop %v1452
    %v1454 = vsel %vm146, %v1453, 0.0
    %1455 = vadd.xlane.f32.xlu0 %v1454
    %v1456 = vpop.xlane.xlu0 %1455
    %v1457 = vrcp.pop %v1456
    %v1458 = vmul.f32 %v1456, %v1457
    %v1459 = vsub.f32 1.0, %v1458
    %v1460 = vmul.f32 %v1457, %v1459
    %v1461 = vadd.f32 %v1457, %v1460
    %vm1462 = vweird.f32 %v1456
    %vm1463 = vweird.f32 %v1457
    %vm1464 = vmor %vm1462, %vm1463
    %v1465 = vsel %vm1464, %v1457, %v1461
    %v1466 = vand.u32 2147483647, %v1456
    %vm1467 = vcmp.eq.f32.partialorder %v1466, 8.507059e+37
    %v1468 = vand.u32 %v1456, 2147483648
    %v1469 = vor.u32 1.1754944e-38, %v1468
    %v1470 = vsel %vm1467, %v1469, %v1465
    %v1471 = vmul.f32 %v1453, %v1470
    %1472 = vrot.lane.b32.xlu0 %v1206, 48
    %v1473 = vpop.permute.xlu0 %1472
    %v1476 = vsel %vm146, %v1471, 0
    %1478 = vmatpush.msra.mxu0 0.0
    %1479 = vmatpush.msra.mxu0 0.0
    %1480 = vmatpush.msra.mxu0 0.0
    %1481 = vmatpush.msra.mxu0 0.0
    %1482 = vmatpush.msra.mxu0 0.0
    %1483 = vmatpush.msra.mxu0 0.0
    %1484 = vmatpush.msra.mxu0 0.0
    %1485 = vmatpush.msra.mxu0 0.0
    %1486 = vmatpush.msra.mxu0 0.0
    %1487 = vmatpush.msra.mxu0 0.0
    %1488 = vmatpush.msra.mxu0 0.0
    %1489 = vmatpush.msra.mxu0 0.0
    %1490 = vmatpush.msra.mxu0 0.0
    %1491 = vmatpush.msra.mxu0 0.0
    %1492 = vmatpush.msra.mxu0 0.0
    %1493 = vmatpush.msra.mxu0 %v1473
    %1494 = vmatmul.f32.gmra.mxu0 %v1476
    %v1495 = vpop.f32.mrf.mxu0
    %v1496 = vadd.f32 0.0, %v1495
    %1497 = vdwg.mxu0
    %v1499 = vsel %vm146, %v1496, 0
    %1501 = vmatpush.msra.mxu0 0.0
    %1502 = vmatpush.msra.mxu0 0.0
    %1503 = vmatpush.msra.mxu0 0.0
    %1504 = vmatpush.msra.mxu0 0.0
    %1505 = vmatpush.msra.mxu0 0.0
    %1506 = vmatpush.msra.mxu0 0.0
    %1507 = vmatpush.msra.mxu0 0.0
    %1508 = vmatpush.msra.mxu0 0.0
    %1509 = vmatpush.msra.mxu0 0.0
    %1510 = vmatpush.msra.mxu0 0.0
    %1511 = vmatpush.msra.mxu0 0.0
    %1512 = vmatpush.msra.mxu0 0.0
    %1513 = vmatpush.msra.mxu0 0.0
    %1514 = vmatpush.msra.mxu0 0.0
    %1515 = vmatpush.msra.mxu0 0.0
    %1516 = vmatpush.msra.mxu0 %v1214
    %1517 = vmatmul.f32.gmra.mxu0 %v1499
    %v1518 = vpop.f32.mrf.mxu0
    %v1519 = vadd.f32 0.0, %v1518
    %1520 = vdwg.mxu0
    %v1521 = vadd.f32 %v1417, %v1519
    %1522 = vrot.lane.b32.xlu0 %v1206, 104
    %v1523 = vpop.permute.xlu0 %1522
    %1524 = vrot.lane.b32.xlu0 %v1206, 72
    %v1525 = vpop.permute.xlu0 %1524
    %v1526 = vsel %vm146, %v1523, 0
    %v1528 = vsel %vm146, %v1525, 0
    %1530 = vmatpush.xpose.msra.mxu0 0.0
    %1531 = vmatpush.xpose.msra.mxu0 0.0
    %1532 = vmatpush.xpose.msra.mxu0 0.0
    %1533 = vmatpush.xpose.msra.mxu0 0.0
    %1534 = vmatpush.xpose.msra.mxu0 0.0
    %1535 = vmatpush.xpose.msra.mxu0 0.0
    %1536 = vmatpush.xpose.msra.mxu0 0.0
    %1537 = vmatpush.xpose.msra.mxu0 0.0
    %1538 = vmatpush.xpose.msra.mxu0 0.0
    %1539 = vmatpush.xpose.msra.mxu0 0.0
    %1540 = vmatpush.xpose.msra.mxu0 0.0
    %1541 = vmatpush.xpose.msra.mxu0 0.0
    %1542 = vmatpush.xpose.msra.mxu0 0.0
    %1543 = vmatpush.xpose.msra.mxu0 0.0
    %1544 = vmatpush.xpose.msra.mxu0 0.0
    %1545 = vmatpush.xpose.msra.mxu0 %v1528
    %1546 = vmatmul.f32.gmra.mxu0 %v1526
    %v1547 = vpop.f32.mrf.mxu0
    %v1548 = vadd.f32 0.0, %v1547
    %1549 = vdwg.mxu0
    %v1550 = vmul.f32 %v1548, 0.35355338
    %v1551 = vsel %vm146, %v1550, -inf
    %1552 = vmax.xlane.f32.xlu0 %v1551
    %v1553 = vpop.xlane.xlu0 %1552
    %v1554 = vsub.f32 %v1550, %v1553
    %v1555 = vmul.f32 %v1554, 1.442695
    %v1556 = vpow.pop %v1555
    %v1557 = vsel %vm146, %v1556, 0.0
    %1558 = vadd.xlane.f32.xlu0 %v1557
    %v1559 = vpop.xlane.xlu0 %1558
    %v1560 = vrcp.pop %v1559
    %v1561 = vmul.f32 %v1559, %v1560
    %v1562 = vsub.f32 1.0, %v1561
    %v1563 = vmul.f32 %v1560, %v1562
    %v1564 = vadd.f32 %v1560, %v1563
    %vm1565 = vweird.f32 %v1559
    %vm1566 = vweird.f32 %v1560
    %vm1567 = vmor %vm1565, %vm1566
    %v1568 = vsel %vm1567, %v1560, %v1564
    %v1569 = vand.u32 2147483647, %v1559
    %vm1570 = vcmp.eq.f32.partialorder %v1569, 8.507059e+37
    %v1571 = vand.u32 %v1559, 2147483648
    %v1572 = vor.u32 1.1754944e-38, %v1571
    %v1573 = vsel %vm1570, %v1572, %v1568
    %v1574 = vmul.f32 %v1556, %v1573
    %1575 = vrot.lane.b32.xlu0 %v1206, 40
    %v1576 = vpop.permute.xlu0 %1575
    %v1579 = vsel %vm146, %v1574, 0
    %1581 = vmatpush.msra.mxu0 0.0
    %1582 = vmatpush.msra.mxu0 0.0
    %1583 = vmatpush.msra.mxu0 0.0
    %1584 = vmatpush.msra.mxu0 0.0
    %1585 = vmatpush.msra.mxu0 0.0
    %1586 = vmatpush.msra.mxu0 0.0
    %1587 = vmatpush.msra.mxu0 0.0
    %1588 = vmatpush.msra.mxu0 0.0
    %1589 = vmatpush.msra.mxu0 0.0
    %1590 = vmatpush.msra.mxu0 0.0
    %1591 = vmatpush.msra.mxu0 0.0
    %1592 = vmatpush.msra.mxu0 0.0
    %1593 = vmatpush.msra.mxu0 0.0
    %1594 = vmatpush.msra.mxu0 0.0
    %1595 = vmatpush.msra.mxu0 0.0
    %1596 = vmatpush.msra.mxu0 %v1576
    %1597 = vmatmul.f32.gmra.mxu0 %v1579
    %v1598 = vpop.f32.mrf.mxu0
    %v1599 = vadd.f32 0.0, %v1598
    %1600 = vdwg.mxu0
    %v1602 = vsel %vm146, %v1599, 0
    %1604 = vmatpush.msra.mxu0 0.0
    %1605 = vmatpush.msra.mxu0 0.0
    %1606 = vmatpush.msra.mxu0 0.0
    %1607 = vmatpush.msra.mxu0 0.0
    %1608 = vmatpush.msra.mxu0 0.0
    %1609 = vmatpush.msra.mxu0 0.0
    %1610 = vmatpush.msra.mxu0 0.0
    %1611 = vmatpush.msra.mxu0 0.0
    %1612 = vmatpush.msra.mxu0 0.0
    %1613 = vmatpush.msra.mxu0 0.0
    %1614 = vmatpush.msra.mxu0 0.0
    %1615 = vmatpush.msra.mxu0 0.0
    %1616 = vmatpush.msra.mxu0 0.0
    %1617 = vmatpush.msra.mxu0 0.0
    %1618 = vmatpush.msra.mxu0 0.0
    %1619 = vmatpush.msra.mxu0 %v1215
    %1620 = vmatmul.f32.gmra.mxu0 %v1602
    %v1621 = vpop.f32.mrf.mxu0
    %v1622 = vadd.f32 0.0, %v1621
    %1623 = vdwg.mxu0
    %v1624 = vadd.f32 %v1521, %v1622
    %1626 = vrot.lane.b32.xlu0 %v1209, 96
    %v1627 = vpop.permute.xlu0 %1626
    %v1628 = vsel %vm146, %v1209, 0
    %v1630 = vsel %vm146, %v1627, 0
    %1632 = vmatpush.xpose.msra.mxu0 0.0
    %1633 = vmatpush.xpose.msra.mxu0 0.0
    %1634 = vmatpush.xpose.msra.mxu0 0.0
    %1635 = vmatpush.xpose.msra.mxu0 0.0
    %1636 = vmatpush.xpose.msra.mxu0 0.0
    %1637 = vmatpush.xpose.msra.mxu0 0.0
    %1638 = vmatpush.xpose.msra.mxu0 0.0
    %1639 = vmatpush.xpose.msra.mxu0 0.0
    %1640 = vmatpush.xpose.msra.mxu0 0.0
    %1641 = vmatpush.xpose.msra.mxu0 0.0
    %1642 = vmatpush.xpose.msra.mxu0 0.0
    %1643 = vmatpush.xpose.msra.mxu0 0.0
    %1644 = vmatpush.xpose.msra.mxu0 0.0
    %1645 = vmatpush.xpose.msra.mxu0 0.0
    %1646 = vmatpush.xpose.msra.mxu0 0.0
    %1647 = vmatpush.xpose.msra.mxu0 %v1630
    %1648 = vmatmul.f32.gmra.mxu0 %v1628
    %v1649 = vpop.f32.mrf.mxu0
    %v1650 = vadd.f32 0.0, %v1649
    %1651 = vdwg.mxu0
    %v1652 = vmul.f32 %v1650, 0.35355338
    %v1653 = vsel %vm146, %v1652, -inf
    %1654 = vmax.xlane.f32.xlu0 %v1653
    %v1655 = vpop.xlane.xlu0 %1654
    %v1656 = vsub.f32 %v1652, %v1655
    %v1657 = vmul.f32 %v1656, 1.442695
    %v1658 = vpow.pop %v1657
    %v1659 = vsel %vm146, %v1658, 0.0
    %1660 = vadd.xlane.f32.xlu0 %v1659
    %v1661 = vpop.xlane.xlu0 %1660
    %v1662 = vrcp.pop %v1661
    %v1663 = vmul.f32 %v1661, %v1662
    %v1664 = vsub.f32 1.0, %v1663
    %v1665 = vmul.f32 %v1662, %v1664
    %v1666 = vadd.f32 %v1662, %v1665
    %vm1667 = vweird.f32 %v1661
    %vm1668 = vweird.f32 %v1662
    %vm1669 = vmor %vm1667, %vm1668
    %v1670 = vsel %vm1669, %v1662, %v1666
    %v1671 = vand.u32 2147483647, %v1661
    %vm1672 = vcmp.eq.f32.partialorder %v1671, 8.507059e+37
    %v1673 = vand.u32 %v1661, 2147483648
    %v1674 = vor.u32 1.1754944e-38, %v1673
    %v1675 = vsel %vm1672, %v1674, %v1670
    %v1676 = vmul.f32 %v1658, %v1675
    %1677 = vrot.lane.b32.xlu0 %v1209, 64
    %v1678 = vpop.permute.xlu0 %1677
    %v1681 = vsel %vm146, %v1676, 0
    %1683 = vmatpush.msra.mxu0 0.0
    %1684 = vmatpush.msra.mxu0 0.0
    %1685 = vmatpush.msra.mxu0 0.0
    %1686 = vmatpush.msra.mxu0 0.0
    %1687 = vmatpush.msra.mxu0 0.0
    %1688 = vmatpush.msra.mxu0 0.0
    %1689 = vmatpush.msra.mxu0 0.0
    %1690 = vmatpush.msra.mxu0 0.0
    %1691 = vmatpush.msra.mxu0 0.0
    %1692 = vmatpush.msra.mxu0 0.0
    %1693 = vmatpush.msra.mxu0 0.0
    %1694 = vmatpush.msra.mxu0 0.0
    %1695 = vmatpush.msra.mxu0 0.0
    %1696 = vmatpush.msra.mxu0 0.0
    %1697 = vmatpush.msra.mxu0 0.0
    %1698 = vmatpush.msra.mxu0 %v1678
    %1699 = vmatmul.f32.gmra.mxu0 %v1681
    %v1700 = vpop.f32.mrf.mxu0
    %v1701 = vadd.f32 0.0, %v1700
    %1702 = vdwg.mxu0
    %1703 = vrot.lane.b32.xlu0 %v1209, 120
    %v1704 = vpop.permute.xlu0 %1703
    %1705 = vrot.lane.b32.xlu0 %v1209, 88
    %v1706 = vpop.permute.xlu0 %1705
    %v1707 = vsel %vm146, %v1704, 0
    %v1709 = vsel %vm146, %v1706, 0
    %1711 = vmatpush.xpose.msra.mxu0 0.0
    %1712 = vmatpush.xpose.msra.mxu0 0.0
    %1713 = vmatpush.xpose.msra.mxu0 0.0
    %1714 = vmatpush.xpose.msra.mxu0 0.0
    %1715 = vmatpush.xpose.msra.mxu0 0.0
    %1716 = vmatpush.xpose.msra.mxu0 0.0
    %1717 = vmatpush.xpose.msra.mxu0 0.0
    %1718 = vmatpush.xpose.msra.mxu0 0.0
    %1719 = vmatpush.xpose.msra.mxu0 0.0
    %1720 = vmatpush.xpose.msra.mxu0 0.0
    %1721 = vmatpush.xpose.msra.mxu0 0.0
    %1722 = vmatpush.xpose.msra.mxu0 0.0
    %1723 = vmatpush.xpose.msra.mxu0 0.0
    %1724 = vmatpush.xpose.msra.mxu0 0.0
    %1725 = vmatpush.xpose.msra.mxu0 0.0
    %1726 = vmatpush.xpose.msra.mxu0 %v1709
    %1727 = vmatmul.f32.gmra.mxu0 %v1707
    %v1728 = vpop.f32.mrf.mxu0
    %v1729 = vadd.f32 0.0, %v1728
    %1730 = vdwg.mxu0
    %v1731 = vmul.f32 %v1729, 0.35355338
    %v1732 = vsel %vm146, %v1731, -inf
    %1733 = vmax.xlane.f32.xlu0 %v1732
    %v1734 = vpop.xlane.xlu0 %1733
    %v1735 = vsub.f32 %v1731, %v1734
    %v1736 = vmul.f32 %v1735, 1.442695
    %v1737 = vpow.pop %v1736
    %v1738 = vsel %vm146, %v1737, 0.0
    %1739 = vadd.xlane.f32.xlu0 %v1738
    %v1740 = vpop.xlane.xlu0 %1739
    %v1741 = vrcp.pop %v1740
    %v1742 = vmul.f32 %v1740, %v1741
    %v1743 = vsub.f32 1.0, %v1742
    %v1744 = vmul.f32 %v1741, %v1743
    %v1745 = vadd.f32 %v1741, %v1744
    %vm1746 = vweird.f32 %v1740
    %vm1747 = vweird.f32 %v1741
    %vm1748 = vmor %vm1746, %vm1747
    %v1749 = vsel %vm1748, %v1741, %v1745
    %v1750 = vand.u32 2147483647, %v1740
    %vm1751 = vcmp.eq.f32.partialorder %v1750, 8.507059e+37
    %v1752 = vand.u32 %v1740, 2147483648
    %v1753 = vor.u32 1.1754944e-38, %v1752
    %v1754 = vsel %vm1751, %v1753, %v1749
    %v1755 = vmul.f32 %v1737, %v1754
    %1756 = vrot.lane.b32.xlu0 %v1209, 56
    %v1757 = vpop.permute.xlu0 %1756
    %v1760 = vsel %vm146, %v1755, 0
    %1762 = vmatpush.msra.mxu0 0.0
    %1763 = vmatpush.msra.mxu0 0.0
    %1764 = vmatpush.msra.mxu0 0.0
    %1765 = vmatpush.msra.mxu0 0.0
    %1766 = vmatpush.msra.mxu0 0.0
    %1767 = vmatpush.msra.mxu0 0.0
    %1768 = vmatpush.msra.mxu0 0.0
    %1769 = vmatpush.msra.mxu0 0.0
    %1770 = vmatpush.msra.mxu0 0.0
    %1771 = vmatpush.msra.mxu0 0.0
    %1772 = vmatpush.msra.mxu0 0.0
    %1773 = vmatpush.msra.mxu0 0.0
    %1774 = vmatpush.msra.mxu0 0.0
    %1775 = vmatpush.msra.mxu0 0.0
    %1776 = vmatpush.msra.mxu0 0.0
    %1777 = vmatpush.msra.mxu0 %v1757
    %1778 = vmatmul.f32.gmra.mxu0 %v1760
    %v1779 = vpop.f32.mrf.mxu0
    %v1780 = vadd.f32 0.0, %v1779
    %1781 = vdwg.mxu0
    %v1783 = vsel %vm146, %v1780, 0
    %1785 = vmatpush.msra.mxu0 0.0
    %1786 = vmatpush.msra.mxu0 0.0
    %1787 = vmatpush.msra.mxu0 0.0
    %1788 = vmatpush.msra.mxu0 0.0
    %1789 = vmatpush.msra.mxu0 0.0
    %1790 = vmatpush.msra.mxu0 0.0
    %1791 = vmatpush.msra.mxu0 0.0
    %1792 = vmatpush.msra.mxu0 0.0
    %1793 = vmatpush.msra.mxu0 0.0
    %1794 = vmatpush.msra.mxu0 0.0
    %1795 = vmatpush.msra.mxu0 0.0
    %1796 = vmatpush.msra.mxu0 0.0
    %1797 = vmatpush.msra.mxu0 0.0
    %1798 = vmatpush.msra.mxu0 0.0
    %1799 = vmatpush.msra.mxu0 0.0
    %1800 = vmatpush.msra.mxu0 %v1213
    %1801 = vmatmul.f32.gmra.mxu0 %v1783
    %v1802 = vpop.f32.mrf.mxu0
    %v1803 = vadd.f32 0.0, %v1802
    %1804 = vdwg.mxu0
    %v1806 = vsel %vm146, %v1701, 0
    %1808 = vmatpush.msra.mxu0 0.0
    %1809 = vmatpush.msra.mxu0 0.0
    %1810 = vmatpush.msra.mxu0 0.0
    %1811 = vmatpush.msra.mxu0 0.0
    %1812 = vmatpush.msra.mxu0 0.0
    %1813 = vmatpush.msra.mxu0 0.0
    %1814 = vmatpush.msra.mxu0 0.0
    %1815 = vmatpush.msra.mxu0 0.0
    %1816 = vmatpush.msra.mxu0 0.0
    %1817 = vmatpush.msra.mxu0 0.0
    %1818 = vmatpush.msra.mxu0 0.0
    %1819 = vmatpush.msra.mxu0 0.0
    %1820 = vmatpush.msra.mxu0 0.0
    %1821 = vmatpush.msra.mxu0 0.0
    %1822 = vmatpush.msra.mxu0 0.0
    %1823 = vmatpush.msra.mxu0 %v1212
    %1824 = vmatmul.f32.gmra.mxu0 %v1806
    %v1825 = vpop.f32.mrf.mxu0
    %v1826 = vadd.f32 %v1803, %v1825
    %1827 = vdwg.mxu0
    %1828 = vrot.lane.b32.xlu0 %v1209, 112
    %v1829 = vpop.permute.xlu0 %1828
    %1830 = vrot.lane.b32.xlu0 %v1209, 80
    %v1831 = vpop.permute.xlu0 %1830
    %v1832 = vsel %vm146, %v1829, 0
    %v1834 = vsel %vm146, %v1831, 0
    %1836 = vmatpush.xpose.msra.mxu0 0.0
    %1837 = vmatpush.xpose.msra.mxu0 0.0
    %1838 = vmatpush.xpose.msra.mxu0 0.0
    %1839 = vmatpush.xpose.msra.mxu0 0.0
    %1840 = vmatpush.xpose.msra.mxu0 0.0
    %1841 = vmatpush.xpose.msra.mxu0 0.0
    %1842 = vmatpush.xpose.msra.mxu0 0.0
    %1843 = vmatpush.xpose.msra.mxu0 0.0
    %1844 = vmatpush.xpose.msra.mxu0 0.0
    %1845 = vmatpush.xpose.msra.mxu0 0.0
    %1846 = vmatpush.xpose.msra.mxu0 0.0
    %1847 = vmatpush.xpose.msra.mxu0 0.0
    %1848 = vmatpush.xpose.msra.mxu0 0.0
    %1849 = vmatpush.xpose.msra.mxu0 0.0
    %1850 = vmatpush.xpose.msra.mxu0 0.0
    %1851 = vmatpush.xpose.msra.mxu0 %v1834
    %1852 = vmatmul.f32.gmra.mxu0 %v1832
    %v1853 = vpop.f32.mrf.mxu0
    %v1854 = vadd.f32 0.0, %v1853
    %1855 = vdwg.mxu0
    %v1856 = vmul.f32 %v1854, 0.35355338
    %v1857 = vsel %vm146, %v1856, -inf
    %1858 = vmax.xlane.f32.xlu0 %v1857
    %v1859 = vpop.xlane.xlu0 %1858
    %v1860 = vsub.f32 %v1856, %v1859
    %v1861 = vmul.f32 %v1860, 1.442695
    %v1862 = vpow.pop %v1861
    %v1863 = vsel %vm146, %v1862, 0.0
    %1864 = vadd.xlane.f32.xlu0 %v1863
    %v1865 = vpop.xlane.xlu0 %1864
    %v1866 = vrcp.pop %v1865
    %v1867 = vmul.f32 %v1865, %v1866
    %v1868 = vsub.f32 1.0, %v1867
    %v1869 = vmul.f32 %v1866, %v1868
    %v1870 = vadd.f32 %v1866, %v1869
    %vm1871 = vweird.f32 %v1865
    %vm1872 = vweird.f32 %v1866
    %vm1873 = vmor %vm1871, %vm1872
    %v1874 = vsel %vm1873, %v1866, %v1870
    %v1875 = vand.u32 2147483647, %v1865
    %vm1876 = vcmp.eq.f32.partialorder %v1875, 8.507059e+37
    %v1877 = vand.u32 %v1865, 2147483648
    %v1878 = vor.u32 1.1754944e-38, %v1877
    %v1879 = vsel %vm1876, %v1878, %v1874
    %v1880 = vmul.f32 %v1862, %v1879
    %1881 = vrot.lane.b32.xlu0 %v1209, 48
    %v1882 = vpop.permute.xlu0 %1881
    %v1885 = vsel %vm146, %v1880, 0
    %1887 = vmatpush.msra.mxu0 0.0
    %1888 = vmatpush.msra.mxu0 0.0
    %1889 = vmatpush.msra.mxu0 0.0
    %1890 = vmatpush.msra.mxu0 0.0
    %1891 = vmatpush.msra.mxu0 0.0
    %1892 = vmatpush.msra.mxu0 0.0
    %1893 = vmatpush.msra.mxu0 0.0
    %1894 = vmatpush.msra.mxu0 0.0
    %1895 = vmatpush.msra.mxu0 0.0
    %1896 = vmatpush.msra.mxu0 0.0
    %1897 = vmatpush.msra.mxu0 0.0
    %1898 = vmatpush.msra.mxu0 0.0
    %1899 = vmatpush.msra.mxu0 0.0
    %1900 = vmatpush.msra.mxu0 0.0
    %1901 = vmatpush.msra.mxu0 0.0
    %1902 = vmatpush.msra.mxu0 %v1882
    %1903 = vmatmul.f32.gmra.mxu0 %v1885
    %v1904 = vpop.f32.mrf.mxu0
    %v1905 = vadd.f32 0.0, %v1904
    %1906 = vdwg.mxu0
    %v1908 = vsel %vm146, %v1905, 0
    %1910 = vmatpush.msra.mxu0 0.0
    %1911 = vmatpush.msra.mxu0 0.0
    %1912 = vmatpush.msra.mxu0 0.0
    %1913 = vmatpush.msra.mxu0 0.0
    %1914 = vmatpush.msra.mxu0 0.0
    %1915 = vmatpush.msra.mxu0 0.0
    %1916 = vmatpush.msra.mxu0 0.0
    %1917 = vmatpush.msra.mxu0 0.0
    %1918 = vmatpush.msra.mxu0 0.0
    %1919 = vmatpush.msra.mxu0 0.0
    %1920 = vmatpush.msra.mxu0 0.0
    %1921 = vmatpush.msra.mxu0 0.0
    %1922 = vmatpush.msra.mxu0 0.0
    %1923 = vmatpush.msra.mxu0 0.0
    %1924 = vmatpush.msra.mxu0 0.0
    %1925 = vmatpush.msra.mxu0 %v1214
    %1926 = vmatmul.f32.gmra.mxu0 %v1908
    %v1927 = vpop.f32.mrf.mxu0
    %v1928 = vadd.f32 0.0, %v1927
    %1929 = vdwg.mxu0
    %v1930 = vadd.f32 %v1826, %v1928
    %1931 = vrot.lane.b32.xlu0 %v1209, 104
    %v1932 = vpop.permute.xlu0 %1931
    %1933 = vrot.lane.b32.xlu0 %v1209, 72
    %v1934 = vpop.permute.xlu0 %1933
    %v1935 = vsel %vm146, %v1932, 0
    %v1937 = vsel %vm146, %v1934, 0
    %1939 = vmatpush.xpose.msra.mxu0 0.0
    %1940 = vmatpush.xpose.msra.mxu0 0.0
    %1941 = vmatpush.xpose.msra.mxu0 0.0
    %1942 = vmatpush.xpose.msra.mxu0 0.0
    %1943 = vmatpush.xpose.msra.mxu0 0.0
    %1944 = vmatpush.xpose.msra.mxu0 0.0
    %1945 = vmatpush.xpose.msra.mxu0 0.0
    %1946 = vmatpush.xpose.msra.mxu0 0.0
    %1947 = vmatpush.xpose.msra.mxu0 0.0
    %1948 = vmatpush.xpose.msra.mxu0 0.0
    %1949 = vmatpush.xpose.msra.mxu0 0.0
    %1950 = vmatpush.xpose.msra.mxu0 0.0
    %1951 = vmatpush.xpose.msra.mxu0 0.0
    %1952 = vmatpush.xpose.msra.mxu0 0.0
    %1953 = vmatpush.xpose.msra.mxu0 0.0
    %1954 = vmatpush.xpose.msra.mxu0 %v1937
    %1955 = vmatmul.f32.gmra.mxu0 %v1935
    %v1956 = vpop.f32.mrf.mxu0
    %v1957 = vadd.f32 0.0, %v1956
    %1958 = vdwg.mxu0
    %v1959 = vmul.f32 %v1957, 0.35355338
    %v1960 = vsel %vm146, %v1959, -inf
    %1961 = vmax.xlane.f32.xlu0 %v1960
    %v1962 = vpop.xlane.xlu0 %1961
    %v1963 = vsub.f32 %v1959, %v1962
    %v1964 = vmul.f32 %v1963, 1.442695
    %v1965 = vpow.pop %v1964
    %v1966 = vsel %vm146, %v1965, 0.0
    %1967 = vadd.xlane.f32.xlu0 %v1966
    %v1968 = vpop.xlane.xlu0 %1967
    %v1969 = vrcp.pop %v1968
    %v1970 = vmul.f32 %v1968, %v1969
    %v1971 = vsub.f32 1.0, %v1970
    %v1972 = vmul.f32 %v1969, %v1971
    %v1973 = vadd.f32 %v1969, %v1972
    %vm1974 = vweird.f32 %v1968
    %vm1975 = vweird.f32 %v1969
    %vm1976 = vmor %vm1974, %vm1975
    %v1977 = vsel %vm1976, %v1969, %v1973
    %v1978 = vand.u32 2147483647, %v1968
    %vm1979 = vcmp.eq.f32.partialorder %v1978, 8.507059e+37
    %v1980 = vand.u32 %v1968, 2147483648
    %v1981 = vor.u32 1.1754944e-38, %v1980
    %v1982 = vsel %vm1979, %v1981, %v1977
    %v1983 = vmul.f32 %v1965, %v1982
    %1984 = vrot.lane.b32.xlu0 %v1209, 40
    %v1985 = vpop.permute.xlu0 %1984
    %v1988 = vsel %vm146, %v1983, 0
    %1990 = vmatpush.msra.mxu0 0.0
    %1991 = vmatpush.msra.mxu0 0.0
    %1992 = vmatpush.msra.mxu0 0.0
    %1993 = vmatpush.msra.mxu0 0.0
    %1994 = vmatpush.msra.mxu0 0.0
    %1995 = vmatpush.msra.mxu0 0.0
    %1996 = vmatpush.msra.mxu0 0.0
    %1997 = vmatpush.msra.mxu0 0.0
    %1998 = vmatpush.msra.mxu0 0.0
    %1999 = vmatpush.msra.mxu0 0.0
    %2000 = vmatpush.msra.mxu0 0.0
    %2001 = vmatpush.msra.mxu0 0.0
    %2002 = vmatpush.msra.mxu0 0.0
    %2003 = vmatpush.msra.mxu0 0.0
    %2004 = vmatpush.msra.mxu0 0.0
    %2005 = vmatpush.msra.mxu0 %v1985
    %2006 = vmatmul.f32.gmra.mxu0 %v1988
    %v2007 = vpop.f32.mrf.mxu0
    %v2008 = vadd.f32 0.0, %v2007
    %2009 = vdwg.mxu0
    %v2011 = vsel %vm146, %v2008, 0
    %2013 = vmatpush.msra.mxu0 0.0
    %2014 = vmatpush.msra.mxu0 0.0
    %2015 = vmatpush.msra.mxu0 0.0
    %2016 = vmatpush.msra.mxu0 0.0
    %2017 = vmatpush.msra.mxu0 0.0
    %2018 = vmatpush.msra.mxu0 0.0
    %2019 = vmatpush.msra.mxu0 0.0
    %2020 = vmatpush.msra.mxu0 0.0
    %2021 = vmatpush.msra.mxu0 0.0
    %2022 = vmatpush.msra.mxu0 0.0
    %2023 = vmatpush.msra.mxu0 0.0
    %2024 = vmatpush.msra.mxu0 0.0
    %2025 = vmatpush.msra.mxu0 0.0
    %2026 = vmatpush.msra.mxu0 0.0
    %2027 = vmatpush.msra.mxu0 0.0
    %2028 = vmatpush.msra.mxu0 %v1215
    %2029 = vmatmul.f32.gmra.mxu0 %v2011
    %v2030 = vpop.f32.mrf.mxu0
    %v2031 = vadd.f32 0.0, %v2030
    %2032 = vdwg.mxu0
    %v2033 = vadd.f32 %v1930, %v2031
    %s2034 = scalar_lea.vmem %s7, 1
    %v2035 = vld [vmem:[%s2034] sm:$0x1]
    %v2037 = vperm.slane %v2035, 0
    %v2039 = vadd.f32 %v1624, %v2037
    %v2040 = vadd.f32 %v2033, %v2037
    %v2041 = vadd.f32 %v1170, %v2039
    %v2042 = vadd.f32 %v1171, %v2040
    %s2043 = scalar_lea.vmem %s12, 1
    %v2044 = vld [vmem:[%s2043] sm:$0x1]
    %s2045 = scalar_lea.vmem %s13, 1
    %v2046 = vld [vmem:[%s2045] sm:$0x1]
    %v2047 = vsel %vm109, %v2041, 0.0
    %2048 = vadd.xlane.f32.xlu0 %v2047
    %v2049 = vpop.xlane.xlu0 %2048
    %v2050 = vsel %vm109, %v2042, 0.0
    %2051 = vadd.xlane.f32.xlu0 %v2050
    %v2052 = vpop.xlane.xlu0 %2051
    %v2053 = vmul.f32 %v2049, %v984
    %v2054 = vmul.f32 %v2052, %v984
    %v2055 = vsub.f32 %v2041, %v2053
    %v2056 = vsub.f32 %v2042, %v2054
    %v2057 = vmul.f32 %v2055, %v2055
    %v2058 = vmul.f32 %v2056, %v2056
    %v2059 = vsel %vm109, %v2057, 0.0
    %2060 = vadd.xlane.f32.xlu0 %v2059
    %v2061 = vpop.xlane.xlu0 %2060
    %v2062 = vsel %vm109, %v2058, 0.0
    %2063 = vadd.xlane.f32.xlu0 %v2062
    %v2064 = vpop.xlane.xlu0 %2063
    %v2065 = vmul.f32 %v2061, %v984
    %v2066 = vmul.f32 %v2064, %v984
    %v2067 = vadd.f32 %v2065, 1e-05
    %v2068 = vadd.f32 %v2066, 1e-05
    %v2069 = vrsqrt.pop %v2067
    %v2070 = vmul.f32 %v2069, %v2067
    %v2071 = vmul.f32 %v2070, %v2069
    %v2072 = vmul.f32 0.5, %v2071
    %v2073 = vsub.f32 1.5, %v2072
    %v2074 = vmul.f32 %v2069, %v2073
    %vm2075 = vweird.f32 %v2067
    %vm2076 = vweird.f32 %v2069
    %vm2077 = vmor %vm2075, %vm2076
    %v2078 = vsel %vm2077, %v2069, %v2074
    %v2079 = vrsqrt.pop %v2068
    %v2080 = vmul.f32 %v2079, %v2068
    %v2081 = vmul.f32 %v2080, %v2079
    %v2082 = vmul.f32 0.5, %v2081
    %v2083 = vsub.f32 1.5, %v2082
    %v2084 = vmul.f32 %v2079, %v2083
    %vm2085 = vweird.f32 %v2068
    %vm2086 = vweird.f32 %v2079
    %vm2087 = vmor %vm2085, %vm2086
    %v2088 = vsel %vm2087, %v2079, %v2084
    %v2089 = vmul.f32 %v2055, %v2078
    %v2090 = vmul.f32 %v2056, %v2088
    %v2092 = vperm.slane %v2044, 0
    %v2094 = vmul.f32 %v2089, %v2092
    %v2095 = vmul.f32 %v2090, %v2092
    %v2097 = vperm.slane %v2046, 0
    %v2099 = vadd.f32 %v2094, %v2097
    %v2100 = vadd.f32 %v2095, %v2097
    %s2101 = scalar_lea.vmem %s8, 32
    %v2102 = vld [vmem:[%s2101] sm:$0xff]
    %v2103 = vld [vmem:[%s2101 + $0x8] sm:$0xff]
    %v2104 = vld [vmem:[%s2101 + $0x10] sm:$0xff]
    %v2105 = vld [vmem:[%s2101 + $0x18] sm:$0xff]
    %s2106 = scalar_lea.vmem %s9, 1
    %v2107 = vld [vmem:[%s2106] sm:$0x1]
    %v2109 = vperm.slane %v2107, 0
    %v2112 = vsel %vm109, %v2099, 0
    %v2115 = vsel %vm109, %v2100, 0
    %2117 = vmatpush.msra.mxu0 0.0
    %2118 = vmatpush.msra.mxu0 0.0
    %2119 = vmatpush.msra.mxu0 0.0
    %2120 = vmatpush.msra.mxu0 0.0
    %2121 = vmatpush.msra.mxu0 0.0
    %2122 = vmatpush.msra.mxu0 0.0
    %2123 = vmatpush.msra.mxu0 0.0
    %2124 = vmatpush.msra.mxu0 0.0
    %2125 = vmatpush.msra.mxu0 0.0
    %2126 = vmatpush.msra.mxu0 0.0
    %2127 = vmatpush.msra.mxu0 0.0
    %2128 = vmatpush.msra.mxu0 0.0
    %2129 = vmatpush.msra.mxu0 %v2105
    %2130 = vmatpush.msra.mxu0 %v2104
    %2131 = vmatpush.msra.mxu0 %v2103
    %2132 = vmatpush.msra.mxu0 %v2102
    %2133 = vmatmul.f32.gmra.mxu0 %v2112
    %v2134 = vpop.f32.mrf.mxu0
    %v2135 = vadd.f32 %v2109, %v2134
    %2136 = vmatmul.f32.gmra.mxu0 %v2115
    %v2137 = vpop.f32.mrf.mxu0
    %v2138 = vadd.f32 %v2109, %v2137
    %2139 = vdwg.mxu0
    %v2140 = vmax.f32 %v2135, 0.0
    %v2141 = vmax.f32 %v2138, 0.0
    %s2142 = scalar_lea.vmem %s10, 64
    %v2143 = vld [vmem:[%s2142] sm:$0xff]
    %v2144 = vld [vmem:[%s2142 + $0x8] sm:$0xff]
    %v2145 = vld [vmem:[%s2142 + $0x10] sm:$0xff]
    %v2146 = vld [vmem:[%s2142 + $0x18] sm:$0xff]
    %v2147 = vld [vmem:[%s2142 + $0x20] sm:$0xff]
    %v2148 = vld [vmem:[%s2142 + $0x28] sm:$0xff]
    %v2149 = vld [vmem:[%s2142 + $0x30] sm:$0xff]
    %v2150 = vld [vmem:[%s2142 + $0x38] sm:$0xff]
    %s2151 = scalar_lea.vmem %s11, 1
    %v2152 = vld [vmem:[%s2151] sm:$0x1]
    %v2154 = vperm.slane %v2152, 0
    %v2157 = vsel %vm1084, %v2140, 0
    %v2160 = vsel %vm1084, %v2141, 0
    %2162 = vmatpush.msra.mxu0 0.0
    %2163 = vmatpush.msra.mxu0 0.0
    %2164 = vmatpush.msra.mxu0 0.0
    %2165 = vmatpush.msra.mxu0 0.0
    %2166 = vmatpush.msra.mxu0 0.0
    %2167 = vmatpush.msra.mxu0 0.0
    %2168 = vmatpush.msra.mxu0 0.0
    %2169 = vmatpush.msra.mxu0 0.0
    %2170 = vmatpush.msra.mxu0 %v2150
    %2171 = vmatpush.msra.mxu0 %v2149
    %2172 = vmatpush.msra.mxu0 %v2148
    %2173 = vmatpush.msra.mxu0 %v2147
    %2174 = vmatpush.msra.mxu0 %v2146
    %2175 = vmatpush.msra.mxu0 %v2145
    %2176 = vmatpush.msra.mxu0 %v2144
    %2177 = vmatpush.msra.mxu0 %v2143
    %2178 = vmatmul.f32.gmra.mxu0 %v2157
    %v2179 = vpop.f32.mrf.mxu0
    %v2180 = vadd.f32 %v2154, %v2179
    %2181 = vmatmul.f32.gmra.mxu0 %v2160
    %v2182 = vpop.f32.mrf.mxu0
    %v2183 = vadd.f32 %v2154, %v2182
    %2184 = vdwg.mxu0
    %v2185 = vadd.f32 %v2099, %v2180
    %v2186 = vadd.f32 %v2100, %v2183
    %s2187 = scalar_lea.vmem %s14, 1
    %v2188 = vld [vmem:[%s2187] sm:$0x1]
    %s2189 = scalar_lea.vmem %s15, 1
    %v2190 = vld [vmem:[%s2189] sm:$0x1]
    %v2191 = vsel %vm109, %v2185, 0.0
    %2192 = vadd.xlane.f32.xlu0 %v2191
    %v2193 = vpop.xlane.xlu0 %2192
    %v2194 = vsel %vm109, %v2186, 0.0
    %2195 = vadd.xlane.f32.xlu0 %v2194
    %v2196 = vpop.xlane.xlu0 %2195
    %v2197 = vmul.f32 %v2193, %v984
    %v2198 = vmul.f32 %v2196, %v984
    %v2199 = vsub.f32 %v2185, %v2197
    %v2200 = vsub.f32 %v2186, %v2198
    %v2201 = vmul.f32 %v2199, %v2199
    %v2202 = vmul.f32 %v2200, %v2200
    %v2203 = vsel %vm109, %v2201, 0.0
    %2204 = vadd.xlane.f32.xlu0 %v2203
    %v2205 = vpop.xlane.xlu0 %2204
    %v2206 = vsel %vm109, %v2202, 0.0
    %2207 = vadd.xlane.f32.xlu0 %v2206
    %v2208 = vpop.xlane.xlu0 %2207
    %v2209 = vmul.f32 %v2205, %v984
    %v2210 = vmul.f32 %v2208, %v984
    %v2211 = vadd.f32 %v2209, 1e-05
    %v2212 = vadd.f32 %v2210, 1e-05
    %v2213 = vrsqrt.pop %v2211
    %v2214 = vmul.f32 %v2213, %v2211
    %v2215 = vmul.f32 %v2214, %v2213
    %v2216 = vmul.f32 0.5, %v2215
    %v2217 = vsub.f32 1.5, %v2216
    %v2218 = vmul.f32 %v2213, %v2217
    %vm2219 = vweird.f32 %v2211
    %vm2220 = vweird.f32 %v2213
    %vm2221 = vmor %vm2219, %vm2220
    %v2222 = vsel %vm2221, %v2213, %v2218
    %v2223 = vrsqrt.pop %v2212
    %v2224 = vmul.f32 %v2223, %v2212
    %v2225 = vmul.f32 %v2224, %v2223
    %v2226 = vmul.f32 0.5, %v2225
    %v2227 = vsub.f32 1.5, %v2226
    %v2228 = vmul.f32 %v2223, %v2227
    %vm2229 = vweird.f32 %v2212
    %vm2230 = vweird.f32 %v2223
    %vm2231 = vmor %vm2229, %vm2230
    %v2232 = vsel %vm2231, %v2223, %v2228
    %v2233 = vmul.f32 %v2199, %v2222
    %v2234 = vmul.f32 %v2200, %v2232
    %v2236 = vperm.slane %v2188, 0
    %v2238 = vmul.f32 %v2233, %v2236
    %v2239 = vmul.f32 %v2234, %v2236
    %v2241 = vperm.slane %v2190, 0
    %v2243 = vadd.f32 %v2238, %v2241
    %v2244 = vadd.f32 %v2239, %v2241
    %v2245 = vadd.f32 %v2243, %v2244
    %v2246 = vmul.f32 %v2245, 0.5
    %v2247 = vld [vmem:[%s16] sm:$0xff]
    %v2248 = vld [vmem:[%s16 + $0x8] sm:$0xff]
    %v2249 = vld [vmem:[%s16 + $0x10] sm:$0xff]
    %v2250 = vld [vmem:[%s16 + $0x18] sm:$0xff]
    %v2251 = vld [vmem:[%s17] sm:$0x1]
    %v2253 = vperm.slane %v2251, 0
    %v2256 = vsel %vm109, %v2246, 0
    %2258 = vmatpush.msra.mxu0 0.0
    %2259 = vmatpush.msra.mxu0 0.0
    %2260 = vmatpush.msra.mxu0 0.0
    %2261 = vmatpush.msra.mxu0 0.0
    %2262 = vmatpush.msra.mxu0 0.0
    %2263 = vmatpush.msra.mxu0 0.0
    %2264 = vmatpush.msra.mxu0 0.0
    %2265 = vmatpush.msra.mxu0 0.0
    %2266 = vmatpush.msra.mxu0 0.0
    %2267 = vmatpush.msra.mxu0 0.0
    %2268 = vmatpush.msra.mxu0 0.0
    %2269 = vmatpush.msra.mxu0 0.0
    %2270 = vmatpush.msra.mxu0 %v2250
    %2271 = vmatpush.msra.mxu0 %v2249
    %2272 = vmatpush.msra.mxu0 %v2248
    %2273 = vmatpush.msra.mxu0 %v2247
    %2274 = vmatmul.f32.gmra.mxu0 %v2256
    %v2275 = vpop.f32.mrf.mxu0
    %v2276 = vadd.f32 %v2253, %v2275
    %2277 = vdwg.mxu0
    %vm2278 = vcmask 39936
    %2279 = vst.msk [vmem:[#allocation2] sm:$0xff] %vm2278, %v2276
    // Predicated region
    $region74: #{transformer_classifier_forward.1} parent=1 // pred_check
      _
    $region75: #{transformer_classifier_forward.1} parent=1 // pred_check_branch
      %2281 = sbr.rel (0) target = $region77
    $region76: #{transformer_classifier_forward.1} parent=1 // pred_region
      %2283 = vsyncadd [#allocation3], 0
      %s2285 = sshll.u32 [#allocation2], 4
      %s2286 = int_to_ptr.vmem [resolvable:$true] %s2285
      %s2287 = sshll.u32 %s18, 4
      %s2288 = int_to_ptr.hbm [resolvable:$true] %s2287
      %2290 = dma.vmem_to_hbm [thread:$0]  %s2286, 128, %s2288, [#allocation3]
    $region77: #{transformer_classifier_forward.1} parent=1 // pred_fallthru
      _
    // Predicated region
    $region78: #{transformer_classifier_forward.1} parent=1 // pred_check
      _
    $region79: #{transformer_classifier_forward.1} parent=1 // pred_check_branch
      %2292 = sbr.rel (0) target = $region81
    $region80: #{transformer_classifier_forward.1} parent=1 // pred_region
      %2294 = dma.done [#allocation3], 128
    $region81: #{transformer_classifier_forward.1} parent=1 // pred_fallthru
      _
    %2295 = vsyncpa [#allocation3], 1

</llo_original>
